<compile_context>
chip_gen: v7x
topology: tpu7x:2x2x1
jax: 0.10.0
libtpu: 0.0.40
codegen_flags: <defaults>
</compile_context>

<pallas_src>
import jax
import jax.numpy as jnp
import numpy as np
from jax.experimental import pallas as pl
from jax.experimental.pallas import tpu as pltpu

BN_EPS = 1e-5
_HP = jax.lax.Precision.HIGHEST   # tiny f32 matmuls only; keeps conv/BN numerics f32-exact


# ----------------------------- Pallas kernels ---------------------------------------

def fused_conv_kernel(xw_ref, w1_ref, w2_ref, p_ref, o_ref):
    """Both conv stages, fused and lane-dense (lanes = b*T4 + t4).

    xw_ref : (N4, 160)  one row per final time step; 160 = 2*5*2*8 nested window samples
    w1_ref : (80, 160)  block-diagonal conv1 weight; out row = p1*40 + (p2*5+k2)*4 + c1
    w2_ref : (32, 40)   block-diagonal conv2 weight; out row = p2*16 + c2
    p_ref  : (160, 1)   packed [b1big(80) | g1(4) pad | beta1(4) pad | b2big(32) | g2(16) | beta2(16)]
    o_ref  : (16, N4)   stage-2 BN output, row = c2, lane = b*T4 + t4
    """
    n4 = xw_ref.shape[0]
    pv = p_ref[...]
    b1, g1c, be1c = pv[0:80, :], pv[80:84, :], pv[88:92, :]
    b2, g2c, be2c = pv[96:128, :], pv[128:144, :], pv[144:160, :]

    # ---- Conv1d(1->4, k=8, s=8) + bias + ReLU, all 20 window slots at once -----------
    # (80,160) x (N4,160)^T -> (80, N4); rhs "transpose" expressed via dot dimension numbers.
    y1 = jax.lax.dot_general(
        w1_ref[...], xw_ref[...],
        dimension_numbers=(((1,), (1,)), ((), ())),
        preferred_element_type=jnp.float32, precision=_HP)
    y1 = jnp.maximum(y1 + b1, 0.0)

    # ---- MaxPool1d(2,2): pool pair p1 is row blocks [0:40) vs [40:80) -----------------
    p1 = jnp.maximum(y1[0:40, :], y1[40:80, :])          # (40, N4), row = (p2*5+k2)*4 + c1

    # ---- BatchNorm1d(4): training-mode batch stats over B*T2 = 10*N4 elems per channel.
    # Channel of row r is r % 4; 0/1 selector matmuls do the grouped reduce + broadcast.
    sel = (jax.lax.broadcasted_iota(jnp.int32, (4, 40), 1) % 4
           == jax.lax.broadcasted_iota(jnp.int32, (4, 40), 0)).astype(jnp.float32)
    selt = (jax.lax.broadcasted_iota(jnp.int32, (40, 4), 0) % 4
            == jax.lax.broadcasted_iota(jnp.int32, (40, 4), 1)).astype(jnp.float32)
    cnt1 = 10.0 * n4
    rsum = jnp.sum(p1, axis=1, keepdims=True)                                   # (40, 1)
    m_c = jnp.dot(sel, rsum, preferred_element_type=jnp.float32, precision=_HP) / cnt1
    m_r = jnp.dot(selt, m_c, preferred_element_type=jnp.float32, precision=_HP)
    d1 = p1 - m_r
    v_c = jnp.dot(sel, jnp.sum(d1 * d1, axis=1, keepdims=True),
                  preferred_element_type=jnp.float32, precision=_HP) / cnt1      # biased var
    sc_c = g1c * jax.lax.rsqrt(v_c + BN_EPS)
    z1 = (d1 * jnp.dot(selt, sc_c, preferred_element_type=jnp.float32, precision=_HP)
          + jnp.dot(selt, be1c, preferred_element_type=jnp.float32, precision=_HP))

    # ---- Conv1d(4->16, k=5, s=5) + bias + ReLU, both pool slots at once ---------------
    y2 = jnp.dot(w2_ref[...], z1, preferred_element_type=jnp.float32, precision=_HP)
    y2 = jnp.maximum(y2 + b2, 0.0)                        # (32, N4)

    # ---- MaxPool1d(2,2): pool pair p2 is row blocks [0:16) vs [16:32) -----------------
    q = jnp.maximum(y2[0:16, :], y2[16:32, :])            # (16, N4)

    # ---- BatchNorm1d(16): one row per channel -> plain lane reductions ----------------
    m2 = jnp.mean(q, axis=1, keepdims=True)
    d2 = q - m2
    v2 = jnp.mean(d2 * d2, axis=1, keepdims=True)
    o_ref[...] = d2 * (g2c * jax.lax.rsqrt(v2 + BN_EPS)) + be2c


def linear_kernel(x_ref, w_ref, b_ref, o_ref, acc_ref):
    """acc[B,te] += x[tk,B]^T @ w[tk,te]  (bf16 operands, f32 accumulator)."""
    k = pl.program_id(1)

    @pl.when(k == 0)
    def _init():
        acc_ref[...] = jnp.zeros_like(acc_ref)

    acc_ref[...] += jax.lax.dot_general(
        x_ref[...], w_ref[...],
        dimension_numbers=(((0,), (0,)), ((), ())),
        preferred_element_type=jnp.float32)

    @pl.when(k == pl.num_programs(1) - 1)
    def _finalize():
        o_ref[...] = acc_ref[...] + b_ref[...]


# ----------------------------- wrapper ------------------------------------------------

def _vmem_spec():
    return pl.BlockSpec(memory_space=pltpu.MemorySpace.VMEM)


def _tile(dim, target, multiple):
    """Largest divisor of `dim` that is a multiple of `multiple` and <= target, else `dim`."""
    best = None
    d = multiple
    while d <= min(dim, target):
        if dim % d == 0:
            best = d
        d += multiple
    return best if best is not None else dim


def aud_encoder_forward(x, params):
    B, L = x.shape
    assert L % 160 == 0, "aud_length must be divisible by 8*2*5*2 = 160"
    T4 = L // 160
    N4 = B * T4
    K = 16 * T4
    E = params["bl"].shape[-1]

    # Only wrapper-side prep for the conv input: a free contiguous reshape (no gathers).
    xw = x.reshape(N4, 160)

    z2 = pl.pallas_call(
        fused_conv_kernel,
        out_shape=jax.ShapeDtypeStruct((16, N4), jnp.float32),
        in_specs=[_vmem_spec()] * 4,
        out_specs=_vmem_spec(),
    )(xw, params["w1big"], params["w2big"], params["pvec"])

    # PyTorch Flatten order is channel-major (feature = c2*T4 + t4).  Present the linear input
    # as (K, B) so the K axis can be block-tiled on sublanes; bf16 halves its HBM bytes.
    xlin = jnp.transpose(z2.reshape(16, B, T4), (0, 2, 1)).reshape(K, B).astype(jnp.bfloat16)

    tk = _tile(K, 512, 8)       # contraction ('arbitrary') tile
    te = _tile(E, 256, 128)     # output-feature ('parallel') tile

    return pl.pallas_call(
        linear_kernel,
        out_shape=jax.ShapeDtypeStruct((B, E), jnp.float32),
        grid_spec=pltpu.PrefetchScalarGridSpec(
            num_scalar_prefetch=0,
            grid=(E // te, K // tk),
            in_specs=[pl.BlockSpec((tk, B), lambda j, k: (k, 0)),
                      pl.BlockSpec((tk, te), lambda j, k: (k, j)),
                      pl.BlockSpec((1, te), lambda j, k: (0, j))],
            out_specs=pl.BlockSpec((B, te), lambda j, k: (0, j)),
            scratch_shapes=[pltpu.VMEM((B, te), jnp.float32)]),
        compiler_params=pltpu.CompilerParams(
            dimension_semantics=("parallel", "arbitrary")),
    )(xlin, params["wl_ke"], params["bl"])


# ----------------------------- parameter init / packing -------------------------------

def init_raw_params(key, aud_length, target_emb_len):
    T4 = aud_length // 160
    ks = jax.random.split(key, 10)
    w1 = jax.random.normal(ks[0], (4, 1, 8), jnp.float32) / jnp.sqrt(8.0)
    b1 = 0.1 * jax.random.normal(ks[1], (4,), jnp.float32)
    g1 = 1.0 + 0.1 * jax.random.normal(ks[2], (4,), jnp.float32)
    beta1 = 0.1 * jax.random.normal(ks[3], (4,), jnp.float32)
    w2 = jax.random.normal(ks[4], (16, 4, 5), jnp.float32) / jnp.sqrt(20.0)
    b2 = 0.1 * jax.random.normal(ks[5], (16,), jnp.float32)
    g2 = 1.0 + 0.1 * jax.random.normal(ks[6], (16,), jnp.float32)
    beta2 = 0.1 * jax.random.normal(ks[7], (16,), jnp.float32)
    wl = jax.random.normal(ks[8], (target_emb_len, 16 * T4), jnp.float32) / jnp.sqrt(16.0 * T4)
    bl = 0.1 * jax.random.normal(ks[9], (target_emb_len,), jnp.float32)
    return dict(w1=w1, b1=b1, g1=g1, beta1=beta1,
                w2=w2, b2=b2, g2=g2, beta2=beta2, wl=wl, bl=bl)


def pack_kernel_params(raw):
    w1m = raw["w1"][:, 0, :]                                            # (4, 8)  = (c1, k1)
    # conv1 applied to all 20 window slots at once (block-diagonal over (p2,k2,p1)):
    #   row = p1*40 + (p2*5+k2)*4 + c1 ;  col = (p2*5+k2)*16 + p1*8 + k1
    w1big = jnp.einsum("ck,gh,pq->pgchqk", w1m,
                       jnp.eye(10, dtype=jnp.float32),
                       jnp.eye(2, dtype=jnp.float32)).reshape(80, 160)
    # conv2 applied to both pool slots at once (block-diagonal over p2):
    #   row = p2*16 + c2 ;  col = (p2*5+k2)*4 + c1
    w2big = jnp.einsum("oik,pq->poqki", raw["w2"],
                       jnp.eye(2, dtype=jnp.float32)).reshape(32, 40)
    # all per-channel bias / BN-affine vectors packed into one (160,1) ref (8-aligned slices)
    pvec = jnp.zeros((160,), jnp.float32)
    pvec = pvec.at[0:80].set(jnp.tile(raw["b1"], 20))
    pvec = pvec.at[80:84].set(raw["g1"])
    pvec = pvec.at[88:92].set(raw["beta1"])
    pvec = pvec.at[96:128].set(jnp.tile(raw["b2"], 2))
    pvec = pvec.at[128:144].set(raw["g2"])
    pvec = pvec.at[144:160].set(raw["beta2"])
    return {
        "w1big": w1big,
        "w2big": w2big,
        "pvec": pvec.reshape(160, 1),
        "wl_ke": jnp.transpose(raw["wl"]).astype(jnp.bfloat16),          # (K, E) bf16 storage
        "bl": raw["bl"].reshape(1, -1),                                   # (1, E) f32
    }


# ----------------------------- pure-JAX reference (PyTorch NCL semantics) --------------

def ref_forward(x, raw):
    B, L = x.shape
    T1, T2 = L // 8, L // 16
    T3, T4 = T2 // 5, T2 // 10
    # Conv1d(1->4, k=8, s=8) + ReLU + MaxPool(2) + BN(4)
    y = jnp.einsum("btk,ck->bct", x.reshape(B, T1, 8), raw["w1"][:, 0, :], precision=_HP) \
        + raw["b1"][None, :, None]
    y = jnp.maximum(y, 0.0)
    y = jnp.max(y.reshape(B, 4, T2, 2), axis=-1)
    m = y.mean(axis=(0, 2), keepdims=True)
    v = ((y - m) ** 2).mean(axis=(0, 2), keepdims=True)
    y = (y - m) / jnp.sqrt(v + BN_EPS) * raw["g1"][None, :, None] + raw["beta1"][None, :, None]
    # Conv1d(4->16, k=5, s=5) + ReLU + MaxPool(2) + BN(16)
    y = jnp.einsum("bitk,oik->bot", y.reshape(B, 4, T3, 5), raw["w2"], precision=_HP) \
        + raw["b2"][None, :, None]
    y = jnp.maximum(y, 0.0)
    y = jnp.max(y.reshape(B, 16, T4, 2), axis=-1)
    m = y.mean(axis=(0, 2), keepdims=True)
    v = ((y - m) ** 2).mean(axis=(0, 2), keepdims=True)
    y = (y - m) / jnp.sqrt(v + BN_EPS) * raw["g2"][None, :, None] + raw["beta2"][None, :, None]
    # Flatten (channel-major) + Linear
    return jnp.einsum("bf,ef->be", y.reshape(B, -1), raw["wl"], precision=_HP) \
        + raw["bl"][None, :]


# ----------------------------- main ----------------------------------------------------

if __name__ == "__main__":
    B = 4
    AUD_LEN = 1600          # small, divisible by 160 (full module uses 48000)
    EMB = 128               # small target_emb_len (full module uses 768)

    key = jax.random.PRNGKey(0)
    kx, kp = jax.random.split(key)
    x = jax.random.normal(kx, (B, AUD_LEN), jnp.float32)

    raw = init_raw_params(kp, AUD_LEN, EMB)
    params = pack_kernel_params(raw)

    fwd = jax.jit(aud_encoder_forward)
    out = jax.block_until_ready(fwd(x, params))

    ref = jax.block_until_ready(ref_forward(x, raw))
    # tolerance reflects bf16 storage of the linear weight/input (conv stages are f32-exact)
    np.testing.assert_allclose(np.asarray(out), np.asarray(ref), rtol=2e-2, atol=2e-2)
    assert out.shape == (B, EMB)

    print("KERNEL_OK")
</pallas_src>

<mosaic_0001>
module attributes {stable_mosaic.version = 11 : i64} {
  func.func @fused_conv_kernel(%arg0: memref<40x160xf32, #tpu.memory_space<vmem>>, %arg1: memref<80x160xf32, #tpu.memory_space<vmem>>, %arg2: memref<32x40xf32, #tpu.memory_space<vmem>>, %arg3: memref<160x1xf32, #tpu.memory_space<vmem>>, %arg4: memref<16x40xf32, #tpu.memory_space<vmem>>) attributes {dimension_semantics = [], scalar_prefetch = 0 : i64, scratch_operands = 0 : i64, tpu.core_type = #tpu.core_type<tc>} {
    %c0 = arith.constant 0 : index
    %c0_0 = arith.constant 0 : index
    %0 = vector.load %arg3[%c0, %c0_0] : memref<160x1xf32, #tpu.memory_space<vmem>>, vector<160x1xf32>
    %1 = vector.extract_strided_slice %0 {offsets = [0, 0], sizes = [80, 1], strides = [1, 1]} : vector<160x1xf32> to vector<80x1xf32>
    %2 = vector.extract_strided_slice %0 {offsets = [80, 0], sizes = [4, 1], strides = [1, 1]} : vector<160x1xf32> to vector<4x1xf32>
    %3 = vector.extract_strided_slice %0 {offsets = [88, 0], sizes = [4, 1], strides = [1, 1]} : vector<160x1xf32> to vector<4x1xf32>
    %4 = vector.extract_strided_slice %0 {offsets = [96, 0], sizes = [32, 1], strides = [1, 1]} : vector<160x1xf32> to vector<32x1xf32>
    %5 = vector.extract_strided_slice %0 {offsets = [128, 0], sizes = [16, 1], strides = [1, 1]} : vector<160x1xf32> to vector<16x1xf32>
    %6 = vector.extract_strided_slice %0 {offsets = [144, 0], sizes = [16, 1], strides = [1, 1]} : vector<160x1xf32> to vector<16x1xf32>
    %c0_1 = arith.constant 0 : index
    %c0_2 = arith.constant 0 : index
    %7 = vector.load %arg1[%c0_1, %c0_2] : memref<80x160xf32, #tpu.memory_space<vmem>>, vector<80x160xf32>
    %c0_3 = arith.constant 0 : index
    %c0_4 = arith.constant 0 : index
    %8 = vector.load %arg0[%c0_3, %c0_4] : memref<40x160xf32, #tpu.memory_space<vmem>>, vector<40x160xf32>
    %cst = arith.constant dense<0.000000e+00> : vector<80x40xf32>
    %9 = tpu.matmul %7, %8, %cst {dimension_numbers = #tpu.dot_dimension_numbers<[1], [1], [0], [0], [0, 0, 1, 0], [], []>, precision = #tpu.contract_precision<fp32>} : vector<80x160xf32>, vector<40x160xf32>, vector<80x40xf32> -> vector<80x40xf32>
    %10 = vector.broadcast %1 : vector<80x1xf32> to vector<80x40xf32>
    %11 = arith.addf %9, %10 : vector<80x40xf32>
    %cst_5 = arith.constant 0.000000e+00 : f32
    %12 = vector.broadcast %cst_5 : f32 to vector<80x40xf32>
    %13 = arith.maximumf %11, %12 : vector<80x40xf32>
    %14 = vector.extract_strided_slice %13 {offsets = [0, 0], sizes = [40, 40], strides = [1, 1]} : vector<80x40xf32> to vector<40x40xf32>
    %15 = vector.extract_strided_slice %13 {offsets = [40, 0], sizes = [40, 40], strides = [1, 1]} : vector<80x40xf32> to vector<40x40xf32>
    %16 = arith.maximumf %14, %15 : vector<40x40xf32>
    %17 = tpu.iota {dimensions = array<i32: 1>} : vector<4x40xi32>
    %c4_i32 = arith.constant 4 : i32
    %c0_i32 = arith.constant 0 : i32
    %18 = arith.cmpi eq, %c4_i32, %c0_i32 : i32
    %c1_i32 = arith.constant 1 : i32
    %19 = arith.select %18, %c1_i32, %c4_i32 : i32
    %20 = vector.broadcast %19 : i32 to vector<4x40xi32>
    %21 = arith.remsi %17, %20 : vector<4x40xi32>
    %c0_i32_6 = arith.constant 0 : i32
    %22 = vector.broadcast %c0_i32_6 : i32 to vector<4x40xi32>
    %23 = arith.cmpi ne, %21, %22 : vector<4x40xi32>
    %c0_i32_7 = arith.constant 0 : i32
    %24 = vector.broadcast %c0_i32_7 : i32 to vector<4x40xi32>
    %25 = arith.cmpi slt, %21, %24 : vector<4x40xi32>
    %c0_i32_8 = arith.constant 0 : i32
    %26 = arith.cmpi slt, %19, %c0_i32_8 : i32
    %27 = vector.broadcast %26 : i1 to vector<4x40xi1>
    %28 = vector.broadcast %27 : vector<4x40xi1> to vector<4x40xi1>
    %29 = arith.xori %25, %28 : vector<4x40xi1>
    %30 = arith.andi %29, %23 : vector<4x40xi1>
    %31 = vector.broadcast %19 : i32 to vector<4x40xi32>
    %32 = arith.addi %21, %31 : vector<4x40xi32>
    %33 = arith.select %30, %32, %21 : vector<4x40xi1>, vector<4x40xi32>
    %34 = tpu.iota {dimensions = array<i32: 0>} : vector<4x40xi32>
    %35 = arith.cmpi eq, %33, %34 : vector<4x40xi32>
    %36 = arith.extui %35 : vector<4x40xi1> to vector<4x40xi32>
    %37 = arith.sitofp %36 : vector<4x40xi32> to vector<4x40xf32>
    %38 = tpu.iota {dimensions = array<i32: 0>} : vector<40x4xi32>
    %c4_i32_9 = arith.constant 4 : i32
    %c0_i32_10 = arith.constant 0 : i32
    %39 = arith.cmpi eq, %c4_i32_9, %c0_i32_10 : i32
    %c1_i32_11 = arith.constant 1 : i32
    %40 = arith.select %39, %c1_i32_11, %c4_i32_9 : i32
    %41 = vector.broadcast %40 : i32 to vector<40x4xi32>
    %42 = arith.remsi %38, %41 : vector<40x4xi32>
    %c0_i32_12 = arith.constant 0 : i32
    %43 = vector.broadcast %c0_i32_12 : i32 to vector<40x4xi32>
    %44 = arith.cmpi ne, %42, %43 : vector<40x4xi32>
    %c0_i32_13 = arith.constant 0 : i32
    %45 = vector.broadcast %c0_i32_13 : i32 to vector<40x4xi32>
    %46 = arith.cmpi slt, %42, %45 : vector<40x4xi32>
    %c0_i32_14 = arith.constant 0 : i32
    %47 = arith.cmpi slt, %40, %c0_i32_14 : i32
    %48 = vector.broadcast %47 : i1 to vector<40x4xi1>
    %49 = vector.broadcast %48 : vector<40x4xi1> to vector<40x4xi1>
    %50 = arith.xori %46, %49 : vector<40x4xi1>
    %51 = arith.andi %50, %44 : vector<40x4xi1>
    %52 = vector.broadcast %40 : i32 to vector<40x4xi32>
    %53 = arith.addi %42, %52 : vector<40x4xi32>
    %54 = arith.select %51, %53, %42 : vector<40x4xi1>, vector<40x4xi32>
    %55 = tpu.iota {dimensions = array<i32: 1>} : vector<40x4xi32>
    %56 = arith.cmpi eq, %54, %55 : vector<40x4xi32>
    %57 = arith.extui %56 : vector<40x4xi1> to vector<40x4xi32>
    %58 = arith.sitofp %57 : vector<40x4xi32> to vector<40x4xf32>
    %cst_15 = arith.constant dense<0.000000e+00> : vector<40xf32>
    %59 = vector.multi_reduction <add>, %16, %cst_15 [1] : vector<40x40xf32> to vector<40xf32>
    %60 = vector.shape_cast %59 : vector<40xf32> to vector<40x1xf32>
    %cst_16 = arith.constant dense<0.000000e+00> : vector<4x1xf32>
    %61 = tpu.matmul %37, %60, %cst_16 {dimension_numbers = #tpu.dot_dimension_numbers<[1], [0], [0], [1], [0, 0, 1, 1], [], []>, precision = #tpu.contract_precision<fp32>} : vector<4x40xf32>, vector<40x1xf32>, vector<4x1xf32> -> vector<4x1xf32>
    %cst_17 = arith.constant 4.000000e+02 : f32
    %62 = vector.broadcast %cst_17 : f32 to vector<4x1xf32>
    %63 = arith.divf %61, %62 : vector<4x1xf32>
    %cst_18 = arith.constant dense<0.000000e+00> : vector<40x1xf32>
    %64 = tpu.matmul %58, %63, %cst_18 {dimension_numbers = #tpu.dot_dimension_numbers<[1], [0], [0], [1], [0, 0, 1, 1], [], []>, precision = #tpu.contract_precision<fp32>} : vector<40x4xf32>, vector<4x1xf32>, vector<40x1xf32> -> vector<40x1xf32>
    %65 = vector.broadcast %64 : vector<40x1xf32> to vector<40x40xf32>
    %66 = arith.subf %16, %65 : vector<40x40xf32>
    %67 = arith.mulf %66, %66 : vector<40x40xf32>
    %cst_19 = arith.constant dense<0.000000e+00> : vector<40xf32>
    %68 = vector.multi_reduction <add>, %67, %cst_19 [1] : vector<40x40xf32> to vector<40xf32>
    %69 = vector.shape_cast %68 : vector<40xf32> to vector<40x1xf32>
    %cst_20 = arith.constant dense<0.000000e+00> : vector<4x1xf32>
    %70 = tpu.matmul %37, %69, %cst_20 {dimension_numbers = #tpu.dot_dimension_numbers<[1], [0], [0], [1], [0, 0, 1, 1], [], []>, precision = #tpu.contract_precision<fp32>} : vector<4x40xf32>, vector<40x1xf32>, vector<4x1xf32> -> vector<4x1xf32>
    %cst_21 = arith.constant 4.000000e+02 : f32
    %71 = vector.broadcast %cst_21 : f32 to vector<4x1xf32>
    %72 = arith.divf %70, %71 : vector<4x1xf32>
    %cst_22 = arith.constant 9.99999974E-6 : f32
    %73 = vector.broadcast %cst_22 : f32 to vector<4x1xf32>
    %74 = arith.addf %72, %73 : vector<4x1xf32>
    %75 = math.rsqrt %74 : vector<4x1xf32>
    %76 = arith.mulf %2, %75 : vector<4x1xf32>
    %cst_23 = arith.constant dense<0.000000e+00> : vector<40x1xf32>
    %77 = tpu.matmul %58, %76, %cst_23 {dimension_numbers = #tpu.dot_dimension_numbers<[1], [0], [0], [1], [0, 0, 1, 1], [], []>, precision = #tpu.contract_precision<fp32>} : vector<40x4xf32>, vector<4x1xf32>, vector<40x1xf32> -> vector<40x1xf32>
    %78 = vector.broadcast %77 : vector<40x1xf32> to vector<40x40xf32>
    %79 = arith.mulf %66, %78 : vector<40x40xf32>
    %cst_24 = arith.constant dense<0.000000e+00> : vector<40x1xf32>
    %80 = tpu.matmul %58, %3, %cst_24 {dimension_numbers = #tpu.dot_dimension_numbers<[1], [0], [0], [1], [0, 0, 1, 1], [], []>, precision = #tpu.contract_precision<fp32>} : vector<40x4xf32>, vector<4x1xf32>, vector<40x1xf32> -> vector<40x1xf32>
    %81 = vector.broadcast %80 : vector<40x1xf32> to vector<40x40xf32>
    %82 = arith.addf %79, %81 : vector<40x40xf32>
    %c0_25 = arith.constant 0 : index
    %c0_26 = arith.constant 0 : index
    %83 = vector.load %arg2[%c0_25, %c0_26] : memref<32x40xf32, #tpu.memory_space<vmem>>, vector<32x40xf32>
    %cst_27 = arith.constant dense<0.000000e+00> : vector<32x40xf32>
    %84 = tpu.matmul %83, %82, %cst_27 {dimension_numbers = #tpu.dot_dimension_numbers<[1], [0], [0], [1], [0, 0, 1, 1], [], []>, precision = #tpu.contract_precision<fp32>} : vector<32x40xf32>, vector<40x40xf32>, vector<32x40xf32> -> vector<32x40xf32>
    %85 = vector.broadcast %4 : vector<32x1xf32> to vector<32x40xf32>
    %86 = arith.addf %84, %85 : vector<32x40xf32>
    %cst_28 = arith.constant 0.000000e+00 : f32
    %87 = vector.broadcast %cst_28 : f32 to vector<32x40xf32>
    %88 = arith.maximumf %86, %87 : vector<32x40xf32>
    %89 = vector.extract_strided_slice %88 {offsets = [0, 0], sizes = [16, 40], strides = [1, 1]} : vector<32x40xf32> to vector<16x40xf32>
    %90 = vector.extract_strided_slice %88 {offsets = [16, 0], sizes = [16, 40], strides = [1, 1]} : vector<32x40xf32> to vector<16x40xf32>
    %91 = arith.maximumf %89, %90 : vector<16x40xf32>
    %cst_29 = arith.constant dense<0.000000e+00> : vector<16xf32>
    %92 = vector.multi_reduction <add>, %91, %cst_29 [1] : vector<16x40xf32> to vector<16xf32>
    %93 = vector.shape_cast %92 : vector<16xf32> to vector<16x1xf32>
    %cst_30 = arith.constant 4.000000e+01 : f32
    %94 = vector.broadcast %cst_30 : f32 to vector<16x1xf32>
    %95 = arith.divf %93, %94 : vector<16x1xf32>
    %96 = vector.broadcast %95 : vector<16x1xf32> to vector<16x40xf32>
    %97 = arith.subf %91, %96 : vector<16x40xf32>
    %98 = arith.mulf %97, %97 : vector<16x40xf32>
    %cst_31 = arith.constant dense<0.000000e+00> : vector<16xf32>
    %99 = vector.multi_reduction <add>, %98, %cst_31 [1] : vector<16x40xf32> to vector<16xf32>
    %100 = vector.shape_cast %99 : vector<16xf32> to vector<16x1xf32>
    %cst_32 = arith.constant 4.000000e+01 : f32
    %101 = vector.broadcast %cst_32 : f32 to vector<16x1xf32>
    %102 = arith.divf %100, %101 : vector<16x1xf32>
    %cst_33 = arith.constant 9.99999974E-6 : f32
    %103 = vector.broadcast %cst_33 : f32 to vector<16x1xf32>
    %104 = arith.addf %102, %103 : vector<16x1xf32>
    %105 = math.rsqrt %104 : vector<16x1xf32>
    %106 = arith.mulf %5, %105 : vector<16x1xf32>
    %107 = vector.broadcast %106 : vector<16x1xf32> to vector<16x40xf32>
    %108 = arith.mulf %97, %107 : vector<16x40xf32>
    %109 = vector.broadcast %6 : vector<16x1xf32> to vector<16x40xf32>
    %110 = arith.addf %108, %109 : vector<16x40xf32>
    %c0_34 = arith.constant 0 : index
    %c0_35 = arith.constant 0 : index
    %111 = vector.load %arg4[%c0_34, %c0_35] : memref<16x40xf32, #tpu.memory_space<vmem>>, vector<16x40xf32>
    tpu.vector_store %arg4[%c0_34, %c0_35], %110 {strides = array<i32>} : memref<16x40xf32, #tpu.memory_space<vmem>>, vector<16x40xf32>,
    return
  }
}

module attributes {stable_mosaic.version = 11 : i64} {
  func.func @linear_kernel(%arg0: i32, %arg1: i32, %arg2: memref<160x4xbf16, #tpu.memory_space<vmem>>, %arg3: memref<160x128xbf16, #tpu.memory_space<vmem>>, %arg4: memref<1x128xf32, #tpu.memory_space<vmem>>, %arg5: memref<4x128xf32, #tpu.memory_space<vmem>>, %arg6: memref<4x128xf32, #tpu.memory_space<vmem>>) attributes {dimension_semantics = [#tpu.dimension_semantics<parallel>, #tpu.dimension_semantics<arbitrary>], iteration_bounds = array<i64: 1, 1>, scalar_prefetch = 0 : i64, scratch_operands = 1 : i64, tpu.core_type = #tpu.core_type<tc>, window_params = [{transform_indices = @transform_0, window_bounds = array<i64: 160, 4>}, {transform_indices = @transform_1, window_bounds = array<i64: 160, 128>}, {transform_indices = @transform_2, window_bounds = array<i64: 1, 128>}, {transform_indices = @transform_3, window_bounds = array<i64: 4, 128>}]} {
    %c0_i32 = arith.constant 0 : i32
    %0 = arith.cmpi eq, %arg1, %c0_i32 : i32
    %1 = arith.extui %0 : i1 to i32
    %c0_i32_0 = arith.constant 0 : i32
    %2 = arith.cmpi ne, %1, %c0_i32_0 : i32
    scf.if %2 {
      %cst_10 = arith.constant 0.000000e+00 : f32
      %12 = vector.broadcast %cst_10 : f32 to vector<4x128xf32>
      %c0_11 = arith.constant 0 : index
      %c0_12 = arith.constant 0 : index
      %13 = vector.load %arg6[%c0_11, %c0_12] : memref<4x128xf32, #tpu.memory_space<vmem>>, vector<4x128xf32>
      tpu.vector_store %arg6[%c0_11, %c0_12], %12 {strides = array<i32>} : memref<4x128xf32, #tpu.memory_space<vmem>>, vector<4x128xf32>,
    } else {
    }
    %c0 = arith.constant 0 : index
    %c0_1 = arith.constant 0 : index
    %3 = vector.load %arg6[%c0, %c0_1] : memref<4x128xf32, #tpu.memory_space<vmem>>, vector<4x128xf32>
    %c0_2 = arith.constant 0 : index
    %c0_3 = arith.constant 0 : index
    %4 = vector.load %arg2[%c0_2, %c0_3] : memref<160x4xbf16, #tpu.memory_space<vmem>>, vector<160x4xbf16>
    %c0_4 = arith.constant 0 : index
    %c0_5 = arith.constant 0 : index
    %5 = vector.load %arg3[%c0_4, %c0_5] : memref<160x128xbf16, #tpu.memory_space<vmem>>, vector<160x128xbf16>
    %cst = arith.constant dense<0.000000e+00> : vector<4x128xf32>
    %6 = tpu.matmul %4, %5, %cst {dimension_numbers = #tpu.dot_dimension_numbers<[0], [0], [1], [1], [0, 1, 1, 1], [], []>} : vector<160x4xbf16>, vector<160x128xbf16>, vector<4x128xf32> -> vector<4x128xf32>
    %7 = arith.addf %3, %6 : vector<4x128xf32>
    %c0_6 = arith.constant 0 : index
    %c0_7 = arith.constant 0 : index
    %8 = vector.load %arg6[%c0_6, %c0_7] : memref<4x128xf32, #tpu.memory_space<vmem>>, vector<4x128xf32>
    tpu.vector_store %arg6[%c0_6, %c0_7], %7 {strides = array<i32>} : memref<4x128xf32, #tpu.memory_space<vmem>>, vector<4x128xf32>,
    %c0_i32_8 = arith.constant 0 : i32
    %9 = arith.cmpi eq, %arg1, %c0_i32_8 : i32
    %10 = arith.extui %9 : i1 to i32
    %c0_i32_9 = arith.constant 0 : i32
    %11 = arith.cmpi ne, %10, %c0_i32_9 : i32
    scf.if %11 {
      %c0_10 = arith.constant 0 : index
      %c0_11 = arith.constant 0 : index
      %12 = vector.load %arg6[%c0_10, %c0_11] : memref<4x128xf32, #tpu.memory_space<vmem>>, vector<4x128xf32>
      %c0_12 = arith.constant 0 : index
      %c0_13 = arith.constant 0 : index
      %13 = vector.load %arg4[%c0_12, %c0_13] : memref<1x128xf32, #tpu.memory_space<vmem>>, vector<1x128xf32>
      %14 = vector.broadcast %13 : vector<1x128xf32> to vector<4x128xf32>
      %15 = arith.addf %12, %14 : vector<4x128xf32>
      %c0_14 = arith.constant 0 : index
      %c0_15 = arith.constant 0 : index
      %16 = vector.load %arg5[%c0_14, %c0_15] : memref<4x128xf32, #tpu.memory_space<vmem>>, vector<4x128xf32>
      tpu.vector_store %arg5[%c0_14, %c0_15], %15 {strides = array<i32>} : memref<4x128xf32, #tpu.memory_space<vmem>>, vector<4x128xf32>,
    } else {
    }
    return
  }
  func.func @transform_0(%arg0: i32, %arg1: i32) -> (i32, i32) {
    %c0_i32 = arith.constant 0 : i32
    %c0_i32_0 = arith.constant 0 : i32
    return %arg1, %c0_i32 : i32, i32
  }
  func.func @transform_1(%arg0: i32, %arg1: i32) -> (i32, i32) {
    %c0_i32 = arith.constant 0 : i32
    return %arg1, %arg0 : i32, i32
  }
  func.func @transform_2(%arg0: i32, %arg1: i32) -> (i32, i32) {
    %c0_i32 = arith.constant 0 : i32
    %c0_i32_0 = arith.constant 0 : i32
    return %c0_i32, %arg0 : i32, i32
  }
  func.func @transform_3(%arg0: i32, %arg1: i32) -> (i32, i32) {
    %c0_i32 = arith.constant 0 : i32
    %c0_i32_0 = arith.constant 0 : i32
    return %c0_i32, %arg0 : i32, i32
  }
}

</mosaic_0001>

<llo_original>
// kernel: aud_encoder_forward.3
$region0: #{aud_encoder_forward.3}
  #allocation0 [shape = 'u32[]', space=smem, size = 0x4, offset = 0x4, fixed_abs, tag = 'smem constant byte address 0x4 - core index']
  #allocation1 [shape = 'u32[144,128]{1,0:T(1,128)}', space=vmem, size = 0x12000, scoped, tag = 'internal scratch']
  #allocation2 [shape = 'f32[4,128]{1,0:T(4,128)}', space=vmem, size = 0x800, scoped, tag = 'scratch operand']
  %s0 = inlined_call_operand.vmem [shape: bf16[160,4], index: 0, kind: input, shape index: {}]
  %s1 = inlined_call_operand.vmem [shape: bf16[160,128], index: 1, kind: input, shape index: {}]
  %s2 = inlined_call_operand.vmem [shape: f32[1,128], index: 2, kind: input, shape index: {}]
  %s3 = inlined_call_operand.hbm [shape: f32[4,128], index: 3, kind: output, shape index: {}]
  %s4 = sld [smem:[#allocation0]]
  $region30: #{aud_encoder_forward.3} parent=0
    _
  %s6 = ssub.s32 1, %s4
  %s7 = scalar_select 0, %s6, %s4
  $region1: #{aud_encoder_forward.3} parent=0
    #allocation3 [shape = 'u8[2048]{0}', space=vmem, size = 0x800, scoped, tag = 'output window, operand 0, single buffered']
    #allocation4 [shape = 's32[1]{0}', space=sflag, size = 0x4, scoped, tag = 'scoped memory for aud_encoder_forward.3']
    %8 = vsyncpa [#allocation4], 0
    // Predicated region
    $region2: #{aud_encoder_forward.3} parent=1 // pred_check
      _
    $region3: #{aud_encoder_forward.3} parent=1 // pred_check_branch
      %10 = sbr.rel (0) target = $region5
    $region4: #{aud_encoder_forward.3} parent=1 // pred_region
      _
    $region5: #{aud_encoder_forward.3} parent=1 // pred_fallthru
      _
    // Predicated region
    $region6: #{aud_encoder_forward.3} parent=1 // pred_check
      _
    $region7: #{aud_encoder_forward.3} parent=1 // pred_check_branch
      %12 = sbr.rel (0) target = $region9
    $region8: #{aud_encoder_forward.3} parent=1 // pred_region
      _
    $region9: #{aud_encoder_forward.3} parent=1 // pred_fallthru
      _
    // Predicated region
    $region10: #{aud_encoder_forward.3} parent=1 // pred_check
      _
    $region11: #{aud_encoder_forward.3} parent=1 // pred_check_branch
      %14 = sbr.rel (0) target = $region13
    $region12: #{aud_encoder_forward.3} parent=1 // pred_region
      _
    $region13: #{aud_encoder_forward.3} parent=1 // pred_fallthru
      _
    %p16 = scmp.eq.s32.totalorder 0, 0
    // Predicated region
    $region14: #{aud_encoder_forward.3} parent=1 // pred_check
      %p17 = pneg %p16
    $region15: #{aud_encoder_forward.3} parent=1 // pred_check_branch
      %19 = sbr.rel (%p17) target = $region17
    $region16: #{aud_encoder_forward.3} parent=1 // pred_region
      %20 = vst [vmem:[#allocation2] sm:$0xf] 0.0
    $region17: #{aud_encoder_forward.3} parent=1 // pred_fallthru
      _
    %v21 = vld [vmem:[#allocation2] sm:$0xf]
    %v22 = vld [vmem:[%s0] sm:$0xf]
    %v23 = vld [vmem:[%s0 + $0x4] sm:$0xf]
    %v24 = vld [vmem:[%s0 + $0x8] sm:$0xf]
    %v25 = vld [vmem:[%s0 + $0xc] sm:$0xf]
    %v26 = vld [vmem:[%s0 + $0x10] sm:$0xf]
    %v27 = vld [vmem:[%s0 + $0x14] sm:$0xf]
    %v28 = vld [vmem:[%s0 + $0x18] sm:$0xf]
    %v29 = vld [vmem:[%s0 + $0x1c] sm:$0xf]
    %v30 = vld [vmem:[%s0 + $0x20] sm:$0xf]
    %v31 = vld [vmem:[%s0 + $0x24] sm:$0xf]
    %v32 = vld [vmem:[%s0 + $0x28] sm:$0xf]
    %v33 = vld [vmem:[%s0 + $0x2c] sm:$0xf]
    %v34 = vld [vmem:[%s0 + $0x30] sm:$0xf]
    %v35 = vld [vmem:[%s0 + $0x34] sm:$0xf]
    %v36 = vld [vmem:[%s0 + $0x38] sm:$0xf]
    %v37 = vld [vmem:[%s0 + $0x3c] sm:$0xf]
    %v38 = vld [vmem:[%s0 + $0x40] sm:$0xf]
    %v39 = vld [vmem:[%s0 + $0x44] sm:$0xf]
    %v40 = vld [vmem:[%s0 + $0x48] sm:$0xf]
    %v41 = vld [vmem:[%s0 + $0x4c] sm:$0xf]
    %v42 = vld [vmem:[%s1] sm:$0xf]
    %v43 = vld [vmem:[%s1 + $0x4] sm:$0xf]
    %v44 = vld [vmem:[%s1 + $0x8] sm:$0xf]
    %v45 = vld [vmem:[%s1 + $0xc] sm:$0xf]
    %v46 = vld [vmem:[%s1 + $0x10] sm:$0xf]
    %v47 = vld [vmem:[%s1 + $0x14] sm:$0xf]
    %v48 = vld [vmem:[%s1 + $0x18] sm:$0xf]
    %v49 = vld [vmem:[%s1 + $0x1c] sm:$0xf]
    %v50 = vld [vmem:[%s1 + $0x20] sm:$0xf]
    %v51 = vld [vmem:[%s1 + $0x24] sm:$0xf]
    %v52 = vld [vmem:[%s1 + $0x28] sm:$0xf]
    %v53 = vld [vmem:[%s1 + $0x2c] sm:$0xf]
    %v54 = vld [vmem:[%s1 + $0x30] sm:$0xf]
    %v55 = vld [vmem:[%s1 + $0x34] sm:$0xf]
    %v56 = vld [vmem:[%s1 + $0x38] sm:$0xf]
    %v57 = vld [vmem:[%s1 + $0x3c] sm:$0xf]
    %v58 = vld [vmem:[%s1 + $0x40] sm:$0xf]
    %v59 = vld [vmem:[%s1 + $0x44] sm:$0xf]
    %v60 = vld [vmem:[%s1 + $0x48] sm:$0xf]
    %v61 = vld [vmem:[%s1 + $0x4c] sm:$0xf]
    %v82 = vunpack.c.l.b16 %v22
    %v83 = vunpack.c.l.b16 %v23
    %v84 = vunpack.c.l.b16 %v24
    %v85 = vunpack.c.l.b16 %v25
    %v86 = vunpack.c.l.b16 %v26
    %v87 = vunpack.c.l.b16 %v27
    %v88 = vunpack.c.l.b16 %v28
    %v89 = vunpack.c.l.b16 %v29
    %v90 = vunpack.c.l.b16 %v30
    %v91 = vunpack.c.l.b16 %v31
    %v92 = vunpack.c.l.b16 %v32
    %v93 = vunpack.c.l.b16 %v33
    %v94 = vunpack.c.l.b16 %v34
    %v95 = vunpack.c.l.b16 %v35
    %v96 = vunpack.c.l.b16 %v36
    %v97 = vunpack.c.l.b16 %v37
    %v98 = vunpack.c.l.b16 %v38
    %v99 = vunpack.c.l.b16 %v39
    %v100 = vunpack.c.l.b16 %v40
    %v101 = vunpack.c.l.b16 %v41
    %v102 = vpack.c.b16 %v83, %v82
    %v103 = vpack.c.b16 %v85, %v84
    %v104 = vpack.c.b16 %v87, %v86
    %v105 = vpack.c.b16 %v89, %v88
    %v106 = vpack.c.b16 %v91, %v90
    %v107 = vpack.c.b16 %v93, %v92
    %v108 = vpack.c.b16 %v95, %v94
    %v109 = vpack.c.b16 %v97, %v96
    %v110 = vpack.c.b16 %v99, %v98
    %v111 = vpack.c.b16 %v101, %v100
    %122 = vxpose.xlu0.c.b16.start [1/8] %v102, 128
    %123 = vxpose.xlu0.c.b16.cont [2/8] %v103, 128
    %124 = vxpose.xlu0.c.b16.cont [3/8] %v104, 128
    %125 = vxpose.xlu0.c.b16.cont [4/8] %v105, 128
    %126 = vxpose.xlu0.c.b16.cont [5/8] %v106, 128
    %127 = vxpose.xlu0.c.b16.cont [6/8] %v107, 128
    %128 = vxpose.xlu0.c.b16.cont [7/8] %v108, 128
    %129 = vxpose.xlu0.c.b16.end [8/8] %v109, 128
    %v130 = vpop.trf.xlu0
    %v131 = vpop.trf.xlu0
    %v132 = vpop.trf.xlu0
    %v133 = vpop.trf.xlu0
    %v134 = vpop.trf.xlu0
    %v135 = vpop.trf.xlu0
    %v136 = vpop.trf.xlu0
    %v137 = vpop.trf.xlu0
    %138 = vxpose.xlu0.c.b16.start [1/8] %v110, 128
    %139 = vxpose.xlu0.c.b16.cont [2/8] %v111, 128
    %140 = vxpose.xlu0.c.b16.cont [3/8] 0, 128
    %141 = vxpose.xlu0.c.b16.cont [4/8] 0, 128
    %142 = vxpose.xlu0.c.b16.cont [5/8] 0, 128
    %143 = vxpose.xlu0.c.b16.cont [6/8] 0, 128
    %144 = vxpose.xlu0.c.b16.cont [7/8] 0, 128
    %145 = vxpose.xlu0.c.b16.end [8/8] 0, 128
    %v146 = vpop.trf.xlu0
    %v147 = vpop.trf.xlu0
    %v148 = vpop.trf.xlu0
    %v149 = vpop.trf.xlu0
    %v150 = vpop.trf.xlu0
    %v151 = vpop.trf.xlu0
    %v152 = vpop.trf.xlu0
    %v153 = vpop.trf.xlu0
    %v174 = vunpack.c.l.b16 %v42
    %v175 = vunpack.c.l.b16 %v43
    %v176 = vunpack.c.l.b16 %v44
    %v177 = vunpack.c.l.b16 %v45
    %v178 = vunpack.c.l.b16 %v46
    %v179 = vunpack.c.l.b16 %v47
    %v180 = vunpack.c.l.b16 %v48
    %v181 = vunpack.c.l.b16 %v49
    %v182 = vunpack.c.l.b16 %v50
    %v183 = vunpack.c.l.b16 %v51
    %v184 = vunpack.c.l.b16 %v52
    %v185 = vunpack.c.l.b16 %v53
    %v186 = vunpack.c.l.b16 %v54
    %v187 = vunpack.c.l.b16 %v55
    %v188 = vunpack.c.l.b16 %v56
    %v189 = vunpack.c.l.b16 %v57
    %v190 = vunpack.c.l.b16 %v58
    %v191 = vunpack.c.l.b16 %v59
    %v192 = vunpack.c.l.b16 %v60
    %v193 = vunpack.c.l.b16 %v61
    %v194 = vpack.c.b16 %v175, %v174
    %v195 = vpack.c.b16 %v177, %v176
    %v196 = vpack.c.b16 %v179, %v178
    %v197 = vpack.c.b16 %v181, %v180
    %v198 = vpack.c.b16 %v183, %v182
    %v199 = vpack.c.b16 %v185, %v184
    %v200 = vpack.c.b16 %v187, %v186
    %v201 = vpack.c.b16 %v189, %v188
    %v202 = vpack.c.b16 %v191, %v190
    %v203 = vpack.c.b16 %v193, %v192
    %vm214 = vcmask 261120
    %v216 = vsel %vm214, %v146, 0
    %218 = vmatprep.subr.bf16.mxu0 0
    %219 = vmatpush1.bf16.msra.mxu0 %v194
    %220 = vmatprep.subr.bf16.mxu0 0
    %221 = vmatpush1.bf16.msra.mxu0 %v195
    %222 = vmatprep.subr.bf16.mxu0 0
    %223 = vmatpush1.bf16.msra.mxu0 %v196
    %224 = vmatprep.subr.bf16.mxu0 0
    %225 = vmatpush1.bf16.msra.mxu0 %v197
    %226 = vmatprep.subr.bf16.mxu0 0
    %227 = vmatpush1.bf16.msra.mxu0 %v198
    %228 = vmatprep.subr.bf16.mxu0 0
    %229 = vmatpush1.bf16.msra.mxu0 %v199
    %230 = vmatprep.subr.bf16.mxu0 0
    %231 = vmatpush1.bf16.msra.mxu0 %v200
    %232 = vmatprep.subr.bf16.mxu0 0
    %233 = vmatpush1.bf16.msra.mxu0 %v201
    %234 = vmatprep.subr.bf16.mxu0 0
    %235 = vmatpush1.bf16.msra.mxu0 %v202
    %236 = vmatprep.subr.bf16.mxu0 0
    %237 = vmatpush1.bf16.msra.mxu0 %v203
    %238 = vmatprep.subr.bf16.mxu0 0
    %239 = vmatpush1.bf16.msra.mxu0 0
    %240 = vmatprep.subr.bf16.mxu0 0
    %241 = vmatpush1.bf16.msra.mxu0 0
    %242 = vmatprep.subr.bf16.mxu0 0
    %243 = vmatpush1.bf16.msra.mxu0 0
    %244 = vmatprep.subr.bf16.mxu0 0
    %245 = vmatpush1.bf16.msra.mxu0 0
    %246 = vmatprep.subr.bf16.mxu0 0
    %247 = vmatpush1.bf16.msra.mxu0 0
    %248 = vmatprep.subr.bf16.mxu0 0
    %249 = vmatpush1.bf16.msra.mxu0 0
    %250 = vmatprep.mubr.bf16.mxu0 %v216
    %251 = vmatmul.mubr.bf16.gmra.mrb[0].mxu0 %v130
    %v252 = vpop.f32.mrb[0].mxu0
    %v253 = vadd.f32 0.0, %v252
    %v254 = vpop.f32.mrb[0].mxu0
    %v255 = vpop.f32.mrb[0].mxu0
    %v256 = vpop.f32.mrb[0].mxu0
    %257 = vdwg.mxu0
    %v258 = vadd.f32 %v21, %v253
    %259 = vst [vmem:[#allocation2] sm:$0xf] %v258
    // Predicated region
    $region18: #{aud_encoder_forward.3} parent=1 // pred_check
      %p260 = pneg %p16
    $region19: #{aud_encoder_forward.3} parent=1 // pred_check_branch
      %262 = sbr.rel (%p260) target = $region21
    $region20: #{aud_encoder_forward.3} parent=1 // pred_region
      %v263 = vld [vmem:[#allocation2] sm:$0xf]
      %v264 = vld [vmem:[%s2] sm:$0x1]
      %v266 = vlaneseq
      %v267 = vshrl.u32 %v266, 7
      %v268 = vsub.s32 0, %v267
      %v269 = vrot.slane %v264, %v268
      %v271 = vadd.f32 %v263, %v269
      %272 = vst [vmem:[#allocation3] sm:$0xf] %v271
    $region21: #{aud_encoder_forward.3} parent=1 // pred_fallthru
      _
    // Predicated region
    $region22: #{aud_encoder_forward.3} parent=1 // pred_check
      _
    $region23: #{aud_encoder_forward.3} parent=1 // pred_check_branch
      %274 = sbr.rel (0) target = $region25
    $region24: #{aud_encoder_forward.3} parent=1 // pred_region
      %s276 = ssub.s32 64, 64
      %277 = vsyncadd [#allocation4], %s276
      %s279 = sshll.u32 [#allocation3], 4
      %s280 = int_to_ptr.vmem [resolvable:$true] %s279
      %282 = dma.vmem_to_hbm [thread:$0]  %s280, 64, %s3, [#allocation4]
    $region25: #{aud_encoder_forward.3} parent=1 // pred_fallthru
      _
    // Predicated region
    $region26: #{aud_encoder_forward.3} parent=1 // pred_check
      _
    $region27: #{aud_encoder_forward.3} parent=1 // pred_check_branch
      %284 = sbr.rel (0) target = $region29
    $region28: #{aud_encoder_forward.3} parent=1 // pred_region
      %285 = dma.done [#allocation4], 64
    $region29: #{aud_encoder_forward.3} parent=1 // pred_fallthru
      _
    %286 = vsyncpa [#allocation4], 1

// kernel: aud_encoder_forward.2
$region0: #{aud_encoder_forward.2}
  #allocation0 [shape = 'u32[]', space=smem, size = 0x4, offset = 0x4, fixed_abs, tag = 'smem constant byte address 0x4 - core index']
  #allocation1 [shape = 'u32[144,128]{1,0:T(1,128)}', space=vmem, size = 0x12000, scoped, tag = 'internal scratch']
  %s0 = inlined_call_operand.vmem [shape: f32[40,160], index: 0, kind: input, shape index: {}]
  %s1 = inlined_call_operand.vmem [shape: f32[80,160], index: 1, kind: input, shape index: {}]
  %s2 = inlined_call_operand.vmem [shape: f32[32,40], index: 2, kind: input, shape index: {}]
  %s3 = inlined_call_operand.vmem [shape: f32[160,1], index: 3, kind: input, shape index: {}]
  %s4 = inlined_call_operand.vmem [shape: f32[16,40], index: 4, kind: output, shape index: {}]
  %s5 = sld [smem:[#allocation0]]
  $region26: #{aud_encoder_forward.2} parent=0
    _
  %s7 = ssub.s32 1, %s5
  %s8 = scalar_select 0, %s7, %s5
  // Predicated region
  $region2: #{aud_encoder_forward.2} parent=0 // pred_check
    _
  $region3: #{aud_encoder_forward.2} parent=0 // pred_check_branch
    %10 = sbr.rel (0) target = $region5
  $region4: #{aud_encoder_forward.2} parent=0 // pred_region
    _
  $region5: #{aud_encoder_forward.2} parent=0 // pred_fallthru
    _
  // Predicated region
  $region6: #{aud_encoder_forward.2} parent=0 // pred_check
    _
  $region7: #{aud_encoder_forward.2} parent=0 // pred_check_branch
    %12 = sbr.rel (0) target = $region9
  $region8: #{aud_encoder_forward.2} parent=0 // pred_region
    _
  $region9: #{aud_encoder_forward.2} parent=0 // pred_fallthru
    _
  // Predicated region
  $region10: #{aud_encoder_forward.2} parent=0 // pred_check
    _
  $region11: #{aud_encoder_forward.2} parent=0 // pred_check_branch
    %14 = sbr.rel (0) target = $region13
  $region12: #{aud_encoder_forward.2} parent=0 // pred_region
    _
  $region13: #{aud_encoder_forward.2} parent=0 // pred_fallthru
    _
  // Predicated region
  $region14: #{aud_encoder_forward.2} parent=0 // pred_check
    _
  $region15: #{aud_encoder_forward.2} parent=0 // pred_check_branch
    %16 = sbr.rel (0) target = $region17
  $region16: #{aud_encoder_forward.2} parent=0 // pred_region
    _
  $region17: #{aud_encoder_forward.2} parent=0 // pred_fallthru
    _
  %v17 = vld [vmem:[%s3] sm:$0xff]
  %v18 = vld [vmem:[%s3 + $0x8] sm:$0xff]
  %v19 = vld [vmem:[%s3 + $0x10] sm:$0xff]
  %v20 = vld [vmem:[%s3 + $0x18] sm:$0xff]
  %v21 = vld [vmem:[%s3 + $0x20] sm:$0xff]
  %v22 = vld [vmem:[%s3 + $0x28] sm:$0xff]
  %v23 = vld [vmem:[%s3 + $0x30] sm:$0xff]
  %v24 = vld [vmem:[%s3 + $0x38] sm:$0xff]
  %v25 = vld [vmem:[%s3 + $0x40] sm:$0xff]
  %v26 = vld [vmem:[%s3 + $0x48] sm:$0xff]
  %v27 = vld [vmem:[%s3 + $0x50] sm:$0xff]
  %v28 = vld [vmem:[%s3 + $0x58] sm:$0xff]
  %v29 = vld [vmem:[%s3 + $0x60] sm:$0xff]
  %v30 = vld [vmem:[%s3 + $0x68] sm:$0xff]
  %v31 = vld [vmem:[%s3 + $0x70] sm:$0xff]
  %v32 = vld [vmem:[%s3 + $0x78] sm:$0xff]
  %v33 = vld [vmem:[%s3 + $0x80] sm:$0xff]
  %v34 = vld [vmem:[%s3 + $0x88] sm:$0xff]
  %v35 = vld [vmem:[%s3 + $0x90] sm:$0xff]
  %v36 = vld [vmem:[%s3 + $0x98] sm:$0xff]
  %v37 = vld [vmem:[%s1] sm:$0xff]
  %v38 = vld [vmem:[%s1 + $0x8] sm:$0xff]
  %v39 = vld [vmem:[%s1 + $0x10] sm:$0xff]
  %v40 = vld [vmem:[%s1 + $0x18] sm:$0xff]
  %v41 = vld [vmem:[%s1 + $0x20] sm:$0xff]
  %v42 = vld [vmem:[%s1 + $0x28] sm:$0xff]
  %v43 = vld [vmem:[%s1 + $0x30] sm:$0xff]
  %v44 = vld [vmem:[%s1 + $0x38] sm:$0xff]
  %v45 = vld [vmem:[%s1 + $0x40] sm:$0xff]
  %v46 = vld [vmem:[%s1 + $0x48] sm:$0xff]
  %v47 = vld [vmem:[%s1 + $0x50] sm:$0xff]
  %v48 = vld [vmem:[%s1 + $0x58] sm:$0xff]
  %v49 = vld [vmem:[%s1 + $0x60] sm:$0xff]
  %v50 = vld [vmem:[%s1 + $0x68] sm:$0xff]
  %v51 = vld [vmem:[%s1 + $0x70] sm:$0xff]
  %v52 = vld [vmem:[%s1 + $0x78] sm:$0xff]
  %v53 = vld [vmem:[%s1 + $0x80] sm:$0xff]
  %v54 = vld [vmem:[%s1 + $0x88] sm:$0xff]
  %v55 = vld [vmem:[%s1 + $0x90] sm:$0xff]
  %v56 = vld [vmem:[%s1 + $0x98] sm:$0xff]
  %v57 = vld [vmem:[%s0] sm:$0xff]
  %v58 = vld [vmem:[%s0 + $0x8] sm:$0xff]
  %v59 = vld [vmem:[%s0 + $0x10] sm:$0xff]
  %v60 = vld [vmem:[%s0 + $0x18] sm:$0xff]
  %v61 = vld [vmem:[%s0 + $0x20] sm:$0xff]
  %v62 = vld [vmem:[%s0 + $0x28] sm:$0xff]
  %v63 = vld [vmem:[%s0 + $0x30] sm:$0xff]
  %v64 = vld [vmem:[%s0 + $0x38] sm:$0xff]
  %v65 = vld [vmem:[%s0 + $0x40] sm:$0xff]
  %v66 = vld [vmem:[%s0 + $0x48] sm:$0xff]
  %68 = vset.pattern.permute.xlu0 0
  %69 = vperm.xlu0 %68, %v17
  %v70 = vpop.permute.xlu0 %69
  %73 = vset.pattern.permute.xlu0 0
  %74 = vperm.xlu0 %73, %v18
  %v75 = vpop.permute.xlu0 %74
  %78 = vset.pattern.permute.xlu0 0
  %79 = vperm.xlu0 %78, %v19
  %v80 = vpop.permute.xlu0 %79
  %83 = vset.pattern.permute.xlu0 0
  %84 = vperm.xlu0 %83, %v20
  %v85 = vpop.permute.xlu0 %84
  %88 = vset.pattern.permute.xlu0 0
  %89 = vperm.xlu0 %88, %v21
  %v90 = vpop.permute.xlu0 %89
  %93 = vset.pattern.permute.xlu0 0
  %94 = vperm.xlu0 %93, %v22
  %v95 = vpop.permute.xlu0 %94
  %98 = vset.pattern.permute.xlu0 0
  %99 = vperm.xlu0 %98, %v23
  %v100 = vpop.permute.xlu0 %99
  %103 = vset.pattern.permute.xlu0 0
  %104 = vperm.xlu0 %103, %v24
  %v105 = vpop.permute.xlu0 %104
  %108 = vset.pattern.permute.xlu0 0
  %109 = vperm.xlu0 %108, %v25
  %v110 = vpop.permute.xlu0 %109
  %113 = vset.pattern.permute.xlu0 0
  %114 = vperm.xlu0 %113, %v26
  %v115 = vpop.permute.xlu0 %114
  %vm117 = vcmask 261120
  %v119 = vsel %vm117, %v38, 0
  %v122 = vsel %vm117, %v40, 0
  %v125 = vsel %vm117, %v42, 0
  %v128 = vsel %vm117, %v44, 0
  %v131 = vsel %vm117, %v46, 0
  %v134 = vsel %vm117, %v48, 0
  %v137 = vsel %vm117, %v50, 0
  %v140 = vsel %vm117, %v52, 0
  %v143 = vsel %vm117, %v54, 0
  %v146 = vsel %vm117, %v56, 0
  %v149 = vsel %vm117, %v58, 0
  %v152 = vsel %vm117, %v60, 0
  %v155 = vsel %vm117, %v62, 0
  %v158 = vsel %vm117, %v64, 0
  %v161 = vsel %vm117, %v66, 0
  %v163 = vand.u32 %v149, 4294901760
  %164 = vmatprep.subr.mxu0 %v163
  %v165 = vand.u32 %v57, 4294901760
  %166 = vmatpush1.xpose.msra.mxu0 %v165
  %v167 = vand.u32 %v152, 4294901760
  %168 = vmatprep.subr.mxu0 %v167
  %v169 = vand.u32 %v59, 4294901760
  %170 = vmatpush1.xpose.msra.mxu0 %v169
  %v171 = vand.u32 %v155, 4294901760
  %172 = vmatprep.subr.mxu0 %v171
  %v173 = vand.u32 %v61, 4294901760
  %174 = vmatpush1.xpose.msra.mxu0 %v173
  %v175 = vand.u32 %v158, 4294901760
  %176 = vmatprep.subr.mxu0 %v175
  %v177 = vand.u32 %v63, 4294901760
  %178 = vmatpush1.xpose.msra.mxu0 %v177
  %v179 = vand.u32 %v161, 4294901760
  %180 = vmatprep.subr.mxu0 %v179
  %v181 = vand.u32 %v65, 4294901760
  %182 = vmatpush1.xpose.msra.mxu0 %v181
  %183 = vmatprep.subr.mxu0 0.0
  %184 = vmatpush1.xpose.msra.mxu0 0.0
  %185 = vmatprep.subr.mxu0 0.0
  %186 = vmatpush1.xpose.msra.mxu0 0.0
  %187 = vmatprep.subr.mxu0 0.0
  %188 = vmatpush1.xpose.msra.mxu0 0.0
  %189 = vmatprep.subr.mxu0 0.0
  %190 = vmatpush1.xpose.msra.mxu0 0.0
  %191 = vmatprep.subr.mxu0 0.0
  %192 = vmatpush1.xpose.msra.mxu0 0.0
  %193 = vmatprep.subr.mxu0 0.0
  %194 = vmatpush1.xpose.msra.mxu0 0.0
  %195 = vmatprep.subr.mxu0 0.0
  %196 = vmatpush1.xpose.msra.mxu0 0.0
  %197 = vmatprep.subr.mxu0 0.0
  %198 = vmatpush1.xpose.msra.mxu0 0.0
  %199 = vmatprep.subr.mxu0 0.0
  %200 = vmatpush1.xpose.msra.mxu0 0.0
  %201 = vmatprep.subr.mxu0 0.0
  %202 = vmatpush1.xpose.msra.mxu0 0.0
  %203 = vmatprep.subr.mxu0 0.0
  %204 = vmatpush1.xpose.msra.mxu0 0.0
  %205 = vmatprep.subr.mxu0 0.0
  %206 = vmatpush1.xpose.msra.mxu0 0.0
  %207 = vmatprep.subr.mxu0 0.0
  %208 = vmatpush1.xpose.msra.mxu0 0.0
  %209 = vmatprep.subr.mxu0 0.0
  %210 = vmatpush1.xpose.msra.mxu0 0.0
  %211 = vmatprep.subr.mxu0 0.0
  %212 = vmatpush1.xpose.msra.mxu0 0.0
  %213 = vmatprep.subr.mxu0 0.0
  %214 = vmatpush1.xpose.msra.mxu0 0.0
  %215 = vmatprep.subr.mxu0 0.0
  %216 = vmatpush1.xpose.msra.mxu0 0.0
  %217 = vmatprep.subr.mxu0 0.0
  %218 = vmatpush1.xpose.msra.mxu0 0.0
  %219 = vmatprep.subr.mxu0 0.0
  %220 = vmatpush1.xpose.msra.mxu0 0.0
  %221 = vmatprep.subr.mxu0 0.0
  %222 = vmatpush1.xpose.msra.mxu0 0.0
  %223 = vmatprep.subr.mxu0 0.0
  %224 = vmatpush1.xpose.msra.mxu0 0.0
  %225 = vmatprep.subr.mxu0 0.0
  %226 = vmatpush1.xpose.msra.mxu0 0.0
  %227 = vmatprep.subr.mxu0 0.0
  %228 = vmatpush1.xpose.msra.mxu0 0.0
  %229 = vmatprep.subr.mxu0 0.0
  %230 = vmatpush1.xpose.msra.mxu0 0.0
  %231 = vmatprep.subr.mxu0 0.0
  %232 = vmatpush1.xpose.msra.mxu0 0.0
  %233 = vmatprep.subr.mxu0 0.0
  %234 = vmatpush1.xpose.msra.mxu0 0.0
  %235 = vmatprep.subr.mxu0 0.0
  %236 = vmatpush1.xpose.msra.mxu0 0.0
  %v237 = vand.u32 %v119, 4294901760
  %v238 = vsub.f32 %v119, %v237
  %v239 = vand.u32 %v238, 4294901760
  %v240 = vsub.f32 %v238, %v239
  %v241 = vand.u32 %v240, 4294901760
  %242 = vmatprep.mubr.f32.mxu0 %v241
  %v243 = vand.u32 %v37, 4294901760
  %v244 = vsub.f32 %v37, %v243
  %v245 = vand.u32 %v244, 4294901760
  %v246 = vsub.f32 %v244, %v245
  %v247 = vand.u32 %v246, 4294901760
  %248 = vmatmul.mubr.f32.gmra.mrb[0].mxu0 %v247
  %v249 = vpop.f32.mrb[0].mxu0
  %v250 = vadd.f32 %v70, %v249
  %v251 = vpop.f32.mrb[0].mxu0
  %v252 = vand.u32 %v122, 4294901760
  %v253 = vsub.f32 %v122, %v252
  %v254 = vand.u32 %v253, 4294901760
  %v255 = vsub.f32 %v253, %v254
  %v256 = vand.u32 %v255, 4294901760
  %257 = vmatprep.mubr.f32.mxu0 %v256
  %v258 = vand.u32 %v39, 4294901760
  %v259 = vsub.f32 %v39, %v258
  %v260 = vand.u32 %v259, 4294901760
  %v261 = vsub.f32 %v259, %v260
  %v262 = vand.u32 %v261, 4294901760
  %263 = vmatmul.mubr.f32.gmra.mrb[0].mxu0 %v262
  %v264 = vpop.f32.mrb[0].mxu0
  %v265 = vadd.f32 %v75, %v264
  %v266 = vpop.f32.mrb[0].mxu0
  %v267 = vand.u32 %v125, 4294901760
  %v268 = vsub.f32 %v125, %v267
  %v269 = vand.u32 %v268, 4294901760
  %v270 = vsub.f32 %v268, %v269
  %v271 = vand.u32 %v270, 4294901760
  %272 = vmatprep.mubr.f32.mxu0 %v271
  %v273 = vand.u32 %v41, 4294901760
  %v274 = vsub.f32 %v41, %v273
  %v275 = vand.u32 %v274, 4294901760
  %v276 = vsub.f32 %v274, %v275
  %v277 = vand.u32 %v276, 4294901760
  %278 = vmatmul.mubr.f32.gmra.mrb[0].mxu0 %v277
  %v279 = vpop.f32.mrb[0].mxu0
  %v280 = vadd.f32 %v80, %v279
  %v281 = vpop.f32.mrb[0].mxu0
  %v282 = vand.u32 %v128, 4294901760
  %v283 = vsub.f32 %v128, %v282
  %v284 = vand.u32 %v283, 4294901760
  %v285 = vsub.f32 %v283, %v284
  %v286 = vand.u32 %v285, 4294901760
  %287 = vmatprep.mubr.f32.mxu0 %v286
  %v288 = vand.u32 %v43, 4294901760
  %v289 = vsub.f32 %v43, %v288
  %v290 = vand.u32 %v289, 4294901760
  %v291 = vsub.f32 %v289, %v290
  %v292 = vand.u32 %v291, 4294901760
  %293 = vmatmul.mubr.f32.gmra.mrb[0].mxu0 %v292
  %v294 = vpop.f32.mrb[0].mxu0
  %v295 = vadd.f32 %v85, %v294
  %v296 = vpop.f32.mrb[0].mxu0
  %v297 = vand.u32 %v131, 4294901760
  %v298 = vsub.f32 %v131, %v297
  %v299 = vand.u32 %v298, 4294901760
  %v300 = vsub.f32 %v298, %v299
  %v301 = vand.u32 %v300, 4294901760
  %302 = vmatprep.mubr.f32.mxu0 %v301
  %v303 = vand.u32 %v45, 4294901760
  %v304 = vsub.f32 %v45, %v303
  %v305 = vand.u32 %v304, 4294901760
  %v306 = vsub.f32 %v304, %v305
  %v307 = vand.u32 %v306, 4294901760
  %308 = vmatmul.mubr.f32.gmra.mrb[0].mxu0 %v307
  %v309 = vpop.f32.mrb[0].mxu0
  %v310 = vadd.f32 %v90, %v309
  %v311 = vpop.f32.mrb[0].mxu0
  %v312 = vand.u32 %v134, 4294901760
  %v313 = vsub.f32 %v134, %v312
  %v314 = vand.u32 %v313, 4294901760
  %v315 = vsub.f32 %v313, %v314
  %v316 = vand.u32 %v315, 4294901760
  %317 = vmatprep.mubr.f32.mxu0 %v316
  %v318 = vand.u32 %v47, 4294901760
  %v319 = vsub.f32 %v47, %v318
  %v320 = vand.u32 %v319, 4294901760
  %v321 = vsub.f32 %v319, %v320
  %v322 = vand.u32 %v321, 4294901760
  %323 = vmatmul.mubr.f32.gmra.mrb[0].mxu0 %v322
  %v324 = vpop.f32.mrb[0].mxu0
  %v325 = vadd.f32 %v95, %v324
  %v326 = vpop.f32.mrb[0].mxu0
  %v327 = vand.u32 %v137, 4294901760
  %v328 = vsub.f32 %v137, %v327
  %v329 = vand.u32 %v328, 4294901760
  %v330 = vsub.f32 %v328, %v329
  %v331 = vand.u32 %v330, 4294901760
  %332 = vmatprep.mubr.f32.mxu0 %v331
  %v333 = vand.u32 %v49, 4294901760
  %v334 = vsub.f32 %v49, %v333
  %v335 = vand.u32 %v334, 4294901760
  %v336 = vsub.f32 %v334, %v335
  %v337 = vand.u32 %v336, 4294901760
  %338 = vmatmul.mubr.f32.gmra.mrb[0].mxu0 %v337
  %v339 = vpop.f32.mrb[0].mxu0
  %v340 = vadd.f32 %v100, %v339
  %v341 = vpop.f32.mrb[0].mxu0
  %v342 = vand.u32 %v140, 4294901760
  %v343 = vsub.f32 %v140, %v342
  %v344 = vand.u32 %v343, 4294901760
  %v345 = vsub.f32 %v343, %v344
  %v346 = vand.u32 %v345, 4294901760
  %347 = vmatprep.mubr.f32.mxu0 %v346
  %v348 = vand.u32 %v51, 4294901760
  %v349 = vsub.f32 %v51, %v348
  %v350 = vand.u32 %v349, 4294901760
  %v351 = vsub.f32 %v349, %v350
  %v352 = vand.u32 %v351, 4294901760
  %353 = vmatmul.mubr.f32.gmra.mrb[0].mxu0 %v352
  %v354 = vpop.f32.mrb[0].mxu0
  %v355 = vadd.f32 %v105, %v354
  %v356 = vpop.f32.mrb[0].mxu0
  %v357 = vand.u32 %v143, 4294901760
  %v358 = vsub.f32 %v143, %v357
  %v359 = vand.u32 %v358, 4294901760
  %v360 = vsub.f32 %v358, %v359
  %v361 = vand.u32 %v360, 4294901760
  %362 = vmatprep.mubr.f32.mxu0 %v361
  %v363 = vand.u32 %v53, 4294901760
  %v364 = vsub.f32 %v53, %v363
  %v365 = vand.u32 %v364, 4294901760
  %v366 = vsub.f32 %v364, %v365
  %v367 = vand.u32 %v366, 4294901760
  %368 = vmatmul.mubr.f32.gmra.mrb[0].mxu0 %v367
  %v369 = vpop.f32.mrb[0].mxu0
  %v370 = vadd.f32 %v110, %v369
  %v371 = vpop.f32.mrb[0].mxu0
  %v372 = vand.u32 %v146, 4294901760
  %v373 = vsub.f32 %v146, %v372
  %v374 = vand.u32 %v373, 4294901760
  %v375 = vsub.f32 %v373, %v374
  %v376 = vand.u32 %v375, 4294901760
  %377 = vmatprep.mubr.f32.mxu0 %v376
  %v378 = vand.u32 %v55, 4294901760
  %v379 = vsub.f32 %v55, %v378
  %v380 = vand.u32 %v379, 4294901760
  %v381 = vsub.f32 %v379, %v380
  %v382 = vand.u32 %v381, 4294901760
  %383 = vmatmul.mubr.f32.gmra.mrb[0].mxu0 %v382
  %v384 = vpop.f32.mrb[0].mxu0
  %v385 = vadd.f32 %v115, %v384
  %v386 = vpop.f32.mrb[0].mxu0
  %387 = vdwg.mxu0
  %v388 = vand.u32 %v149, 4294901760
  %v389 = vsub.f32 %v149, %v388
  %v390 = vand.u32 %v389, 4294901760
  %v391 = vsub.f32 %v389, %v390
  %v392 = vand.u32 %v391, 4294901760
  %393 = vmatprep.subr.mxu0 %v392
  %v394 = vand.u32 %v57, 4294901760
  %v395 = vsub.f32 %v57, %v394
  %v396 = vand.u32 %v395, 4294901760
  %v397 = vsub.f32 %v395, %v396
  %v398 = vand.u32 %v397, 4294901760
  %399 = vmatpush1.xpose.msra.mxu0 %v398
  %v400 = vand.u32 %v152, 4294901760
  %v401 = vsub.f32 %v152, %v400
  %v402 = vand.u32 %v401, 4294901760
  %v403 = vsub.f32 %v401, %v402
  %v404 = vand.u32 %v403, 4294901760
  %405 = vmatprep.subr.mxu0 %v404
  %v406 = vand.u32 %v59, 4294901760
  %v407 = vsub.f32 %v59, %v406
  %v408 = vand.u32 %v407, 4294901760
  %v409 = vsub.f32 %v407, %v408
  %v410 = vand.u32 %v409, 4294901760
  %411 = vmatpush1.xpose.msra.mxu0 %v410
  %v412 = vand.u32 %v155, 4294901760
  %v413 = vsub.f32 %v155, %v412
  %v414 = vand.u32 %v413, 4294901760
  %v415 = vsub.f32 %v413, %v414
  %v416 = vand.u32 %v415, 4294901760
  %417 = vmatprep.subr.mxu0 %v416
  %v418 = vand.u32 %v61, 4294901760
  %v419 = vsub.f32 %v61, %v418
  %v420 = vand.u32 %v419, 4294901760
  %v421 = vsub.f32 %v419, %v420
  %v422 = vand.u32 %v421, 4294901760
  %423 = vmatpush1.xpose.msra.mxu0 %v422
  %v424 = vand.u32 %v158, 4294901760
  %v425 = vsub.f32 %v158, %v424
  %v426 = vand.u32 %v425, 4294901760
  %v427 = vsub.f32 %v425, %v426
  %v428 = vand.u32 %v427, 4294901760
  %429 = vmatprep.subr.mxu0 %v428
  %v430 = vand.u32 %v63, 4294901760
  %v431 = vsub.f32 %v63, %v430
  %v432 = vand.u32 %v431, 4294901760
  %v433 = vsub.f32 %v431, %v432
  %v434 = vand.u32 %v433, 4294901760
  %435 = vmatpush1.xpose.msra.mxu0 %v434
  %v436 = vand.u32 %v161, 4294901760
  %v437 = vsub.f32 %v161, %v436
  %v438 = vand.u32 %v437, 4294901760
  %v439 = vsub.f32 %v437, %v438
  %v440 = vand.u32 %v439, 4294901760
  %441 = vmatprep.subr.mxu0 %v440
  %v442 = vand.u32 %v65, 4294901760
  %v443 = vsub.f32 %v65, %v442
  %v444 = vand.u32 %v443, 4294901760
  %v445 = vsub.f32 %v443, %v444
  %v446 = vand.u32 %v445, 4294901760
  %447 = vmatpush1.xpose.msra.mxu0 %v446
  %448 = vmatprep.subr.mxu0 0.0
  %449 = vmatpush1.xpose.msra.mxu0 0.0
  %450 = vmatprep.subr.mxu0 0.0
  %451 = vmatpush1.xpose.msra.mxu0 0.0
  %452 = vmatprep.subr.mxu0 0.0
  %453 = vmatpush1.xpose.msra.mxu0 0.0
  %454 = vmatprep.subr.mxu0 0.0
  %455 = vmatpush1.xpose.msra.mxu0 0.0
  %456 = vmatprep.subr.mxu0 0.0
  %457 = vmatpush1.xpose.msra.mxu0 0.0
  %458 = vmatprep.subr.mxu0 0.0
  %459 = vmatpush1.xpose.msra.mxu0 0.0
  %460 = vmatprep.subr.mxu0 0.0
  %461 = vmatpush1.xpose.msra.mxu0 0.0
  %462 = vmatprep.subr.mxu0 0.0
  %463 = vmatpush1.xpose.msra.mxu0 0.0
  %464 = vmatprep.subr.mxu0 0.0
  %465 = vmatpush1.xpose.msra.mxu0 0.0
  %466 = vmatprep.subr.mxu0 0.0
  %467 = vmatpush1.xpose.msra.mxu0 0.0
  %468 = vmatprep.subr.mxu0 0.0
  %469 = vmatpush1.xpose.msra.mxu0 0.0
  %470 = vmatprep.subr.mxu0 0.0
  %471 = vmatpush1.xpose.msra.mxu0 0.0
  %472 = vmatprep.subr.mxu0 0.0
  %473 = vmatpush1.xpose.msra.mxu0 0.0
  %474 = vmatprep.subr.mxu0 0.0
  %475 = vmatpush1.xpose.msra.mxu0 0.0
  %476 = vmatprep.subr.mxu0 0.0
  %477 = vmatpush1.xpose.msra.mxu0 0.0
  %478 = vmatprep.subr.mxu0 0.0
  %479 = vmatpush1.xpose.msra.mxu0 0.0
  %480 = vmatprep.subr.mxu0 0.0
  %481 = vmatpush1.xpose.msra.mxu0 0.0
  %482 = vmatprep.subr.mxu0 0.0
  %483 = vmatpush1.xpose.msra.mxu0 0.0
  %484 = vmatprep.subr.mxu0 0.0
  %485 = vmatpush1.xpose.msra.mxu0 0.0
  %486 = vmatprep.subr.mxu0 0.0
  %487 = vmatpush1.xpose.msra.mxu0 0.0
  %488 = vmatprep.subr.mxu0 0.0
  %489 = vmatpush1.xpose.msra.mxu0 0.0
  %490 = vmatprep.subr.mxu0 0.0
  %491 = vmatpush1.xpose.msra.mxu0 0.0
  %492 = vmatprep.subr.mxu0 0.0
  %493 = vmatpush1.xpose.msra.mxu0 0.0
  %494 = vmatprep.subr.mxu0 0.0
  %495 = vmatpush1.xpose.msra.mxu0 0.0
  %496 = vmatprep.subr.mxu0 0.0
  %497 = vmatpush1.xpose.msra.mxu0 0.0
  %498 = vmatprep.subr.mxu0 0.0
  %499 = vmatpush1.xpose.msra.mxu0 0.0
  %500 = vmatprep.subr.mxu0 0.0
  %501 = vmatpush1.xpose.msra.mxu0 0.0
  %v502 = vand.u32 %v119, 4294901760
  %503 = vmatprep.mubr.f32.mxu0 %v502
  %v504 = vand.u32 %v37, 4294901760
  %505 = vmatmul.mubr.f32.gmra.mrb[0].mxu0 %v504
  %v506 = vpop.f32.mrb[0].mxu0
  %v507 = vadd.f32 %v250, %v506
  %v508 = vpop.f32.mrb[0].mxu0
  %v509 = vand.u32 %v122, 4294901760
  %510 = vmatprep.mubr.f32.mxu0 %v509
  %v511 = vand.u32 %v39, 4294901760
  %512 = vmatmul.mubr.f32.gmra.mrb[0].mxu0 %v511
  %v513 = vpop.f32.mrb[0].mxu0
  %v514 = vadd.f32 %v265, %v513
  %v515 = vpop.f32.mrb[0].mxu0
  %v516 = vand.u32 %v125, 4294901760
  %517 = vmatprep.mubr.f32.mxu0 %v516
  %v518 = vand.u32 %v41, 4294901760
  %519 = vmatmul.mubr.f32.gmra.mrb[0].mxu0 %v518
  %v520 = vpop.f32.mrb[0].mxu0
  %v521 = vadd.f32 %v280, %v520
  %v522 = vpop.f32.mrb[0].mxu0
  %v523 = vand.u32 %v128, 4294901760
  %524 = vmatprep.mubr.f32.mxu0 %v523
  %v525 = vand.u32 %v43, 4294901760
  %526 = vmatmul.mubr.f32.gmra.mrb[0].mxu0 %v525
  %v527 = vpop.f32.mrb[0].mxu0
  %v528 = vadd.f32 %v295, %v527
  %v529 = vpop.f32.mrb[0].mxu0
  %v530 = vand.u32 %v131, 4294901760
  %531 = vmatprep.mubr.f32.mxu0 %v530
  %v532 = vand.u32 %v45, 4294901760
  %533 = vmatmul.mubr.f32.gmra.mrb[0].mxu0 %v532
  %v534 = vpop.f32.mrb[0].mxu0
  %v535 = vadd.f32 %v310, %v534
  %v536 = vpop.f32.mrb[0].mxu0
  %v537 = vand.u32 %v134, 4294901760
  %538 = vmatprep.mubr.f32.mxu0 %v537
  %v539 = vand.u32 %v47, 4294901760
  %540 = vmatmul.mubr.f32.gmra.mrb[0].mxu0 %v539
  %v541 = vpop.f32.mrb[0].mxu0
  %v542 = vadd.f32 %v325, %v541
  %v543 = vpop.f32.mrb[0].mxu0
  %v544 = vand.u32 %v137, 4294901760
  %545 = vmatprep.mubr.f32.mxu0 %v544
  %v546 = vand.u32 %v49, 4294901760
  %547 = vmatmul.mubr.f32.gmra.mrb[0].mxu0 %v546
  %v548 = vpop.f32.mrb[0].mxu0
  %v549 = vadd.f32 %v340, %v548
  %v550 = vpop.f32.mrb[0].mxu0
  %v551 = vand.u32 %v140, 4294901760
  %552 = vmatprep.mubr.f32.mxu0 %v551
  %v553 = vand.u32 %v51, 4294901760
  %554 = vmatmul.mubr.f32.gmra.mrb[0].mxu0 %v553
  %v555 = vpop.f32.mrb[0].mxu0
  %v556 = vadd.f32 %v355, %v555
  %v557 = vpop.f32.mrb[0].mxu0
  %v558 = vand.u32 %v143, 4294901760
  %559 = vmatprep.mubr.f32.mxu0 %v558
  %v560 = vand.u32 %v53, 4294901760
  %561 = vmatmul.mubr.f32.gmra.mrb[0].mxu0 %v560
  %v562 = vpop.f32.mrb[0].mxu0
  %v563 = vadd.f32 %v370, %v562
  %v564 = vpop.f32.mrb[0].mxu0
  %v565 = vand.u32 %v146, 4294901760
  %566 = vmatprep.mubr.f32.mxu0 %v565
  %v567 = vand.u32 %v55, 4294901760
  %568 = vmatmul.mubr.f32.gmra.mrb[0].mxu0 %v567
  %v569 = vpop.f32.mrb[0].mxu0
  %v570 = vadd.f32 %v385, %v569
  %v571 = vpop.f32.mrb[0].mxu0
  %572 = vdwg.mxu0
  %v573 = vand.u32 %v149, 4294901760
  %v574 = vsub.f32 %v149, %v573
  %575 = vmatprep.subr.mxu0 %v574
  %v576 = vand.u32 %v57, 4294901760
  %v577 = vsub.f32 %v57, %v576
  %578 = vmatpush1.xpose.msra.mxu0 %v577
  %v579 = vand.u32 %v152, 4294901760
  %v580 = vsub.f32 %v152, %v579
  %581 = vmatprep.subr.mxu0 %v580
  %v582 = vand.u32 %v59, 4294901760
  %v583 = vsub.f32 %v59, %v582
  %584 = vmatpush1.xpose.msra.mxu0 %v583
  %v585 = vand.u32 %v155, 4294901760
  %v586 = vsub.f32 %v155, %v585
  %587 = vmatprep.subr.mxu0 %v586
  %v588 = vand.u32 %v61, 4294901760
  %v589 = vsub.f32 %v61, %v588
  %590 = vmatpush1.xpose.msra.mxu0 %v589
  %v591 = vand.u32 %v158, 4294901760
  %v592 = vsub.f32 %v158, %v591
  %593 = vmatprep.subr.mxu0 %v592
  %v594 = vand.u32 %v63, 4294901760
  %v595 = vsub.f32 %v63, %v594
  %596 = vmatpush1.xpose.msra.mxu0 %v595
  %v597 = vand.u32 %v161, 4294901760
  %v598 = vsub.f32 %v161, %v597
  %599 = vmatprep.subr.mxu0 %v598
  %v600 = vand.u32 %v65, 4294901760
  %v601 = vsub.f32 %v65, %v600
  %602 = vmatpush1.xpose.msra.mxu0 %v601
  %603 = vmatprep.subr.mxu0 0.0
  %604 = vmatpush1.xpose.msra.mxu0 0.0
  %605 = vmatprep.subr.mxu0 0.0
  %606 = vmatpush1.xpose.msra.mxu0 0.0
  %607 = vmatprep.subr.mxu0 0.0
  %608 = vmatpush1.xpose.msra.mxu0 0.0
  %609 = vmatprep.subr.mxu0 0.0
  %610 = vmatpush1.xpose.msra.mxu0 0.0
  %611 = vmatprep.subr.mxu0 0.0
  %612 = vmatpush1.xpose.msra.mxu0 0.0
  %613 = vmatprep.subr.mxu0 0.0
  %614 = vmatpush1.xpose.msra.mxu0 0.0
  %615 = vmatprep.subr.mxu0 0.0
  %616 = vmatpush1.xpose.msra.mxu0 0.0
  %617 = vmatprep.subr.mxu0 0.0
  %618 = vmatpush1.xpose.msra.mxu0 0.0
  %619 = vmatprep.subr.mxu0 0.0
  %620 = vmatpush1.xpose.msra.mxu0 0.0
  %621 = vmatprep.subr.mxu0 0.0
  %622 = vmatpush1.xpose.msra.mxu0 0.0
  %623 = vmatprep.subr.mxu0 0.0
  %624 = vmatpush1.xpose.msra.mxu0 0.0
  %625 = vmatprep.subr.mxu0 0.0
  %626 = vmatpush1.xpose.msra.mxu0 0.0
  %627 = vmatprep.subr.mxu0 0.0
  %628 = vmatpush1.xpose.msra.mxu0 0.0
  %629 = vmatprep.subr.mxu0 0.0
  %630 = vmatpush1.xpose.msra.mxu0 0.0
  %631 = vmatprep.subr.mxu0 0.0
  %632 = vmatpush1.xpose.msra.mxu0 0.0
  %633 = vmatprep.subr.mxu0 0.0
  %634 = vmatpush1.xpose.msra.mxu0 0.0
  %635 = vmatprep.subr.mxu0 0.0
  %636 = vmatpush1.xpose.msra.mxu0 0.0
  %637 = vmatprep.subr.mxu0 0.0
  %638 = vmatpush1.xpose.msra.mxu0 0.0
  %639 = vmatprep.subr.mxu0 0.0
  %640 = vmatpush1.xpose.msra.mxu0 0.0
  %641 = vmatprep.subr.mxu0 0.0
  %642 = vmatpush1.xpose.msra.mxu0 0.0
  %643 = vmatprep.subr.mxu0 0.0
  %644 = vmatpush1.xpose.msra.mxu0 0.0
  %645 = vmatprep.subr.mxu0 0.0
  %646 = vmatpush1.xpose.msra.mxu0 0.0
  %647 = vmatprep.subr.mxu0 0.0
  %648 = vmatpush1.xpose.msra.mxu0 0.0
  %649 = vmatprep.subr.mxu0 0.0
  %650 = vmatpush1.xpose.msra.mxu0 0.0
  %651 = vmatprep.subr.mxu0 0.0
  %652 = vmatpush1.xpose.msra.mxu0 0.0
  %653 = vmatprep.subr.mxu0 0.0
  %654 = vmatpush1.xpose.msra.mxu0 0.0
  %655 = vmatprep.subr.mxu0 0.0
  %656 = vmatpush1.xpose.msra.mxu0 0.0
  %v657 = vand.u32 %v119, 4294901760
  %v658 = vsub.f32 %v119, %v657
  %659 = vmatprep.mubr.f32.mxu0 %v658
  %v660 = vand.u32 %v37, 4294901760
  %v661 = vsub.f32 %v37, %v660
  %662 = vmatmul.mubr.f32.gmra.mrb[0].mxu0 %v661
  %v663 = vpop.f32.mrb[0].mxu0
  %v664 = vadd.f32 %v507, %v663
  %v665 = vpop.f32.mrb[0].mxu0
  %v666 = vand.u32 %v122, 4294901760
  %v667 = vsub.f32 %v122, %v666
  %668 = vmatprep.mubr.f32.mxu0 %v667
  %v669 = vand.u32 %v39, 4294901760
  %v670 = vsub.f32 %v39, %v669
  %671 = vmatmul.mubr.f32.gmra.mrb[0].mxu0 %v670
  %v672 = vpop.f32.mrb[0].mxu0
  %v673 = vadd.f32 %v514, %v672
  %v674 = vpop.f32.mrb[0].mxu0
  %v675 = vand.u32 %v125, 4294901760
  %v676 = vsub.f32 %v125, %v675
  %677 = vmatprep.mubr.f32.mxu0 %v676
  %v678 = vand.u32 %v41, 4294901760
  %v679 = vsub.f32 %v41, %v678
  %680 = vmatmul.mubr.f32.gmra.mrb[0].mxu0 %v679
  %v681 = vpop.f32.mrb[0].mxu0
  %v682 = vadd.f32 %v521, %v681
  %v683 = vpop.f32.mrb[0].mxu0
  %v684 = vand.u32 %v128, 4294901760
  %v685 = vsub.f32 %v128, %v684
  %686 = vmatprep.mubr.f32.mxu0 %v685
  %v687 = vand.u32 %v43, 4294901760
  %v688 = vsub.f32 %v43, %v687
  %689 = vmatmul.mubr.f32.gmra.mrb[0].mxu0 %v688
  %v690 = vpop.f32.mrb[0].mxu0
  %v691 = vadd.f32 %v528, %v690
  %v692 = vpop.f32.mrb[0].mxu0
  %v693 = vand.u32 %v131, 4294901760
  %v694 = vsub.f32 %v131, %v693
  %695 = vmatprep.mubr.f32.mxu0 %v694
  %v696 = vand.u32 %v45, 4294901760
  %v697 = vsub.f32 %v45, %v696
  %698 = vmatmul.mubr.f32.gmra.mrb[0].mxu0 %v697
  %v699 = vpop.f32.mrb[0].mxu0
  %v700 = vadd.f32 %v535, %v699
  %v701 = vpop.f32.mrb[0].mxu0
  %v702 = vand.u32 %v134, 4294901760
  %v703 = vsub.f32 %v134, %v702
  %704 = vmatprep.mubr.f32.mxu0 %v703
  %v705 = vand.u32 %v47, 4294901760
  %v706 = vsub.f32 %v47, %v705
  %707 = vmatmul.mubr.f32.gmra.mrb[0].mxu0 %v706
  %v708 = vpop.f32.mrb[0].mxu0
  %v709 = vadd.f32 %v542, %v708
  %v710 = vpop.f32.mrb[0].mxu0
  %v711 = vand.u32 %v137, 4294901760
  %v712 = vsub.f32 %v137, %v711
  %713 = vmatprep.mubr.f32.mxu0 %v712
  %v714 = vand.u32 %v49, 4294901760
  %v715 = vsub.f32 %v49, %v714
  %716 = vmatmul.mubr.f32.gmra.mrb[0].mxu0 %v715
  %v717 = vpop.f32.mrb[0].mxu0
  %v718 = vadd.f32 %v549, %v717
  %v719 = vpop.f32.mrb[0].mxu0
  %v720 = vand.u32 %v140, 4294901760
  %v721 = vsub.f32 %v140, %v720
  %722 = vmatprep.mubr.f32.mxu0 %v721
  %v723 = vand.u32 %v51, 4294901760
  %v724 = vsub.f32 %v51, %v723
  %725 = vmatmul.mubr.f32.gmra.mrb[0].mxu0 %v724
  %v726 = vpop.f32.mrb[0].mxu0
  %v727 = vadd.f32 %v556, %v726
  %v728 = vpop.f32.mrb[0].mxu0
  %v729 = vand.u32 %v143, 4294901760
  %v730 = vsub.f32 %v143, %v729
  %731 = vmatprep.mubr.f32.mxu0 %v730
  %v732 = vand.u32 %v53, 4294901760
  %v733 = vsub.f32 %v53, %v732
  %734 = vmatmul.mubr.f32.gmra.mrb[0].mxu0 %v733
  %v735 = vpop.f32.mrb[0].mxu0
  %v736 = vadd.f32 %v563, %v735
  %v737 = vpop.f32.mrb[0].mxu0
  %v738 = vand.u32 %v146, 4294901760
  %v739 = vsub.f32 %v146, %v738
  %740 = vmatprep.mubr.f32.mxu0 %v739
  %v741 = vand.u32 %v55, 4294901760
  %v742 = vsub.f32 %v55, %v741
  %743 = vmatmul.mubr.f32.gmra.mrb[0].mxu0 %v742
  %v744 = vpop.f32.mrb[0].mxu0
  %v745 = vadd.f32 %v570, %v744
  %v746 = vpop.f32.mrb[0].mxu0
  %747 = vdwg.mxu0
  %v748 = vand.u32 %v149, 4294901760
  %749 = vmatprep.subr.mxu0 %v748
  %v750 = vand.u32 %v57, 4294901760
  %751 = vmatpush1.xpose.msra.mxu0 %v750
  %v752 = vand.u32 %v152, 4294901760
  %753 = vmatprep.subr.mxu0 %v752
  %v754 = vand.u32 %v59, 4294901760
  %755 = vmatpush1.xpose.msra.mxu0 %v754
  %v756 = vand.u32 %v155, 4294901760
  %757 = vmatprep.subr.mxu0 %v756
  %v758 = vand.u32 %v61, 4294901760
  %759 = vmatpush1.xpose.msra.mxu0 %v758
  %v760 = vand.u32 %v158, 4294901760
  %761 = vmatprep.subr.mxu0 %v760
  %v762 = vand.u32 %v63, 4294901760
  %763 = vmatpush1.xpose.msra.mxu0 %v762
  %v764 = vand.u32 %v161, 4294901760
  %765 = vmatprep.subr.mxu0 %v764
  %v766 = vand.u32 %v65, 4294901760
  %767 = vmatpush1.xpose.msra.mxu0 %v766
  %768 = vmatprep.subr.mxu0 0.0
  %769 = vmatpush1.xpose.msra.mxu0 0.0
  %770 = vmatprep.subr.mxu0 0.0
  %771 = vmatpush1.xpose.msra.mxu0 0.0
  %772 = vmatprep.subr.mxu0 0.0
  %773 = vmatpush1.xpose.msra.mxu0 0.0
  %774 = vmatprep.subr.mxu0 0.0
  %775 = vmatpush1.xpose.msra.mxu0 0.0
  %776 = vmatprep.subr.mxu0 0.0
  %777 = vmatpush1.xpose.msra.mxu0 0.0
  %778 = vmatprep.subr.mxu0 0.0
  %779 = vmatpush1.xpose.msra.mxu0 0.0
  %780 = vmatprep.subr.mxu0 0.0
  %781 = vmatpush1.xpose.msra.mxu0 0.0
  %782 = vmatprep.subr.mxu0 0.0
  %783 = vmatpush1.xpose.msra.mxu0 0.0
  %784 = vmatprep.subr.mxu0 0.0
  %785 = vmatpush1.xpose.msra.mxu0 0.0
  %786 = vmatprep.subr.mxu0 0.0
  %787 = vmatpush1.xpose.msra.mxu0 0.0
  %788 = vmatprep.subr.mxu0 0.0
  %789 = vmatpush1.xpose.msra.mxu0 0.0
  %790 = vmatprep.subr.mxu0 0.0
  %791 = vmatpush1.xpose.msra.mxu0 0.0
  %792 = vmatprep.subr.mxu0 0.0
  %793 = vmatpush1.xpose.msra.mxu0 0.0
  %794 = vmatprep.subr.mxu0 0.0
  %795 = vmatpush1.xpose.msra.mxu0 0.0
  %796 = vmatprep.subr.mxu0 0.0
  %797 = vmatpush1.xpose.msra.mxu0 0.0
  %798 = vmatprep.subr.mxu0 0.0
  %799 = vmatpush1.xpose.msra.mxu0 0.0
  %800 = vmatprep.subr.mxu0 0.0
  %801 = vmatpush1.xpose.msra.mxu0 0.0
  %802 = vmatprep.subr.mxu0 0.0
  %803 = vmatpush1.xpose.msra.mxu0 0.0
  %804 = vmatprep.subr.mxu0 0.0
  %805 = vmatpush1.xpose.msra.mxu0 0.0
  %806 = vmatprep.subr.mxu0 0.0
  %807 = vmatpush1.xpose.msra.mxu0 0.0
  %808 = vmatprep.subr.mxu0 0.0
  %809 = vmatpush1.xpose.msra.mxu0 0.0
  %810 = vmatprep.subr.mxu0 0.0
  %811 = vmatpush1.xpose.msra.mxu0 0.0
  %812 = vmatprep.subr.mxu0 0.0
  %813 = vmatpush1.xpose.msra.mxu0 0.0
  %814 = vmatprep.subr.mxu0 0.0
  %815 = vmatpush1.xpose.msra.mxu0 0.0
  %816 = vmatprep.subr.mxu0 0.0
  %817 = vmatpush1.xpose.msra.mxu0 0.0
  %818 = vmatprep.subr.mxu0 0.0
  %819 = vmatpush1.xpose.msra.mxu0 0.0
  %820 = vmatprep.subr.mxu0 0.0
  %821 = vmatpush1.xpose.msra.mxu0 0.0
  %v822 = vand.u32 %v119, 4294901760
  %v823 = vsub.f32 %v119, %v822
  %v824 = vand.u32 %v823, 4294901760
  %825 = vmatprep.mubr.f32.mxu0 %v824
  %v826 = vand.u32 %v37, 4294901760
  %v827 = vsub.f32 %v37, %v826
  %v828 = vand.u32 %v827, 4294901760
  %829 = vmatmul.mubr.f32.gmra.mrb[0].mxu0 %v828
  %v830 = vpop.f32.mrb[0].mxu0
  %v831 = vadd.f32 %v664, %v830
  %v832 = vpop.f32.mrb[0].mxu0
  %v833 = vand.u32 %v122, 4294901760
  %v834 = vsub.f32 %v122, %v833
  %v835 = vand.u32 %v834, 4294901760
  %836 = vmatprep.mubr.f32.mxu0 %v835
  %v837 = vand.u32 %v39, 4294901760
  %v838 = vsub.f32 %v39, %v837
  %v839 = vand.u32 %v838, 4294901760
  %840 = vmatmul.mubr.f32.gmra.mrb[0].mxu0 %v839
  %v841 = vpop.f32.mrb[0].mxu0
  %v842 = vadd.f32 %v673, %v841
  %v843 = vpop.f32.mrb[0].mxu0
  %v844 = vand.u32 %v125, 4294901760
  %v845 = vsub.f32 %v125, %v844
  %v846 = vand.u32 %v845, 4294901760
  %847 = vmatprep.mubr.f32.mxu0 %v846
  %v848 = vand.u32 %v41, 4294901760
  %v849 = vsub.f32 %v41, %v848
  %v850 = vand.u32 %v849, 4294901760
  %851 = vmatmul.mubr.f32.gmra.mrb[0].mxu0 %v850
  %v852 = vpop.f32.mrb[0].mxu0
  %v853 = vadd.f32 %v682, %v852
  %v854 = vpop.f32.mrb[0].mxu0
  %v855 = vand.u32 %v128, 4294901760
  %v856 = vsub.f32 %v128, %v855
  %v857 = vand.u32 %v856, 4294901760
  %858 = vmatprep.mubr.f32.mxu0 %v857
  %v859 = vand.u32 %v43, 4294901760
  %v860 = vsub.f32 %v43, %v859
  %v861 = vand.u32 %v860, 4294901760
  %862 = vmatmul.mubr.f32.gmra.mrb[0].mxu0 %v861
  %v863 = vpop.f32.mrb[0].mxu0
  %v864 = vadd.f32 %v691, %v863
  %v865 = vpop.f32.mrb[0].mxu0
  %v866 = vand.u32 %v131, 4294901760
  %v867 = vsub.f32 %v131, %v866
  %v868 = vand.u32 %v867, 4294901760
  %869 = vmatprep.mubr.f32.mxu0 %v868
  %v870 = vand.u32 %v45, 4294901760
  %v871 = vsub.f32 %v45, %v870
  %v872 = vand.u32 %v871, 4294901760
  %873 = vmatmul.mubr.f32.gmra.mrb[0].mxu0 %v872
  %v874 = vpop.f32.mrb[0].mxu0
  %v875 = vadd.f32 %v700, %v874
  %v876 = vpop.f32.mrb[0].mxu0
  %v877 = vand.u32 %v134, 4294901760
  %v878 = vsub.f32 %v134, %v877
  %v879 = vand.u32 %v878, 4294901760
  %880 = vmatprep.mubr.f32.mxu0 %v879
  %v881 = vand.u32 %v47, 4294901760
  %v882 = vsub.f32 %v47, %v881
  %v883 = vand.u32 %v882, 4294901760
  %884 = vmatmul.mubr.f32.gmra.mrb[0].mxu0 %v883
  %v885 = vpop.f32.mrb[0].mxu0
  %v886 = vadd.f32 %v709, %v885
  %v887 = vpop.f32.mrb[0].mxu0
  %v888 = vand.u32 %v137, 4294901760
  %v889 = vsub.f32 %v137, %v888
  %v890 = vand.u32 %v889, 4294901760
  %891 = vmatprep.mubr.f32.mxu0 %v890
  %v892 = vand.u32 %v49, 4294901760
  %v893 = vsub.f32 %v49, %v892
  %v894 = vand.u32 %v893, 4294901760
  %895 = vmatmul.mubr.f32.gmra.mrb[0].mxu0 %v894
  %v896 = vpop.f32.mrb[0].mxu0
  %v897 = vadd.f32 %v718, %v896
  %v898 = vpop.f32.mrb[0].mxu0
  %v899 = vand.u32 %v140, 4294901760
  %v900 = vsub.f32 %v140, %v899
  %v901 = vand.u32 %v900, 4294901760
  %902 = vmatprep.mubr.f32.mxu0 %v901
  %v903 = vand.u32 %v51, 4294901760
  %v904 = vsub.f32 %v51, %v903
  %v905 = vand.u32 %v904, 4294901760
  %906 = vmatmul.mubr.f32.gmra.mrb[0].mxu0 %v905
  %v907 = vpop.f32.mrb[0].mxu0
  %v908 = vadd.f32 %v727, %v907
  %v909 = vpop.f32.mrb[0].mxu0
  %v910 = vand.u32 %v143, 4294901760
  %v911 = vsub.f32 %v143, %v910
  %v912 = vand.u32 %v911, 4294901760
  %913 = vmatprep.mubr.f32.mxu0 %v912
  %v914 = vand.u32 %v53, 4294901760
  %v915 = vsub.f32 %v53, %v914
  %v916 = vand.u32 %v915, 4294901760
  %917 = vmatmul.mubr.f32.gmra.mrb[0].mxu0 %v916
  %v918 = vpop.f32.mrb[0].mxu0
  %v919 = vadd.f32 %v736, %v918
  %v920 = vpop.f32.mrb[0].mxu0
  %v921 = vand.u32 %v146, 4294901760
  %v922 = vsub.f32 %v146, %v921
  %v923 = vand.u32 %v922, 4294901760
  %924 = vmatprep.mubr.f32.mxu0 %v923
  %v925 = vand.u32 %v55, 4294901760
  %v926 = vsub.f32 %v55, %v925
  %v927 = vand.u32 %v926, 4294901760
  %928 = vmatmul.mubr.f32.gmra.mrb[0].mxu0 %v927
  %v929 = vpop.f32.mrb[0].mxu0
  %v930 = vadd.f32 %v745, %v929
  %v931 = vpop.f32.mrb[0].mxu0
  %932 = vdwg.mxu0
  %v933 = vand.u32 %v149, 4294901760
  %v934 = vsub.f32 %v149, %v933
  %v935 = vand.u32 %v934, 4294901760
  %936 = vmatprep.subr.mxu0 %v935
  %v937 = vand.u32 %v57, 4294901760
  %v938 = vsub.f32 %v57, %v937
  %v939 = vand.u32 %v938, 4294901760
  %940 = vmatpush1.xpose.msra.mxu0 %v939
  %v941 = vand.u32 %v152, 4294901760
  %v942 = vsub.f32 %v152, %v941
  %v943 = vand.u32 %v942, 4294901760
  %944 = vmatprep.subr.mxu0 %v943
  %v945 = vand.u32 %v59, 4294901760
  %v946 = vsub.f32 %v59, %v945
  %v947 = vand.u32 %v946, 4294901760
  %948 = vmatpush1.xpose.msra.mxu0 %v947
  %v949 = vand.u32 %v155, 4294901760
  %v950 = vsub.f32 %v155, %v949
  %v951 = vand.u32 %v950, 4294901760
  %952 = vmatprep.subr.mxu0 %v951
  %v953 = vand.u32 %v61, 4294901760
  %v954 = vsub.f32 %v61, %v953
  %v955 = vand.u32 %v954, 4294901760
  %956 = vmatpush1.xpose.msra.mxu0 %v955
  %v957 = vand.u32 %v158, 4294901760
  %v958 = vsub.f32 %v158, %v957
  %v959 = vand.u32 %v958, 4294901760
  %960 = vmatprep.subr.mxu0 %v959
  %v961 = vand.u32 %v63, 4294901760
  %v962 = vsub.f32 %v63, %v961
  %v963 = vand.u32 %v962, 4294901760
  %964 = vmatpush1.xpose.msra.mxu0 %v963
  %v965 = vand.u32 %v161, 4294901760
  %v966 = vsub.f32 %v161, %v965
  %v967 = vand.u32 %v966, 4294901760
  %968 = vmatprep.subr.mxu0 %v967
  %v969 = vand.u32 %v65, 4294901760
  %v970 = vsub.f32 %v65, %v969
  %v971 = vand.u32 %v970, 4294901760
  %972 = vmatpush1.xpose.msra.mxu0 %v971
  %973 = vmatprep.subr.mxu0 0.0
  %974 = vmatpush1.xpose.msra.mxu0 0.0
  %975 = vmatprep.subr.mxu0 0.0
  %976 = vmatpush1.xpose.msra.mxu0 0.0
  %977 = vmatprep.subr.mxu0 0.0
  %978 = vmatpush1.xpose.msra.mxu0 0.0
  %979 = vmatprep.subr.mxu0 0.0
  %980 = vmatpush1.xpose.msra.mxu0 0.0
  %981 = vmatprep.subr.mxu0 0.0
  %982 = vmatpush1.xpose.msra.mxu0 0.0
  %983 = vmatprep.subr.mxu0 0.0
  %984 = vmatpush1.xpose.msra.mxu0 0.0
  %985 = vmatprep.subr.mxu0 0.0
  %986 = vmatpush1.xpose.msra.mxu0 0.0
  %987 = vmatprep.subr.mxu0 0.0
  %988 = vmatpush1.xpose.msra.mxu0 0.0
  %989 = vmatprep.subr.mxu0 0.0
  %990 = vmatpush1.xpose.msra.mxu0 0.0
  %991 = vmatprep.subr.mxu0 0.0
  %992 = vmatpush1.xpose.msra.mxu0 0.0
  %993 = vmatprep.subr.mxu0 0.0
  %994 = vmatpush1.xpose.msra.mxu0 0.0
  %995 = vmatprep.subr.mxu0 0.0
  %996 = vmatpush1.xpose.msra.mxu0 0.0
  %997 = vmatprep.subr.mxu0 0.0
  %998 = vmatpush1.xpose.msra.mxu0 0.0
  %999 = vmatprep.subr.mxu0 0.0
  %1000 = vmatpush1.xpose.msra.mxu0 0.0
  %1001 = vmatprep.subr.mxu0 0.0
  %1002 = vmatpush1.xpose.msra.mxu0 0.0
  %1003 = vmatprep.subr.mxu0 0.0
  %1004 = vmatpush1.xpose.msra.mxu0 0.0
  %1005 = vmatprep.subr.mxu0 0.0
  %1006 = vmatpush1.xpose.msra.mxu0 0.0
  %1007 = vmatprep.subr.mxu0 0.0
  %1008 = vmatpush1.xpose.msra.mxu0 0.0
  %1009 = vmatprep.subr.mxu0 0.0
  %1010 = vmatpush1.xpose.msra.mxu0 0.0
  %1011 = vmatprep.subr.mxu0 0.0
  %1012 = vmatpush1.xpose.msra.mxu0 0.0
  %1013 = vmatprep.subr.mxu0 0.0
  %1014 = vmatpush1.xpose.msra.mxu0 0.0
  %1015 = vmatprep.subr.mxu0 0.0
  %1016 = vmatpush1.xpose.msra.mxu0 0.0
  %1017 = vmatprep.subr.mxu0 0.0
  %1018 = vmatpush1.xpose.msra.mxu0 0.0
  %1019 = vmatprep.subr.mxu0 0.0
  %1020 = vmatpush1.xpose.msra.mxu0 0.0
  %1021 = vmatprep.subr.mxu0 0.0
  %1022 = vmatpush1.xpose.msra.mxu0 0.0
  %1023 = vmatprep.subr.mxu0 0.0
  %1024 = vmatpush1.xpose.msra.mxu0 0.0
  %1025 = vmatprep.subr.mxu0 0.0
  %1026 = vmatpush1.xpose.msra.mxu0 0.0
  %v1027 = vand.u32 %v119, 4294901760
  %1028 = vmatprep.mubr.f32.mxu0 %v1027
  %v1029 = vand.u32 %v37, 4294901760
  %1030 = vmatmul.mubr.f32.gmra.mrb[0].mxu0 %v1029
  %v1031 = vpop.f32.mrb[0].mxu0
  %v1032 = vadd.f32 %v831, %v1031
  %v1033 = vpop.f32.mrb[0].mxu0
  %v1034 = vand.u32 %v122, 4294901760
  %1035 = vmatprep.mubr.f32.mxu0 %v1034
  %v1036 = vand.u32 %v39, 4294901760
  %1037 = vmatmul.mubr.f32.gmra.mrb[0].mxu0 %v1036
  %v1038 = vpop.f32.mrb[0].mxu0
  %v1039 = vadd.f32 %v842, %v1038
  %v1040 = vpop.f32.mrb[0].mxu0
  %v1041 = vand.u32 %v125, 4294901760
  %1042 = vmatprep.mubr.f32.mxu0 %v1041
  %v1043 = vand.u32 %v41, 4294901760
  %1044 = vmatmul.mubr.f32.gmra.mrb[0].mxu0 %v1043
  %v1045 = vpop.f32.mrb[0].mxu0
  %v1046 = vadd.f32 %v853, %v1045
  %v1047 = vpop.f32.mrb[0].mxu0
  %v1048 = vand.u32 %v128, 4294901760
  %1049 = vmatprep.mubr.f32.mxu0 %v1048
  %v1050 = vand.u32 %v43, 4294901760
  %1051 = vmatmul.mubr.f32.gmra.mrb[0].mxu0 %v1050
  %v1052 = vpop.f32.mrb[0].mxu0
  %v1053 = vadd.f32 %v864, %v1052
  %v1054 = vpop.f32.mrb[0].mxu0
  %v1055 = vand.u32 %v131, 4294901760
  %1056 = vmatprep.mubr.f32.mxu0 %v1055
  %v1057 = vand.u32 %v45, 4294901760
  %1058 = vmatmul.mubr.f32.gmra.mrb[0].mxu0 %v1057
  %v1059 = vpop.f32.mrb[0].mxu0
  %v1060 = vadd.f32 %v875, %v1059
  %v1061 = vpop.f32.mrb[0].mxu0
  %v1062 = vand.u32 %v134, 4294901760
  %1063 = vmatprep.mubr.f32.mxu0 %v1062
  %v1064 = vand.u32 %v47, 4294901760
  %1065 = vmatmul.mubr.f32.gmra.mrb[0].mxu0 %v1064
  %v1066 = vpop.f32.mrb[0].mxu0
  %v1067 = vadd.f32 %v886, %v1066
  %v1068 = vpop.f32.mrb[0].mxu0
  %v1069 = vand.u32 %v137, 4294901760
  %1070 = vmatprep.mubr.f32.mxu0 %v1069
  %v1071 = vand.u32 %v49, 4294901760
  %1072 = vmatmul.mubr.f32.gmra.mrb[0].mxu0 %v1071
  %v1073 = vpop.f32.mrb[0].mxu0
  %v1074 = vadd.f32 %v897, %v1073
  %v1075 = vpop.f32.mrb[0].mxu0
  %v1076 = vand.u32 %v140, 4294901760
  %1077 = vmatprep.mubr.f32.mxu0 %v1076
  %v1078 = vand.u32 %v51, 4294901760
  %1079 = vmatmul.mubr.f32.gmra.mrb[0].mxu0 %v1078
  %v1080 = vpop.f32.mrb[0].mxu0
  %v1081 = vadd.f32 %v908, %v1080
  %v1082 = vpop.f32.mrb[0].mxu0
  %v1083 = vand.u32 %v143, 4294901760
  %1084 = vmatprep.mubr.f32.mxu0 %v1083
  %v1085 = vand.u32 %v53, 4294901760
  %1086 = vmatmul.mubr.f32.gmra.mrb[0].mxu0 %v1085
  %v1087 = vpop.f32.mrb[0].mxu0
  %v1088 = vadd.f32 %v919, %v1087
  %v1089 = vpop.f32.mrb[0].mxu0
  %v1090 = vand.u32 %v146, 4294901760
  %1091 = vmatprep.mubr.f32.mxu0 %v1090
  %v1092 = vand.u32 %v55, 4294901760
  %1093 = vmatmul.mubr.f32.gmra.mrb[0].mxu0 %v1092
  %v1094 = vpop.f32.mrb[0].mxu0
  %v1095 = vadd.f32 %v930, %v1094
  %v1096 = vpop.f32.mrb[0].mxu0
  %1097 = vdwg.mxu0
  %v1098 = vand.u32 %v149, 4294901760
  %1099 = vmatprep.subr.mxu0 %v1098
  %v1100 = vand.u32 %v57, 4294901760
  %1101 = vmatpush1.xpose.msra.mxu0 %v1100
  %v1102 = vand.u32 %v152, 4294901760
  %1103 = vmatprep.subr.mxu0 %v1102
  %v1104 = vand.u32 %v59, 4294901760
  %1105 = vmatpush1.xpose.msra.mxu0 %v1104
  %v1106 = vand.u32 %v155, 4294901760
  %1107 = vmatprep.subr.mxu0 %v1106
  %v1108 = vand.u32 %v61, 4294901760
  %1109 = vmatpush1.xpose.msra.mxu0 %v1108
  %v1110 = vand.u32 %v158, 4294901760
  %1111 = vmatprep.subr.mxu0 %v1110
  %v1112 = vand.u32 %v63, 4294901760
  %1113 = vmatpush1.xpose.msra.mxu0 %v1112
  %v1114 = vand.u32 %v161, 4294901760
  %1115 = vmatprep.subr.mxu0 %v1114
  %v1116 = vand.u32 %v65, 4294901760
  %1117 = vmatpush1.xpose.msra.mxu0 %v1116
  %1118 = vmatprep.subr.mxu0 0.0
  %1119 = vmatpush1.xpose.msra.mxu0 0.0
  %1120 = vmatprep.subr.mxu0 0.0
  %1121 = vmatpush1.xpose.msra.mxu0 0.0
  %1122 = vmatprep.subr.mxu0 0.0
  %1123 = vmatpush1.xpose.msra.mxu0 0.0
  %1124 = vmatprep.subr.mxu0 0.0
  %1125 = vmatpush1.xpose.msra.mxu0 0.0
  %1126 = vmatprep.subr.mxu0 0.0
  %1127 = vmatpush1.xpose.msra.mxu0 0.0
  %1128 = vmatprep.subr.mxu0 0.0
  %1129 = vmatpush1.xpose.msra.mxu0 0.0
  %1130 = vmatprep.subr.mxu0 0.0
  %1131 = vmatpush1.xpose.msra.mxu0 0.0
  %1132 = vmatprep.subr.mxu0 0.0
  %1133 = vmatpush1.xpose.msra.mxu0 0.0
  %1134 = vmatprep.subr.mxu0 0.0
  %1135 = vmatpush1.xpose.msra.mxu0 0.0
  %1136 = vmatprep.subr.mxu0 0.0
  %1137 = vmatpush1.xpose.msra.mxu0 0.0
  %1138 = vmatprep.subr.mxu0 0.0
  %1139 = vmatpush1.xpose.msra.mxu0 0.0
  %1140 = vmatprep.subr.mxu0 0.0
  %1141 = vmatpush1.xpose.msra.mxu0 0.0
  %1142 = vmatprep.subr.mxu0 0.0
  %1143 = vmatpush1.xpose.msra.mxu0 0.0
  %1144 = vmatprep.subr.mxu0 0.0
  %1145 = vmatpush1.xpose.msra.mxu0 0.0
  %1146 = vmatprep.subr.mxu0 0.0
  %1147 = vmatpush1.xpose.msra.mxu0 0.0
  %1148 = vmatprep.subr.mxu0 0.0
  %1149 = vmatpush1.xpose.msra.mxu0 0.0
  %1150 = vmatprep.subr.mxu0 0.0
  %1151 = vmatpush1.xpose.msra.mxu0 0.0
  %1152 = vmatprep.subr.mxu0 0.0
  %1153 = vmatpush1.xpose.msra.mxu0 0.0
  %1154 = vmatprep.subr.mxu0 0.0
  %1155 = vmatpush1.xpose.msra.mxu0 0.0
  %1156 = vmatprep.subr.mxu0 0.0
  %1157 = vmatpush1.xpose.msra.mxu0 0.0
  %1158 = vmatprep.subr.mxu0 0.0
  %1159 = vmatpush1.xpose.msra.mxu0 0.0
  %1160 = vmatprep.subr.mxu0 0.0
  %1161 = vmatpush1.xpose.msra.mxu0 0.0
  %1162 = vmatprep.subr.mxu0 0.0
  %1163 = vmatpush1.xpose.msra.mxu0 0.0
  %1164 = vmatprep.subr.mxu0 0.0
  %1165 = vmatpush1.xpose.msra.mxu0 0.0
  %1166 = vmatprep.subr.mxu0 0.0
  %1167 = vmatpush1.xpose.msra.mxu0 0.0
  %1168 = vmatprep.subr.mxu0 0.0
  %1169 = vmatpush1.xpose.msra.mxu0 0.0
  %1170 = vmatprep.subr.mxu0 0.0
  %1171 = vmatpush1.xpose.msra.mxu0 0.0
  %v1172 = vand.u32 %v119, 4294901760
  %1173 = vmatprep.mubr.f32.mxu0 %v1172
  %v1174 = vand.u32 %v37, 4294901760
  %1175 = vmatmul.mubr.f32.gmra.mrb[0].mxu0 %v1174
  %v1176 = vpop.f32.mrb[0].mxu0
  %v1177 = vadd.f32 %v1032, %v1176
  %v1178 = vpop.f32.mrb[0].mxu0
  %v1179 = vand.u32 %v122, 4294901760
  %1180 = vmatprep.mubr.f32.mxu0 %v1179
  %v1181 = vand.u32 %v39, 4294901760
  %1182 = vmatmul.mubr.f32.gmra.mrb[0].mxu0 %v1181
  %v1183 = vpop.f32.mrb[0].mxu0
  %v1184 = vadd.f32 %v1039, %v1183
  %v1185 = vpop.f32.mrb[0].mxu0
  %v1186 = vand.u32 %v125, 4294901760
  %1187 = vmatprep.mubr.f32.mxu0 %v1186
  %v1188 = vand.u32 %v41, 4294901760
  %1189 = vmatmul.mubr.f32.gmra.mrb[0].mxu0 %v1188
  %v1190 = vpop.f32.mrb[0].mxu0
  %v1191 = vadd.f32 %v1046, %v1190
  %v1192 = vpop.f32.mrb[0].mxu0
  %v1193 = vand.u32 %v128, 4294901760
  %1194 = vmatprep.mubr.f32.mxu0 %v1193
  %v1195 = vand.u32 %v43, 4294901760
  %1196 = vmatmul.mubr.f32.gmra.mrb[0].mxu0 %v1195
  %v1197 = vpop.f32.mrb[0].mxu0
  %v1198 = vadd.f32 %v1053, %v1197
  %v1199 = vpop.f32.mrb[0].mxu0
  %v1200 = vand.u32 %v131, 4294901760
  %1201 = vmatprep.mubr.f32.mxu0 %v1200
  %v1202 = vand.u32 %v45, 4294901760
  %1203 = vmatmul.mubr.f32.gmra.mrb[0].mxu0 %v1202
  %v1204 = vpop.f32.mrb[0].mxu0
  %v1205 = vadd.f32 %v1060, %v1204
  %v1206 = vpop.f32.mrb[0].mxu0
  %v1207 = vand.u32 %v134, 4294901760
  %1208 = vmatprep.mubr.f32.mxu0 %v1207
  %v1209 = vand.u32 %v47, 4294901760
  %1210 = vmatmul.mubr.f32.gmra.mrb[0].mxu0 %v1209
  %v1211 = vpop.f32.mrb[0].mxu0
  %v1212 = vadd.f32 %v1067, %v1211
  %v1213 = vpop.f32.mrb[0].mxu0
  %v1214 = vand.u32 %v137, 4294901760
  %1215 = vmatprep.mubr.f32.mxu0 %v1214
  %v1216 = vand.u32 %v49, 4294901760
  %1217 = vmatmul.mubr.f32.gmra.mrb[0].mxu0 %v1216
  %v1218 = vpop.f32.mrb[0].mxu0
  %v1219 = vadd.f32 %v1074, %v1218
  %v1220 = vpop.f32.mrb[0].mxu0
  %v1221 = vand.u32 %v140, 4294901760
  %1222 = vmatprep.mubr.f32.mxu0 %v1221
  %v1223 = vand.u32 %v51, 4294901760
  %1224 = vmatmul.mubr.f32.gmra.mrb[0].mxu0 %v1223
  %v1225 = vpop.f32.mrb[0].mxu0
  %v1226 = vadd.f32 %v1081, %v1225
  %v1227 = vpop.f32.mrb[0].mxu0
  %v1228 = vand.u32 %v143, 4294901760
  %1229 = vmatprep.mubr.f32.mxu0 %v1228
  %v1230 = vand.u32 %v53, 4294901760
  %1231 = vmatmul.mubr.f32.gmra.mrb[0].mxu0 %v1230
  %v1232 = vpop.f32.mrb[0].mxu0
  %v1233 = vadd.f32 %v1088, %v1232
  %v1234 = vpop.f32.mrb[0].mxu0
  %v1235 = vand.u32 %v146, 4294901760
  %1236 = vmatprep.mubr.f32.mxu0 %v1235
  %v1237 = vand.u32 %v55, 4294901760
  %1238 = vmatmul.mubr.f32.gmra.mrb[0].mxu0 %v1237
  %v1239 = vpop.f32.mrb[0].mxu0
  %v1240 = vadd.f32 %v1095, %v1239
  %v1241 = vpop.f32.mrb[0].mxu0
  %1242 = vdwg.mxu0
  %v1243 = vmax.f32 %v1177, 0.0
  %v1244 = vmax.f32 %v1184, 0.0
  %v1245 = vmax.f32 %v1191, 0.0
  %v1246 = vmax.f32 %v1198, 0.0
  %v1247 = vmax.f32 %v1205, 0.0
  %v1248 = vmax.f32 %v1212, 0.0
  %v1249 = vmax.f32 %v1219, 0.0
  %v1250 = vmax.f32 %v1226, 0.0
  %v1251 = vmax.f32 %v1233, 0.0
  %v1252 = vmax.f32 %v1240, 0.0
  %v1253 = vmax.f32 %v1243, %v1248
  %v1254 = vmax.f32 %v1244, %v1249
  %v1255 = vmax.f32 %v1245, %v1250
  %v1256 = vmax.f32 %v1246, %v1251
  %v1257 = vmax.f32 %v1247, %v1252
  %v1258 = vlaneseq
  %v1259 = vand.u32 %v1258, 127
  %vm1260 = vcmp.lt.s32.totalorder %v1259, 0
  %v1261 = vsub.s32 0, %v1259
  %v1262 = vsel %vm1260, %v1261, %v1259
  %v1263 = vshrl.u32 %v1262, 2
  %v1264 = vand.u32 %v1262, 3
  %v1265 = vsub.s32 0, %v1264
  %v1266 = vsel %vm1260, %v1265, %v1264
  %vm1267 = vcmp.ne.s32.totalorder %v1266, 0
  %vm1268 = vcmp.lt.s32.totalorder %v1266, 0
  %vm1269 = vmand %vm1268, %vm1267
  %v1270 = vadd.s32 %v1266, 4
  %v1271 = vsel %vm1269, %v1270, %v1266
  %v1272 = vlaneseq
  %v1273 = vshrl.u32 %v1272, 7
  %vm1274 = vcmp.eq.s32.totalorder %v1271, %v1273
  %v1275 = vsel %vm1274, 1, 0
  %v1276 = vcvt.s32.f32 %v1275
  %v1277 = vadd.s32 %v1273, 8
  %v1278 = vadd.s32 %v1273, 16
  %v1279 = vadd.s32 %v1273, 24
  %v1280 = vadd.s32 %v1273, 32
  %vm1281 = vcmp.lt.s32.totalorder %v1273, 0
  %v1282 = vsub.s32 0, %v1273
  %v1283 = vsel %vm1281, %v1282, %v1273
  %v1284 = vshrl.u32 %v1283, 2
  %v1285 = vand.u32 %v1283, 3
  %v1286 = vsub.s32 0, %v1285
  %v1287 = vsel %vm1281, %v1286, %v1285
  %vm1288 = vcmp.lt.s32.totalorder %v1277, 0
  %v1289 = vsub.s32 0, %v1277
  %v1290 = vsel %vm1288, %v1289, %v1277
  %v1291 = vshrl.u32 %v1290, 2
  %v1292 = vand.u32 %v1290, 3
  %v1293 = vsub.s32 0, %v1292
  %v1294 = vsel %vm1288, %v1293, %v1292
  %vm1295 = vcmp.lt.s32.totalorder %v1278, 0
  %v1296 = vsub.s32 0, %v1278
  %v1297 = vsel %vm1295, %v1296, %v1278
  %v1298 = vshrl.u32 %v1297, 2
  %v1299 = vand.u32 %v1297, 3
  %v1300 = vsub.s32 0, %v1299
  %v1301 = vsel %vm1295, %v1300, %v1299
  %vm1302 = vcmp.lt.s32.totalorder %v1279, 0
  %v1303 = vsub.s32 0, %v1279
  %v1304 = vsel %vm1302, %v1303, %v1279
  %v1305 = vshrl.u32 %v1304, 2
  %v1306 = vand.u32 %v1304, 3
  %v1307 = vsub.s32 0, %v1306
  %v1308 = vsel %vm1302, %v1307, %v1306
  %vm1309 = vcmp.lt.s32.totalorder %v1280, 0
  %v1310 = vsub.s32 0, %v1280
  %v1311 = vsel %vm1309, %v1310, %v1280
  %v1312 = vshrl.u32 %v1311, 2
  %v1313 = vand.u32 %v1311, 3
  %v1314 = vsub.s32 0, %v1313
  %v1315 = vsel %vm1309, %v1314, %v1313
  %vm1316 = vcmp.ne.s32.totalorder %v1287, 0
  %vm1317 = vcmp.ne.s32.totalorder %v1294, 0
  %vm1318 = vcmp.ne.s32.totalorder %v1301, 0
  %vm1319 = vcmp.ne.s32.totalorder %v1308, 0
  %vm1320 = vcmp.ne.s32.totalorder %v1315, 0
  %vm1321 = vcmp.lt.s32.totalorder %v1287, 0
  %vm1322 = vcmp.lt.s32.totalorder %v1294, 0
  %vm1323 = vcmp.lt.s32.totalorder %v1301, 0
  %vm1324 = vcmp.lt.s32.totalorder %v1308, 0
  %vm1325 = vcmp.lt.s32.totalorder %v1315, 0
  %vm1326 = vmand %vm1321, %vm1316
  %vm1327 = vmand %vm1322, %vm1317
  %vm1328 = vmand %vm1323, %vm1318
  %vm1329 = vmand %vm1324, %vm1319
  %vm1330 = vmand %vm1325, %vm1320
  %v1331 = vadd.s32 %v1287, 4
  %v1332 = vadd.s32 %v1294, 4
  %v1333 = vadd.s32 %v1301, 4
  %v1334 = vadd.s32 %v1308, 4
  %v1335 = vadd.s32 %v1315, 4
  %v1336 = vsel %vm1326, %v1331, %v1287
  %v1337 = vsel %vm1327, %v1332, %v1294
  %v1338 = vsel %vm1328, %v1333, %v1301
  %v1339 = vsel %vm1329, %v1334, %v1308
  %v1340 = vsel %vm1330, %v1335, %v1315
  %vm1341 = vcmp.eq.s32.totalorder %v1336, %v1259
  %vm1342 = vcmp.eq.s32.totalorder %v1337, %v1259
  %vm1343 = vcmp.eq.s32.totalorder %v1338, %v1259
  %vm1344 = vcmp.eq.s32.totalorder %v1339, %v1259
  %vm1345 = vcmp.eq.s32.totalorder %v1340, %v1259
  %v1346 = vsel %vm1341, 1, 0
  %v1347 = vsel %vm1342, 1, 0
  %v1348 = vsel %vm1343, 1, 0
  %v1349 = vsel %vm1344, 1, 0
  %v1350 = vsel %vm1345, 1, 0
  %v1351 = vcvt.s32.f32 %v1346
  %v1352 = vcvt.s32.f32 %v1347
  %v1353 = vcvt.s32.f32 %v1348
  %v1354 = vcvt.s32.f32 %v1349
  %v1355 = vcvt.s32.f32 %v1350
  %vm1356 = vcmask 326656
  %v1357 = vsel %vm1356, %v1253, 0.0
  %1358 = vadd.xlane.f32.xlu0 %v1357
  %v1359 = vpop.xlane.xlu0 %1358
  %v1360 = vsel %vm1356, %v1254, 0.0
  %1361 = vadd.xlane.f32.xlu0 %v1360
  %v1362 = vpop.xlane.xlu0 %1361
  %v1363 = vsel %vm1356, %v1255, 0.0
  %1364 = vadd.xlane.f32.xlu0 %v1363
  %v1365 = vpop.xlane.xlu0 %1364
  %v1366 = vsel %vm1356, %v1256, 0.0
  %1367 = vadd.xlane.f32.xlu0 %v1366
  %v1368 = vpop.xlane.xlu0 %1367
  %v1369 = vsel %vm1356, %v1257, 0.0
  %1370 = vadd.xlane.f32.xlu0 %v1369
  %v1371 = vpop.xlane.xlu0 %1370
  %v1373 = vsel %vm1356, %v1276, 0
  %1375 = vmatprep.subr.mxu0 0.0
  %v1376 = vand.u32 %v1359, 4294901760
  %1377 = vmatpush1.msra.mxu0 %v1376
  %1378 = vmatprep.subr.mxu0 0.0
  %v1379 = vand.u32 %v1362, 4294901760
  %1380 = vmatpush1.msra.mxu0 %v1379
  %1381 = vmatprep.subr.mxu0 0.0
  %v1382 = vand.u32 %v1365, 4294901760
  %1383 = vmatpush1.msra.mxu0 %v1382
  %1384 = vmatprep.subr.mxu0 0.0
  %v1385 = vand.u32 %v1368, 4294901760
  %1386 = vmatpush1.msra.mxu0 %v1385
  %1387 = vmatprep.subr.mxu0 0.0
  %v1388 = vand.u32 %v1371, 4294901760
  %1389 = vmatpush1.msra.mxu0 %v1388
  %1390 = vmatprep.subr.mxu0 0.0
  %1391 = vmatpush1.msra.mxu0 0.0
  %1392 = vmatprep.subr.mxu0 0.0
  %1393 = vmatpush1.msra.mxu0 0.0
  %1394 = vmatprep.subr.mxu0 0.0
  %1395 = vmatpush1.msra.mxu0 0.0
  %1396 = vmatprep.subr.mxu0 0.0
  %1397 = vmatpush1.msra.mxu0 0.0
  %1398 = vmatprep.subr.mxu0 0.0
  %1399 = vmatpush1.msra.mxu0 0.0
  %1400 = vmatprep.subr.mxu0 0.0
  %1401 = vmatpush1.msra.mxu0 0.0
  %1402 = vmatprep.subr.mxu0 0.0
  %1403 = vmatpush1.msra.mxu0 0.0
  %1404 = vmatprep.subr.mxu0 0.0
  %1405 = vmatpush1.msra.mxu0 0.0
  %1406 = vmatprep.subr.mxu0 0.0
  %1407 = vmatpush1.msra.mxu0 0.0
  %1408 = vmatprep.subr.mxu0 0.0
  %1409 = vmatpush1.msra.mxu0 0.0
  %1410 = vmatprep.subr.mxu0 0.0
  %1411 = vmatpush1.msra.mxu0 0.0
  %1412 = vmatprep.subr.mxu0 0.0
  %1413 = vmatpush1.msra.mxu0 0.0
  %1414 = vmatprep.subr.mxu0 0.0
  %1415 = vmatpush1.msra.mxu0 0.0
  %1416 = vmatprep.subr.mxu0 0.0
  %1417 = vmatpush1.msra.mxu0 0.0
  %1418 = vmatprep.subr.mxu0 0.0
  %1419 = vmatpush1.msra.mxu0 0.0
  %1420 = vmatprep.subr.mxu0 0.0
  %1421 = vmatpush1.msra.mxu0 0.0
  %1422 = vmatprep.subr.mxu0 0.0
  %1423 = vmatpush1.msra.mxu0 0.0
  %1424 = vmatprep.subr.mxu0 0.0
  %1425 = vmatpush1.msra.mxu0 0.0
  %1426 = vmatprep.subr.mxu0 0.0
  %1427 = vmatpush1.msra.mxu0 0.0
  %1428 = vmatprep.subr.mxu0 0.0
  %1429 = vmatpush1.msra.mxu0 0.0
  %1430 = vmatprep.subr.mxu0 0.0
  %1431 = vmatpush1.msra.mxu0 0.0
  %1432 = vmatprep.subr.mxu0 0.0
  %1433 = vmatpush1.msra.mxu0 0.0
  %1434 = vmatprep.subr.mxu0 0.0
  %1435 = vmatpush1.msra.mxu0 0.0
  %1436 = vmatprep.subr.mxu0 0.0
  %1437 = vmatpush1.msra.mxu0 0.0
  %1438 = vmatprep.subr.mxu0 0.0
  %1439 = vmatpush1.msra.mxu0 0.0
  %1440 = vmatprep.subr.mxu0 0.0
  %1441 = vmatpush1.msra.mxu0 0.0
  %1442 = vmatprep.subr.mxu0 0.0
  %1443 = vmatpush1.msra.mxu0 0.0
  %1444 = vmatprep.mubr.f32.mxu0 0.0
  %v1445 = vand.u32 %v1373, 4294901760
  %v1446 = vsub.f32 %v1373, %v1445
  %v1447 = vand.u32 %v1446, 4294901760
  %v1448 = vsub.f32 %v1446, %v1447
  %v1449 = vand.u32 %v1448, 4294901760
  %1450 = vmatmul.mubr.f32.gmra.mrb[0].mxu0 %v1449
  %v1451 = vpop.f32.mrb[0].mxu0
  %v1452 = vadd.f32 0.0, %v1451
  %v1453 = vpop.f32.mrb[0].mxu0
  %1454 = vdwg.mxu0
  %1455 = vmatprep.subr.mxu0 0.0
  %v1456 = vand.u32 %v1359, 4294901760
  %v1457 = vsub.f32 %v1359, %v1456
  %v1458 = vand.u32 %v1457, 4294901760
  %v1459 = vsub.f32 %v1457, %v1458
  %v1460 = vand.u32 %v1459, 4294901760
  %1461 = vmatpush1.msra.mxu0 %v1460
  %1462 = vmatprep.subr.mxu0 0.0
  %v1463 = vand.u32 %v1362, 4294901760
  %v1464 = vsub.f32 %v1362, %v1463
  %v1465 = vand.u32 %v1464, 4294901760
  %v1466 = vsub.f32 %v1464, %v1465
  %v1467 = vand.u32 %v1466, 4294901760
  %1468 = vmatpush1.msra.mxu0 %v1467
  %1469 = vmatprep.subr.mxu0 0.0
  %v1470 = vand.u32 %v1365, 4294901760
  %v1471 = vsub.f32 %v1365, %v1470
  %v1472 = vand.u32 %v1471, 4294901760
  %v1473 = vsub.f32 %v1471, %v1472
  %v1474 = vand.u32 %v1473, 4294901760
  %1475 = vmatpush1.msra.mxu0 %v1474
  %1476 = vmatprep.subr.mxu0 0.0
  %v1477 = vand.u32 %v1368, 4294901760
  %v1478 = vsub.f32 %v1368, %v1477
  %v1479 = vand.u32 %v1478, 4294901760
  %v1480 = vsub.f32 %v1478, %v1479
  %v1481 = vand.u32 %v1480, 4294901760
  %1482 = vmatpush1.msra.mxu0 %v1481
  %1483 = vmatprep.subr.mxu0 0.0
  %v1484 = vand.u32 %v1371, 4294901760
  %v1485 = vsub.f32 %v1371, %v1484
  %v1486 = vand.u32 %v1485, 4294901760
  %v1487 = vsub.f32 %v1485, %v1486
  %v1488 = vand.u32 %v1487, 4294901760
  %1489 = vmatpush1.msra.mxu0 %v1488
  %1490 = vmatprep.subr.mxu0 0.0
  %1491 = vmatpush1.msra.mxu0 0.0
  %1492 = vmatprep.subr.mxu0 0.0
  %1493 = vmatpush1.msra.mxu0 0.0
  %1494 = vmatprep.subr.mxu0 0.0
  %1495 = vmatpush1.msra.mxu0 0.0
  %1496 = vmatprep.subr.mxu0 0.0
  %1497 = vmatpush1.msra.mxu0 0.0
  %1498 = vmatprep.subr.mxu0 0.0
  %1499 = vmatpush1.msra.mxu0 0.0
  %1500 = vmatprep.subr.mxu0 0.0
  %1501 = vmatpush1.msra.mxu0 0.0
  %1502 = vmatprep.subr.mxu0 0.0
  %1503 = vmatpush1.msra.mxu0 0.0
  %1504 = vmatprep.subr.mxu0 0.0
  %1505 = vmatpush1.msra.mxu0 0.0
  %1506 = vmatprep.subr.mxu0 0.0
  %1507 = vmatpush1.msra.mxu0 0.0
  %1508 = vmatprep.subr.mxu0 0.0
  %1509 = vmatpush1.msra.mxu0 0.0
  %1510 = vmatprep.subr.mxu0 0.0
  %1511 = vmatpush1.msra.mxu0 0.0
  %1512 = vmatprep.subr.mxu0 0.0
  %1513 = vmatpush1.msra.mxu0 0.0
  %1514 = vmatprep.subr.mxu0 0.0
  %1515 = vmatpush1.msra.mxu0 0.0
  %1516 = vmatprep.subr.mxu0 0.0
  %1517 = vmatpush1.msra.mxu0 0.0
  %1518 = vmatprep.subr.mxu0 0.0
  %1519 = vmatpush1.msra.mxu0 0.0
  %1520 = vmatprep.subr.mxu0 0.0
  %1521 = vmatpush1.msra.mxu0 0.0
  %1522 = vmatprep.subr.mxu0 0.0
  %1523 = vmatpush1.msra.mxu0 0.0
  %1524 = vmatprep.subr.mxu0 0.0
  %1525 = vmatpush1.msra.mxu0 0.0
  %1526 = vmatprep.subr.mxu0 0.0
  %1527 = vmatpush1.msra.mxu0 0.0
  %1528 = vmatprep.subr.mxu0 0.0
  %1529 = vmatpush1.msra.mxu0 0.0
  %1530 = vmatprep.subr.mxu0 0.0
  %1531 = vmatpush1.msra.mxu0 0.0
  %1532 = vmatprep.subr.mxu0 0.0
  %1533 = vmatpush1.msra.mxu0 0.0
  %1534 = vmatprep.subr.mxu0 0.0
  %1535 = vmatpush1.msra.mxu0 0.0
  %1536 = vmatprep.subr.mxu0 0.0
  %1537 = vmatpush1.msra.mxu0 0.0
  %1538 = vmatprep.subr.mxu0 0.0
  %1539 = vmatpush1.msra.mxu0 0.0
  %1540 = vmatprep.subr.mxu0 0.0
  %1541 = vmatpush1.msra.mxu0 0.0
  %1542 = vmatprep.subr.mxu0 0.0
  %1543 = vmatpush1.msra.mxu0 0.0
  %1544 = vmatprep.mubr.f32.mxu0 0.0
  %v1545 = vand.u32 %v1373, 4294901760
  %1546 = vmatmul.mubr.f32.gmra.mrb[0].mxu0 %v1545
  %v1547 = vpop.f32.mrb[0].mxu0
  %v1548 = vadd.f32 %v1452, %v1547
  %v1549 = vpop.f32.mrb[0].mxu0
  %1550 = vdwg.mxu0
  %1551 = vmatprep.subr.mxu0 0.0
  %v1552 = vand.u32 %v1359, 4294901760
  %v1553 = vsub.f32 %v1359, %v1552
  %1554 = vmatpush1.msra.mxu0 %v1553
  %1555 = vmatprep.subr.mxu0 0.0
  %v1556 = vand.u32 %v1362, 4294901760
  %v1557 = vsub.f32 %v1362, %v1556
  %1558 = vmatpush1.msra.mxu0 %v1557
  %1559 = vmatprep.subr.mxu0 0.0
  %v1560 = vand.u32 %v1365, 4294901760
  %v1561 = vsub.f32 %v1365, %v1560
  %1562 = vmatpush1.msra.mxu0 %v1561
  %1563 = vmatprep.subr.mxu0 0.0
  %v1564 = vand.u32 %v1368, 4294901760
  %v1565 = vsub.f32 %v1368, %v1564
  %1566 = vmatpush1.msra.mxu0 %v1565
  %1567 = vmatprep.subr.mxu0 0.0
  %v1568 = vand.u32 %v1371, 4294901760
  %v1569 = vsub.f32 %v1371, %v1568
  %1570 = vmatpush1.msra.mxu0 %v1569
  %1571 = vmatprep.subr.mxu0 0.0
  %1572 = vmatpush1.msra.mxu0 0.0
  %1573 = vmatprep.subr.mxu0 0.0
  %1574 = vmatpush1.msra.mxu0 0.0
  %1575 = vmatprep.subr.mxu0 0.0
  %1576 = vmatpush1.msra.mxu0 0.0
  %1577 = vmatprep.subr.mxu0 0.0
  %1578 = vmatpush1.msra.mxu0 0.0
  %1579 = vmatprep.subr.mxu0 0.0
  %1580 = vmatpush1.msra.mxu0 0.0
  %1581 = vmatprep.subr.mxu0 0.0
  %1582 = vmatpush1.msra.mxu0 0.0
  %1583 = vmatprep.subr.mxu0 0.0
  %1584 = vmatpush1.msra.mxu0 0.0
  %1585 = vmatprep.subr.mxu0 0.0
  %1586 = vmatpush1.msra.mxu0 0.0
  %1587 = vmatprep.subr.mxu0 0.0
  %1588 = vmatpush1.msra.mxu0 0.0
  %1589 = vmatprep.subr.mxu0 0.0
  %1590 = vmatpush1.msra.mxu0 0.0
  %1591 = vmatprep.subr.mxu0 0.0
  %1592 = vmatpush1.msra.mxu0 0.0
  %1593 = vmatprep.subr.mxu0 0.0
  %1594 = vmatpush1.msra.mxu0 0.0
  %1595 = vmatprep.subr.mxu0 0.0
  %1596 = vmatpush1.msra.mxu0 0.0
  %1597 = vmatprep.subr.mxu0 0.0
  %1598 = vmatpush1.msra.mxu0 0.0
  %1599 = vmatprep.subr.mxu0 0.0
  %1600 = vmatpush1.msra.mxu0 0.0
  %1601 = vmatprep.subr.mxu0 0.0
  %1602 = vmatpush1.msra.mxu0 0.0
  %1603 = vmatprep.subr.mxu0 0.0
  %1604 = vmatpush1.msra.mxu0 0.0
  %1605 = vmatprep.subr.mxu0 0.0
  %1606 = vmatpush1.msra.mxu0 0.0
  %1607 = vmatprep.subr.mxu0 0.0
  %1608 = vmatpush1.msra.mxu0 0.0
  %1609 = vmatprep.subr.mxu0 0.0
  %1610 = vmatpush1.msra.mxu0 0.0
  %1611 = vmatprep.subr.mxu0 0.0
  %1612 = vmatpush1.msra.mxu0 0.0
  %1613 = vmatprep.subr.mxu0 0.0
  %1614 = vmatpush1.msra.mxu0 0.0
  %1615 = vmatprep.subr.mxu0 0.0
  %1616 = vmatpush1.msra.mxu0 0.0
  %1617 = vmatprep.subr.mxu0 0.0
  %1618 = vmatpush1.msra.mxu0 0.0
  %1619 = vmatprep.subr.mxu0 0.0
  %1620 = vmatpush1.msra.mxu0 0.0
  %1621 = vmatprep.subr.mxu0 0.0
  %1622 = vmatpush1.msra.mxu0 0.0
  %1623 = vmatprep.subr.mxu0 0.0
  %1624 = vmatpush1.msra.mxu0 0.0
  %1625 = vmatprep.mubr.f32.mxu0 0.0
  %v1626 = vand.u32 %v1373, 4294901760
  %v1627 = vsub.f32 %v1373, %v1626
  %1628 = vmatmul.mubr.f32.gmra.mrb[0].mxu0 %v1627
  %v1629 = vpop.f32.mrb[0].mxu0
  %v1630 = vadd.f32 %v1548, %v1629
  %v1631 = vpop.f32.mrb[0].mxu0
  %1632 = vdwg.mxu0
  %1633 = vmatprep.subr.mxu0 0.0
  %v1634 = vand.u32 %v1359, 4294901760
  %1635 = vmatpush1.msra.mxu0 %v1634
  %1636 = vmatprep.subr.mxu0 0.0
  %v1637 = vand.u32 %v1362, 4294901760
  %1638 = vmatpush1.msra.mxu0 %v1637
  %1639 = vmatprep.subr.mxu0 0.0
  %v1640 = vand.u32 %v1365, 4294901760
  %1641 = vmatpush1.msra.mxu0 %v1640
  %1642 = vmatprep.subr.mxu0 0.0
  %v1643 = vand.u32 %v1368, 4294901760
  %1644 = vmatpush1.msra.mxu0 %v1643
  %1645 = vmatprep.subr.mxu0 0.0
  %v1646 = vand.u32 %v1371, 4294901760
  %1647 = vmatpush1.msra.mxu0 %v1646
  %1648 = vmatprep.subr.mxu0 0.0
  %1649 = vmatpush1.msra.mxu0 0.0
  %1650 = vmatprep.subr.mxu0 0.0
  %1651 = vmatpush1.msra.mxu0 0.0
  %1652 = vmatprep.subr.mxu0 0.0
  %1653 = vmatpush1.msra.mxu0 0.0
  %1654 = vmatprep.subr.mxu0 0.0
  %1655 = vmatpush1.msra.mxu0 0.0
  %1656 = vmatprep.subr.mxu0 0.0
  %1657 = vmatpush1.msra.mxu0 0.0
  %1658 = vmatprep.subr.mxu0 0.0
  %1659 = vmatpush1.msra.mxu0 0.0
  %1660 = vmatprep.subr.mxu0 0.0
  %1661 = vmatpush1.msra.mxu0 0.0
  %1662 = vmatprep.subr.mxu0 0.0
  %1663 = vmatpush1.msra.mxu0 0.0
  %1664 = vmatprep.subr.mxu0 0.0
  %1665 = vmatpush1.msra.mxu0 0.0
  %1666 = vmatprep.subr.mxu0 0.0
  %1667 = vmatpush1.msra.mxu0 0.0
  %1668 = vmatprep.subr.mxu0 0.0
  %1669 = vmatpush1.msra.mxu0 0.0
  %1670 = vmatprep.subr.mxu0 0.0
  %1671 = vmatpush1.msra.mxu0 0.0
  %1672 = vmatprep.subr.mxu0 0.0
  %1673 = vmatpush1.msra.mxu0 0.0
  %1674 = vmatprep.subr.mxu0 0.0
  %1675 = vmatpush1.msra.mxu0 0.0
  %1676 = vmatprep.subr.mxu0 0.0
  %1677 = vmatpush1.msra.mxu0 0.0
  %1678 = vmatprep.subr.mxu0 0.0
  %1679 = vmatpush1.msra.mxu0 0.0
  %1680 = vmatprep.subr.mxu0 0.0
  %1681 = vmatpush1.msra.mxu0 0.0
  %1682 = vmatprep.subr.mxu0 0.0
  %1683 = vmatpush1.msra.mxu0 0.0
  %1684 = vmatprep.subr.mxu0 0.0
  %1685 = vmatpush1.msra.mxu0 0.0
  %1686 = vmatprep.subr.mxu0 0.0
  %1687 = vmatpush1.msra.mxu0 0.0
  %1688 = vmatprep.subr.mxu0 0.0
  %1689 = vmatpush1.msra.mxu0 0.0
  %1690 = vmatprep.subr.mxu0 0.0
  %1691 = vmatpush1.msra.mxu0 0.0
  %1692 = vmatprep.subr.mxu0 0.0
  %1693 = vmatpush1.msra.mxu0 0.0
  %1694 = vmatprep.subr.mxu0 0.0
  %1695 = vmatpush1.msra.mxu0 0.0
  %1696 = vmatprep.subr.mxu0 0.0
  %1697 = vmatpush1.msra.mxu0 0.0
  %1698 = vmatprep.subr.mxu0 0.0
  %1699 = vmatpush1.msra.mxu0 0.0
  %1700 = vmatprep.subr.mxu0 0.0
  %1701 = vmatpush1.msra.mxu0 0.0
  %1702 = vmatprep.mubr.f32.mxu0 0.0
  %v1703 = vand.u32 %v1373, 4294901760
  %v1704 = vsub.f32 %v1373, %v1703
  %v1705 = vand.u32 %v1704, 4294901760
  %1706 = vmatmul.mubr.f32.gmra.mrb[0].mxu0 %v1705
  %v1707 = vpop.f32.mrb[0].mxu0
  %v1708 = vadd.f32 %v1630, %v1707
  %v1709 = vpop.f32.mrb[0].mxu0
  %1710 = vdwg.mxu0
  %1711 = vmatprep.subr.mxu0 0.0
  %v1712 = vand.u32 %v1359, 4294901760
  %v1713 = vsub.f32 %v1359, %v1712
  %v1714 = vand.u32 %v1713, 4294901760
  %1715 = vmatpush1.msra.mxu0 %v1714
  %1716 = vmatprep.subr.mxu0 0.0
  %v1717 = vand.u32 %v1362, 4294901760
  %v1718 = vsub.f32 %v1362, %v1717
  %v1719 = vand.u32 %v1718, 4294901760
  %1720 = vmatpush1.msra.mxu0 %v1719
  %1721 = vmatprep.subr.mxu0 0.0
  %v1722 = vand.u32 %v1365, 4294901760
  %v1723 = vsub.f32 %v1365, %v1722
  %v1724 = vand.u32 %v1723, 4294901760
  %1725 = vmatpush1.msra.mxu0 %v1724
  %1726 = vmatprep.subr.mxu0 0.0
  %v1727 = vand.u32 %v1368, 4294901760
  %v1728 = vsub.f32 %v1368, %v1727
  %v1729 = vand.u32 %v1728, 4294901760
  %1730 = vmatpush1.msra.mxu0 %v1729
  %1731 = vmatprep.subr.mxu0 0.0
  %v1732 = vand.u32 %v1371, 4294901760
  %v1733 = vsub.f32 %v1371, %v1732
  %v1734 = vand.u32 %v1733, 4294901760
  %1735 = vmatpush1.msra.mxu0 %v1734
  %1736 = vmatprep.subr.mxu0 0.0
  %1737 = vmatpush1.msra.mxu0 0.0
  %1738 = vmatprep.subr.mxu0 0.0
  %1739 = vmatpush1.msra.mxu0 0.0
  %1740 = vmatprep.subr.mxu0 0.0
  %1741 = vmatpush1.msra.mxu0 0.0
  %1742 = vmatprep.subr.mxu0 0.0
  %1743 = vmatpush1.msra.mxu0 0.0
  %1744 = vmatprep.subr.mxu0 0.0
  %1745 = vmatpush1.msra.mxu0 0.0
  %1746 = vmatprep.subr.mxu0 0.0
  %1747 = vmatpush1.msra.mxu0 0.0
  %1748 = vmatprep.subr.mxu0 0.0
  %1749 = vmatpush1.msra.mxu0 0.0
  %1750 = vmatprep.subr.mxu0 0.0
  %1751 = vmatpush1.msra.mxu0 0.0
  %1752 = vmatprep.subr.mxu0 0.0
  %1753 = vmatpush1.msra.mxu0 0.0
  %1754 = vmatprep.subr.mxu0 0.0
  %1755 = vmatpush1.msra.mxu0 0.0
  %1756 = vmatprep.subr.mxu0 0.0
  %1757 = vmatpush1.msra.mxu0 0.0
  %1758 = vmatprep.subr.mxu0 0.0
  %1759 = vmatpush1.msra.mxu0 0.0
  %1760 = vmatprep.subr.mxu0 0.0
  %1761 = vmatpush1.msra.mxu0 0.0
  %1762 = vmatprep.subr.mxu0 0.0
  %1763 = vmatpush1.msra.mxu0 0.0
  %1764 = vmatprep.subr.mxu0 0.0
  %1765 = vmatpush1.msra.mxu0 0.0
  %1766 = vmatprep.subr.mxu0 0.0
  %1767 = vmatpush1.msra.mxu0 0.0
  %1768 = vmatprep.subr.mxu0 0.0
  %1769 = vmatpush1.msra.mxu0 0.0
  %1770 = vmatprep.subr.mxu0 0.0
  %1771 = vmatpush1.msra.mxu0 0.0
  %1772 = vmatprep.subr.mxu0 0.0
  %1773 = vmatpush1.msra.mxu0 0.0
  %1774 = vmatprep.subr.mxu0 0.0
  %1775 = vmatpush1.msra.mxu0 0.0
  %1776 = vmatprep.subr.mxu0 0.0
  %1777 = vmatpush1.msra.mxu0 0.0
  %1778 = vmatprep.subr.mxu0 0.0
  %1779 = vmatpush1.msra.mxu0 0.0
  %1780 = vmatprep.subr.mxu0 0.0
  %1781 = vmatpush1.msra.mxu0 0.0
  %1782 = vmatprep.subr.mxu0 0.0
  %1783 = vmatpush1.msra.mxu0 0.0
  %1784 = vmatprep.subr.mxu0 0.0
  %1785 = vmatpush1.msra.mxu0 0.0
  %1786 = vmatprep.subr.mxu0 0.0
  %1787 = vmatpush1.msra.mxu0 0.0
  %1788 = vmatprep.subr.mxu0 0.0
  %1789 = vmatpush1.msra.mxu0 0.0
  %1790 = vmatprep.mubr.f32.mxu0 0.0
  %v1791 = vand.u32 %v1373, 4294901760
  %1792 = vmatmul.mubr.f32.gmra.mrb[0].mxu0 %v1791
  %v1793 = vpop.f32.mrb[0].mxu0
  %v1794 = vadd.f32 %v1708, %v1793
  %v1795 = vpop.f32.mrb[0].mxu0
  %1796 = vdwg.mxu0
  %1797 = vmatprep.subr.mxu0 0.0
  %v1798 = vand.u32 %v1359, 4294901760
  %1799 = vmatpush1.msra.mxu0 %v1798
  %1800 = vmatprep.subr.mxu0 0.0
  %v1801 = vand.u32 %v1362, 4294901760
  %1802 = vmatpush1.msra.mxu0 %v1801
  %1803 = vmatprep.subr.mxu0 0.0
  %v1804 = vand.u32 %v1365, 4294901760
  %1805 = vmatpush1.msra.mxu0 %v1804
  %1806 = vmatprep.subr.mxu0 0.0
  %v1807 = vand.u32 %v1368, 4294901760
  %1808 = vmatpush1.msra.mxu0 %v1807
  %1809 = vmatprep.subr.mxu0 0.0
  %v1810 = vand.u32 %v1371, 4294901760
  %1811 = vmatpush1.msra.mxu0 %v1810
  %1812 = vmatprep.subr.mxu0 0.0
  %1813 = vmatpush1.msra.mxu0 0.0
  %1814 = vmatprep.subr.mxu0 0.0
  %1815 = vmatpush1.msra.mxu0 0.0
  %1816 = vmatprep.subr.mxu0 0.0
  %1817 = vmatpush1.msra.mxu0 0.0
  %1818 = vmatprep.subr.mxu0 0.0
  %1819 = vmatpush1.msra.mxu0 0.0
  %1820 = vmatprep.subr.mxu0 0.0
  %1821 = vmatpush1.msra.mxu0 0.0
  %1822 = vmatprep.subr.mxu0 0.0
  %1823 = vmatpush1.msra.mxu0 0.0
  %1824 = vmatprep.subr.mxu0 0.0
  %1825 = vmatpush1.msra.mxu0 0.0
  %1826 = vmatprep.subr.mxu0 0.0
  %1827 = vmatpush1.msra.mxu0 0.0
  %1828 = vmatprep.subr.mxu0 0.0
  %1829 = vmatpush1.msra.mxu0 0.0
  %1830 = vmatprep.subr.mxu0 0.0
  %1831 = vmatpush1.msra.mxu0 0.0
  %1832 = vmatprep.subr.mxu0 0.0
  %1833 = vmatpush1.msra.mxu0 0.0
  %1834 = vmatprep.subr.mxu0 0.0
  %1835 = vmatpush1.msra.mxu0 0.0
  %1836 = vmatprep.subr.mxu0 0.0
  %1837 = vmatpush1.msra.mxu0 0.0
  %1838 = vmatprep.subr.mxu0 0.0
  %1839 = vmatpush1.msra.mxu0 0.0
  %1840 = vmatprep.subr.mxu0 0.0
  %1841 = vmatpush1.msra.mxu0 0.0
  %1842 = vmatprep.subr.mxu0 0.0
  %1843 = vmatpush1.msra.mxu0 0.0
  %1844 = vmatprep.subr.mxu0 0.0
  %1845 = vmatpush1.msra.mxu0 0.0
  %1846 = vmatprep.subr.mxu0 0.0
  %1847 = vmatpush1.msra.mxu0 0.0
  %1848 = vmatprep.subr.mxu0 0.0
  %1849 = vmatpush1.msra.mxu0 0.0
  %1850 = vmatprep.subr.mxu0 0.0
  %1851 = vmatpush1.msra.mxu0 0.0
  %1852 = vmatprep.subr.mxu0 0.0
  %1853 = vmatpush1.msra.mxu0 0.0
  %1854 = vmatprep.subr.mxu0 0.0
  %1855 = vmatpush1.msra.mxu0 0.0
  %1856 = vmatprep.subr.mxu0 0.0
  %1857 = vmatpush1.msra.mxu0 0.0
  %1858 = vmatprep.subr.mxu0 0.0
  %1859 = vmatpush1.msra.mxu0 0.0
  %1860 = vmatprep.subr.mxu0 0.0
  %1861 = vmatpush1.msra.mxu0 0.0
  %1862 = vmatprep.subr.mxu0 0.0
  %1863 = vmatpush1.msra.mxu0 0.0
  %1864 = vmatprep.subr.mxu0 0.0
  %1865 = vmatpush1.msra.mxu0 0.0
  %1866 = vmatprep.mubr.f32.mxu0 0.0
  %v1867 = vand.u32 %v1373, 4294901760
  %1868 = vmatmul.mubr.f32.gmra.mrb[0].mxu0 %v1867
  %v1869 = vpop.f32.mrb[0].mxu0
  %v1870 = vadd.f32 %v1794, %v1869
  %v1871 = vpop.f32.mrb[0].mxu0
  %1872 = vdwg.mxu0
  %v1873 = vrcp.pop 400.0
  %v1874 = vmul.f32 %v1870, %v1873
  %vm1875 = vcmask 31744
  %v1877 = vsel %vm1875, %v1351, 0
  %v1880 = vsel %vm1875, %v1352, 0
  %v1883 = vsel %vm1875, %v1353, 0
  %v1886 = vsel %vm1875, %v1354, 0
  %v1889 = vsel %vm1875, %v1355, 0
  %vm1891 = vcmask 1043456
  %v1893 = vsel %vm1891, %v1874, 0
  %1895 = vmatprep.subr.mxu0 0.0
  %v1896 = vand.u32 %v1893, 4294901760
  %1897 = vmatpush1.msra.mxu0 %v1896
  %1898 = vmatprep.subr.mxu0 0.0
  %1899 = vmatpush1.msra.mxu0 0.0
  %1900 = vmatprep.subr.mxu0 0.0
  %1901 = vmatpush1.msra.mxu0 0.0
  %1902 = vmatprep.subr.mxu0 0.0
  %1903 = vmatpush1.msra.mxu0 0.0
  %1904 = vmatprep.subr.mxu0 0.0
  %1905 = vmatpush1.msra.mxu0 0.0
  %1906 = vmatprep.subr.mxu0 0.0
  %1907 = vmatpush1.msra.mxu0 0.0
  %1908 = vmatprep.subr.mxu0 0.0
  %1909 = vmatpush1.msra.mxu0 0.0
  %1910 = vmatprep.subr.mxu0 0.0
  %1911 = vmatpush1.msra.mxu0 0.0
  %1912 = vmatprep.subr.mxu0 0.0
  %1913 = vmatpush1.msra.mxu0 0.0
  %1914 = vmatprep.subr.mxu0 0.0
  %1915 = vmatpush1.msra.mxu0 0.0
  %1916 = vmatprep.subr.mxu0 0.0
  %1917 = vmatpush1.msra.mxu0 0.0
  %1918 = vmatprep.subr.mxu0 0.0
  %1919 = vmatpush1.msra.mxu0 0.0
  %1920 = vmatprep.subr.mxu0 0.0
  %1921 = vmatpush1.msra.mxu0 0.0
  %1922 = vmatprep.subr.mxu0 0.0
  %1923 = vmatpush1.msra.mxu0 0.0
  %1924 = vmatprep.subr.mxu0 0.0
  %1925 = vmatpush1.msra.mxu0 0.0
  %1926 = vmatprep.subr.mxu0 0.0
  %1927 = vmatpush1.msra.mxu0 0.0
  %1928 = vmatprep.subr.mxu0 0.0
  %1929 = vmatpush1.msra.mxu0 0.0
  %1930 = vmatprep.subr.mxu0 0.0
  %1931 = vmatpush1.msra.mxu0 0.0
  %1932 = vmatprep.subr.mxu0 0.0
  %1933 = vmatpush1.msra.mxu0 0.0
  %1934 = vmatprep.subr.mxu0 0.0
  %1935 = vmatpush1.msra.mxu0 0.0
  %1936 = vmatprep.subr.mxu0 0.0
  %1937 = vmatpush1.msra.mxu0 0.0
  %1938 = vmatprep.subr.mxu0 0.0
  %1939 = vmatpush1.msra.mxu0 0.0
  %1940 = vmatprep.subr.mxu0 0.0
  %1941 = vmatpush1.msra.mxu0 0.0
  %1942 = vmatprep.subr.mxu0 0.0
  %1943 = vmatpush1.msra.mxu0 0.0
  %1944 = vmatprep.subr.mxu0 0.0
  %1945 = vmatpush1.msra.mxu0 0.0
  %1946 = vmatprep.subr.mxu0 0.0
  %1947 = vmatpush1.msra.mxu0 0.0
  %1948 = vmatprep.subr.mxu0 0.0
  %1949 = vmatpush1.msra.mxu0 0.0
  %1950 = vmatprep.subr.mxu0 0.0
  %1951 = vmatpush1.msra.mxu0 0.0
  %1952 = vmatprep.subr.mxu0 0.0
  %1953 = vmatpush1.msra.mxu0 0.0
  %1954 = vmatprep.subr.mxu0 0.0
  %1955 = vmatpush1.msra.mxu0 0.0
  %1956 = vmatprep.subr.mxu0 0.0
  %1957 = vmatpush1.msra.mxu0 0.0
  %1958 = vmatprep.subr.mxu0 0.0
  %1959 = vmatpush1.msra.mxu0 0.0
  %1960 = vmatprep.mubr.f32.mxu0 0.0
  %v1961 = vand.u32 %v1877, 4294901760
  %v1962 = vsub.f32 %v1877, %v1961
  %v1963 = vand.u32 %v1962, 4294901760
  %v1964 = vsub.f32 %v1962, %v1963
  %v1965 = vand.u32 %v1964, 4294901760
  %1966 = vmatmul.mubr.f32.gmra.mrb[0].mxu0 %v1965
  %v1967 = vpop.f32.mrb[0].mxu0
  %v1968 = vadd.f32 0.0, %v1967
  %v1969 = vpop.f32.mrb[0].mxu0
  %1970 = vmatprep.mubr.f32.mxu0 0.0
  %v1971 = vand.u32 %v1880, 4294901760
  %v1972 = vsub.f32 %v1880, %v1971
  %v1973 = vand.u32 %v1972, 4294901760
  %v1974 = vsub.f32 %v1972, %v1973
  %v1975 = vand.u32 %v1974, 4294901760
  %1976 = vmatmul.mubr.f32.gmra.mrb[0].mxu0 %v1975
  %v1977 = vpop.f32.mrb[0].mxu0
  %v1978 = vadd.f32 0.0, %v1977
  %v1979 = vpop.f32.mrb[0].mxu0
  %1980 = vmatprep.mubr.f32.mxu0 0.0
  %v1981 = vand.u32 %v1883, 4294901760
  %v1982 = vsub.f32 %v1883, %v1981
  %v1983 = vand.u32 %v1982, 4294901760
  %v1984 = vsub.f32 %v1982, %v1983
  %v1985 = vand.u32 %v1984, 4294901760
  %1986 = vmatmul.mubr.f32.gmra.mrb[0].mxu0 %v1985
  %v1987 = vpop.f32.mrb[0].mxu0
  %v1988 = vadd.f32 0.0, %v1987
  %v1989 = vpop.f32.mrb[0].mxu0
  %1990 = vmatprep.mubr.f32.mxu0 0.0
  %v1991 = vand.u32 %v1886, 4294901760
  %v1992 = vsub.f32 %v1886, %v1991
  %v1993 = vand.u32 %v1992, 4294901760
  %v1994 = vsub.f32 %v1992, %v1993
  %v1995 = vand.u32 %v1994, 4294901760
  %1996 = vmatmul.mubr.f32.gmra.mrb[0].mxu0 %v1995
  %v1997 = vpop.f32.mrb[0].mxu0
  %v1998 = vadd.f32 0.0, %v1997
  %v1999 = vpop.f32.mrb[0].mxu0
  %2000 = vmatprep.mubr.f32.mxu0 0.0
  %v2001 = vand.u32 %v1889, 4294901760
  %v2002 = vsub.f32 %v1889, %v2001
  %v2003 = vand.u32 %v2002, 4294901760
  %v2004 = vsub.f32 %v2002, %v2003
  %v2005 = vand.u32 %v2004, 4294901760
  %2006 = vmatmul.mubr.f32.gmra.mrb[0].mxu0 %v2005
  %v2007 = vpop.f32.mrb[0].mxu0
  %v2008 = vadd.f32 0.0, %v2007
  %v2009 = vpop.f32.mrb[0].mxu0
  %2010 = vdwg.mxu0
  %2011 = vmatprep.subr.mxu0 0.0
  %v2012 = vand.u32 %v1893, 4294901760
  %v2013 = vsub.f32 %v1893, %v2012
  %v2014 = vand.u32 %v2013, 4294901760
  %v2015 = vsub.f32 %v2013, %v2014
  %v2016 = vand.u32 %v2015, 4294901760
  %2017 = vmatpush1.msra.mxu0 %v2016
  %2018 = vmatprep.subr.mxu0 0.0
  %2019 = vmatpush1.msra.mxu0 0.0
  %2020 = vmatprep.subr.mxu0 0.0
  %2021 = vmatpush1.msra.mxu0 0.0
  %2022 = vmatprep.subr.mxu0 0.0
  %2023 = vmatpush1.msra.mxu0 0.0
  %2024 = vmatprep.subr.mxu0 0.0
  %2025 = vmatpush1.msra.mxu0 0.0
  %2026 = vmatprep.subr.mxu0 0.0
  %2027 = vmatpush1.msra.mxu0 0.0
  %2028 = vmatprep.subr.mxu0 0.0
  %2029 = vmatpush1.msra.mxu0 0.0
  %2030 = vmatprep.subr.mxu0 0.0
  %2031 = vmatpush1.msra.mxu0 0.0
  %2032 = vmatprep.subr.mxu0 0.0
  %2033 = vmatpush1.msra.mxu0 0.0
  %2034 = vmatprep.subr.mxu0 0.0
  %2035 = vmatpush1.msra.mxu0 0.0
  %2036 = vmatprep.subr.mxu0 0.0
  %2037 = vmatpush1.msra.mxu0 0.0
  %2038 = vmatprep.subr.mxu0 0.0
  %2039 = vmatpush1.msra.mxu0 0.0
  %2040 = vmatprep.subr.mxu0 0.0
  %2041 = vmatpush1.msra.mxu0 0.0
  %2042 = vmatprep.subr.mxu0 0.0
  %2043 = vmatpush1.msra.mxu0 0.0
  %2044 = vmatprep.subr.mxu0 0.0
  %2045 = vmatpush1.msra.mxu0 0.0
  %2046 = vmatprep.subr.mxu0 0.0
  %2047 = vmatpush1.msra.mxu0 0.0
  %2048 = vmatprep.subr.mxu0 0.0
  %2049 = vmatpush1.msra.mxu0 0.0
  %2050 = vmatprep.subr.mxu0 0.0
  %2051 = vmatpush1.msra.mxu0 0.0
  %2052 = vmatprep.subr.mxu0 0.0
  %2053 = vmatpush1.msra.mxu0 0.0
  %2054 = vmatprep.subr.mxu0 0.0
  %2055 = vmatpush1.msra.mxu0 0.0
  %2056 = vmatprep.subr.mxu0 0.0
  %2057 = vmatpush1.msra.mxu0 0.0
  %2058 = vmatprep.subr.mxu0 0.0
  %2059 = vmatpush1.msra.mxu0 0.0
  %2060 = vmatprep.subr.mxu0 0.0
  %2061 = vmatpush1.msra.mxu0 0.0
  %2062 = vmatprep.subr.mxu0 0.0
  %2063 = vmatpush1.msra.mxu0 0.0
  %2064 = vmatprep.subr.mxu0 0.0
  %2065 = vmatpush1.msra.mxu0 0.0
  %2066 = vmatprep.subr.mxu0 0.0
  %2067 = vmatpush1.msra.mxu0 0.0
  %2068 = vmatprep.subr.mxu0 0.0
  %2069 = vmatpush1.msra.mxu0 0.0
  %2070 = vmatprep.subr.mxu0 0.0
  %2071 = vmatpush1.msra.mxu0 0.0
  %2072 = vmatprep.subr.mxu0 0.0
  %2073 = vmatpush1.msra.mxu0 0.0
  %2074 = vmatprep.subr.mxu0 0.0
  %2075 = vmatpush1.msra.mxu0 0.0
  %2076 = vmatprep.subr.mxu0 0.0
  %2077 = vmatpush1.msra.mxu0 0.0
  %2078 = vmatprep.subr.mxu0 0.0
  %2079 = vmatpush1.msra.mxu0 0.0
  %2080 = vmatprep.mubr.f32.mxu0 0.0
  %v2081 = vand.u32 %v1877, 4294901760
  %2082 = vmatmul.mubr.f32.gmra.mrb[0].mxu0 %v2081
  %v2083 = vpop.f32.mrb[0].mxu0
  %v2084 = vadd.f32 %v1968, %v2083
  %v2085 = vpop.f32.mrb[0].mxu0
  %2086 = vmatprep.mubr.f32.mxu0 0.0
  %v2087 = vand.u32 %v1880, 4294901760
  %2088 = vmatmul.mubr.f32.gmra.mrb[0].mxu0 %v2087
  %v2089 = vpop.f32.mrb[0].mxu0
  %v2090 = vadd.f32 %v1978, %v2089
  %v2091 = vpop.f32.mrb[0].mxu0
  %2092 = vmatprep.mubr.f32.mxu0 0.0
  %v2093 = vand.u32 %v1883, 4294901760
  %2094 = vmatmul.mubr.f32.gmra.mrb[0].mxu0 %v2093
  %v2095 = vpop.f32.mrb[0].mxu0
  %v2096 = vadd.f32 %v1988, %v2095
  %v2097 = vpop.f32.mrb[0].mxu0
  %2098 = vmatprep.mubr.f32.mxu0 0.0
  %v2099 = vand.u32 %v1886, 4294901760
  %2100 = vmatmul.mubr.f32.gmra.mrb[0].mxu0 %v2099
  %v2101 = vpop.f32.mrb[0].mxu0
  %v2102 = vadd.f32 %v1998, %v2101
  %v2103 = vpop.f32.mrb[0].mxu0
  %2104 = vmatprep.mubr.f32.mxu0 0.0
  %v2105 = vand.u32 %v1889, 4294901760
  %2106 = vmatmul.mubr.f32.gmra.mrb[0].mxu0 %v2105
  %v2107 = vpop.f32.mrb[0].mxu0
  %v2108 = vadd.f32 %v2008, %v2107
  %v2109 = vpop.f32.mrb[0].mxu0
  %2110 = vdwg.mxu0
  %2111 = vmatprep.subr.mxu0 0.0
  %v2112 = vand.u32 %v1893, 4294901760
  %v2113 = vsub.f32 %v1893, %v2112
  %2114 = vmatpush1.msra.mxu0 %v2113
  %2115 = vmatprep.subr.mxu0 0.0
  %2116 = vmatpush1.msra.mxu0 0.0
  %2117 = vmatprep.subr.mxu0 0.0
  %2118 = vmatpush1.msra.mxu0 0.0
  %2119 = vmatprep.subr.mxu0 0.0
  %2120 = vmatpush1.msra.mxu0 0.0
  %2121 = vmatprep.subr.mxu0 0.0
  %2122 = vmatpush1.msra.mxu0 0.0
  %2123 = vmatprep.subr.mxu0 0.0
  %2124 = vmatpush1.msra.mxu0 0.0
  %2125 = vmatprep.subr.mxu0 0.0
  %2126 = vmatpush1.msra.mxu0 0.0
  %2127 = vmatprep.subr.mxu0 0.0
  %2128 = vmatpush1.msra.mxu0 0.0
  %2129 = vmatprep.subr.mxu0 0.0
  %2130 = vmatpush1.msra.mxu0 0.0
  %2131 = vmatprep.subr.mxu0 0.0
  %2132 = vmatpush1.msra.mxu0 0.0
  %2133 = vmatprep.subr.mxu0 0.0
  %2134 = vmatpush1.msra.mxu0 0.0
  %2135 = vmatprep.subr.mxu0 0.0
  %2136 = vmatpush1.msra.mxu0 0.0
  %2137 = vmatprep.subr.mxu0 0.0
  %2138 = vmatpush1.msra.mxu0 0.0
  %2139 = vmatprep.subr.mxu0 0.0
  %2140 = vmatpush1.msra.mxu0 0.0
  %2141 = vmatprep.subr.mxu0 0.0
  %2142 = vmatpush1.msra.mxu0 0.0
  %2143 = vmatprep.subr.mxu0 0.0
  %2144 = vmatpush1.msra.mxu0 0.0
  %2145 = vmatprep.subr.mxu0 0.0
  %2146 = vmatpush1.msra.mxu0 0.0
  %2147 = vmatprep.subr.mxu0 0.0
  %2148 = vmatpush1.msra.mxu0 0.0
  %2149 = vmatprep.subr.mxu0 0.0
  %2150 = vmatpush1.msra.mxu0 0.0
  %2151 = vmatprep.subr.mxu0 0.0
  %2152 = vmatpush1.msra.mxu0 0.0
  %2153 = vmatprep.subr.mxu0 0.0
  %2154 = vmatpush1.msra.mxu0 0.0
  %2155 = vmatprep.subr.mxu0 0.0
  %2156 = vmatpush1.msra.mxu0 0.0
  %2157 = vmatprep.subr.mxu0 0.0
  %2158 = vmatpush1.msra.mxu0 0.0
  %2159 = vmatprep.subr.mxu0 0.0
  %2160 = vmatpush1.msra.mxu0 0.0
  %2161 = vmatprep.subr.mxu0 0.0
  %2162 = vmatpush1.msra.mxu0 0.0
  %2163 = vmatprep.subr.mxu0 0.0
  %2164 = vmatpush1.msra.mxu0 0.0
  %2165 = vmatprep.subr.mxu0 0.0
  %2166 = vmatpush1.msra.mxu0 0.0
  %2167 = vmatprep.subr.mxu0 0.0
  %2168 = vmatpush1.msra.mxu0 0.0
  %2169 = vmatprep.subr.mxu0 0.0
  %2170 = vmatpush1.msra.mxu0 0.0
  %2171 = vmatprep.subr.mxu0 0.0
  %2172 = vmatpush1.msra.mxu0 0.0
  %2173 = vmatprep.subr.mxu0 0.0
  %2174 = vmatpush1.msra.mxu0 0.0
  %2175 = vmatprep.subr.mxu0 0.0
  %2176 = vmatpush1.msra.mxu0 0.0
  %2177 = vmatprep.mubr.f32.mxu0 0.0
  %v2178 = vand.u32 %v1877, 4294901760
  %v2179 = vsub.f32 %v1877, %v2178
  %2180 = vmatmul.mubr.f32.gmra.mrb[0].mxu0 %v2179
  %v2181 = vpop.f32.mrb[0].mxu0
  %v2182 = vadd.f32 %v2084, %v2181
  %v2183 = vpop.f32.mrb[0].mxu0
  %2184 = vmatprep.mubr.f32.mxu0 0.0
  %v2185 = vand.u32 %v1880, 4294901760
  %v2186 = vsub.f32 %v1880, %v2185
  %2187 = vmatmul.mubr.f32.gmra.mrb[0].mxu0 %v2186
  %v2188 = vpop.f32.mrb[0].mxu0
  %v2189 = vadd.f32 %v2090, %v2188
  %v2190 = vpop.f32.mrb[0].mxu0
  %2191 = vmatprep.mubr.f32.mxu0 0.0
  %v2192 = vand.u32 %v1883, 4294901760
  %v2193 = vsub.f32 %v1883, %v2192
  %2194 = vmatmul.mubr.f32.gmra.mrb[0].mxu0 %v2193
  %v2195 = vpop.f32.mrb[0].mxu0
  %v2196 = vadd.f32 %v2096, %v2195
  %v2197 = vpop.f32.mrb[0].mxu0
  %2198 = vmatprep.mubr.f32.mxu0 0.0
  %v2199 = vand.u32 %v1886, 4294901760
  %v2200 = vsub.f32 %v1886, %v2199
  %2201 = vmatmul.mubr.f32.gmra.mrb[0].mxu0 %v2200
  %v2202 = vpop.f32.mrb[0].mxu0
  %v2203 = vadd.f32 %v2102, %v2202
  %v2204 = vpop.f32.mrb[0].mxu0
  %2205 = vmatprep.mubr.f32.mxu0 0.0
  %v2206 = vand.u32 %v1889, 4294901760
  %v2207 = vsub.f32 %v1889, %v2206
  %2208 = vmatmul.mubr.f32.gmra.mrb[0].mxu0 %v2207
  %v2209 = vpop.f32.mrb[0].mxu0
  %v2210 = vadd.f32 %v2108, %v2209
  %v2211 = vpop.f32.mrb[0].mxu0
  %2212 = vdwg.mxu0
  %2213 = vmatprep.subr.mxu0 0.0
  %v2214 = vand.u32 %v1893, 4294901760
  %2215 = vmatpush1.msra.mxu0 %v2214
  %2216 = vmatprep.subr.mxu0 0.0
  %2217 = vmatpush1.msra.mxu0 0.0
  %2218 = vmatprep.subr.mxu0 0.0
  %2219 = vmatpush1.msra.mxu0 0.0
  %2220 = vmatprep.subr.mxu0 0.0
  %2221 = vmatpush1.msra.mxu0 0.0
  %2222 = vmatprep.subr.mxu0 0.0
  %2223 = vmatpush1.msra.mxu0 0.0
  %2224 = vmatprep.subr.mxu0 0.0
  %2225 = vmatpush1.msra.mxu0 0.0
  %2226 = vmatprep.subr.mxu0 0.0
  %2227 = vmatpush1.msra.mxu0 0.0
  %2228 = vmatprep.subr.mxu0 0.0
  %2229 = vmatpush1.msra.mxu0 0.0
  %2230 = vmatprep.subr.mxu0 0.0
  %2231 = vmatpush1.msra.mxu0 0.0
  %2232 = vmatprep.subr.mxu0 0.0
  %2233 = vmatpush1.msra.mxu0 0.0
  %2234 = vmatprep.subr.mxu0 0.0
  %2235 = vmatpush1.msra.mxu0 0.0
  %2236 = vmatprep.subr.mxu0 0.0
  %2237 = vmatpush1.msra.mxu0 0.0
  %2238 = vmatprep.subr.mxu0 0.0
  %2239 = vmatpush1.msra.mxu0 0.0
  %2240 = vmatprep.subr.mxu0 0.0
  %2241 = vmatpush1.msra.mxu0 0.0
  %2242 = vmatprep.subr.mxu0 0.0
  %2243 = vmatpush1.msra.mxu0 0.0
  %2244 = vmatprep.subr.mxu0 0.0
  %2245 = vmatpush1.msra.mxu0 0.0
  %2246 = vmatprep.subr.mxu0 0.0
  %2247 = vmatpush1.msra.mxu0 0.0
  %2248 = vmatprep.subr.mxu0 0.0
  %2249 = vmatpush1.msra.mxu0 0.0
  %2250 = vmatprep.subr.mxu0 0.0
  %2251 = vmatpush1.msra.mxu0 0.0
  %2252 = vmatprep.subr.mxu0 0.0
  %2253 = vmatpush1.msra.mxu0 0.0
  %2254 = vmatprep.subr.mxu0 0.0
  %2255 = vmatpush1.msra.mxu0 0.0
  %2256 = vmatprep.subr.mxu0 0.0
  %2257 = vmatpush1.msra.mxu0 0.0
  %2258 = vmatprep.subr.mxu0 0.0
  %2259 = vmatpush1.msra.mxu0 0.0
  %2260 = vmatprep.subr.mxu0 0.0
  %2261 = vmatpush1.msra.mxu0 0.0
  %2262 = vmatprep.subr.mxu0 0.0
  %2263 = vmatpush1.msra.mxu0 0.0
  %2264 = vmatprep.subr.mxu0 0.0
  %2265 = vmatpush1.msra.mxu0 0.0
  %2266 = vmatprep.subr.mxu0 0.0
  %2267 = vmatpush1.msra.mxu0 0.0
  %2268 = vmatprep.subr.mxu0 0.0
  %2269 = vmatpush1.msra.mxu0 0.0
  %2270 = vmatprep.subr.mxu0 0.0
  %2271 = vmatpush1.msra.mxu0 0.0
  %2272 = vmatprep.subr.mxu0 0.0
  %2273 = vmatpush1.msra.mxu0 0.0
  %2274 = vmatprep.subr.mxu0 0.0
  %2275 = vmatpush1.msra.mxu0 0.0
  %2276 = vmatprep.subr.mxu0 0.0
  %2277 = vmatpush1.msra.mxu0 0.0
  %2278 = vmatprep.mubr.f32.mxu0 0.0
  %v2279 = vand.u32 %v1877, 4294901760
  %v2280 = vsub.f32 %v1877, %v2279
  %v2281 = vand.u32 %v2280, 4294901760
  %2282 = vmatmul.mubr.f32.gmra.mrb[0].mxu0 %v2281
  %v2283 = vpop.f32.mrb[0].mxu0
  %v2284 = vadd.f32 %v2182, %v2283
  %v2285 = vpop.f32.mrb[0].mxu0
  %2286 = vmatprep.mubr.f32.mxu0 0.0
  %v2287 = vand.u32 %v1880, 4294901760
  %v2288 = vsub.f32 %v1880, %v2287
  %v2289 = vand.u32 %v2288, 4294901760
  %2290 = vmatmul.mubr.f32.gmra.mrb[0].mxu0 %v2289
  %v2291 = vpop.f32.mrb[0].mxu0
  %v2292 = vadd.f32 %v2189, %v2291
  %v2293 = vpop.f32.mrb[0].mxu0
  %2294 = vmatprep.mubr.f32.mxu0 0.0
  %v2295 = vand.u32 %v1883, 4294901760
  %v2296 = vsub.f32 %v1883, %v2295
  %v2297 = vand.u32 %v2296, 4294901760
  %2298 = vmatmul.mubr.f32.gmra.mrb[0].mxu0 %v2297
  %v2299 = vpop.f32.mrb[0].mxu0
  %v2300 = vadd.f32 %v2196, %v2299
  %v2301 = vpop.f32.mrb[0].mxu0
  %2302 = vmatprep.mubr.f32.mxu0 0.0
  %v2303 = vand.u32 %v1886, 4294901760
  %v2304 = vsub.f32 %v1886, %v2303
  %v2305 = vand.u32 %v2304, 4294901760
  %2306 = vmatmul.mubr.f32.gmra.mrb[0].mxu0 %v2305
  %v2307 = vpop.f32.mrb[0].mxu0
  %v2308 = vadd.f32 %v2203, %v2307
  %v2309 = vpop.f32.mrb[0].mxu0
  %2310 = vmatprep.mubr.f32.mxu0 0.0
  %v2311 = vand.u32 %v1889, 4294901760
  %v2312 = vsub.f32 %v1889, %v2311
  %v2313 = vand.u32 %v2312, 4294901760
  %2314 = vmatmul.mubr.f32.gmra.mrb[0].mxu0 %v2313
  %v2315 = vpop.f32.mrb[0].mxu0
  %v2316 = vadd.f32 %v2210, %v2315
  %v2317 = vpop.f32.mrb[0].mxu0
  %2318 = vdwg.mxu0
  %2319 = vmatprep.subr.mxu0 0.0
  %v2320 = vand.u32 %v1893, 4294901760
  %v2321 = vsub.f32 %v1893, %v2320
  %v2322 = vand.u32 %v2321, 4294901760
  %2323 = vmatpush1.msra.mxu0 %v2322
  %2324 = vmatprep.subr.mxu0 0.0
  %2325 = vmatpush1.msra.mxu0 0.0
  %2326 = vmatprep.subr.mxu0 0.0
  %2327 = vmatpush1.msra.mxu0 0.0
  %2328 = vmatprep.subr.mxu0 0.0
  %2329 = vmatpush1.msra.mxu0 0.0
  %2330 = vmatprep.subr.mxu0 0.0
  %2331 = vmatpush1.msra.mxu0 0.0
  %2332 = vmatprep.subr.mxu0 0.0
  %2333 = vmatpush1.msra.mxu0 0.0
  %2334 = vmatprep.subr.mxu0 0.0
  %2335 = vmatpush1.msra.mxu0 0.0
  %2336 = vmatprep.subr.mxu0 0.0
  %2337 = vmatpush1.msra.mxu0 0.0
  %2338 = vmatprep.subr.mxu0 0.0
  %2339 = vmatpush1.msra.mxu0 0.0
  %2340 = vmatprep.subr.mxu0 0.0
  %2341 = vmatpush1.msra.mxu0 0.0
  %2342 = vmatprep.subr.mxu0 0.0
  %2343 = vmatpush1.msra.mxu0 0.0
  %2344 = vmatprep.subr.mxu0 0.0
  %2345 = vmatpush1.msra.mxu0 0.0
  %2346 = vmatprep.subr.mxu0 0.0
  %2347 = vmatpush1.msra.mxu0 0.0
  %2348 = vmatprep.subr.mxu0 0.0
  %2349 = vmatpush1.msra.mxu0 0.0
  %2350 = vmatprep.subr.mxu0 0.0
  %2351 = vmatpush1.msra.mxu0 0.0
  %2352 = vmatprep.subr.mxu0 0.0
  %2353 = vmatpush1.msra.mxu0 0.0
  %2354 = vmatprep.subr.mxu0 0.0
  %2355 = vmatpush1.msra.mxu0 0.0
  %2356 = vmatprep.subr.mxu0 0.0
  %2357 = vmatpush1.msra.mxu0 0.0
  %2358 = vmatprep.subr.mxu0 0.0
  %2359 = vmatpush1.msra.mxu0 0.0
  %2360 = vmatprep.subr.mxu0 0.0
  %2361 = vmatpush1.msra.mxu0 0.0
  %2362 = vmatprep.subr.mxu0 0.0
  %2363 = vmatpush1.msra.mxu0 0.0
  %2364 = vmatprep.subr.mxu0 0.0
  %2365 = vmatpush1.msra.mxu0 0.0
  %2366 = vmatprep.subr.mxu0 0.0
  %2367 = vmatpush1.msra.mxu0 0.0
  %2368 = vmatprep.subr.mxu0 0.0
  %2369 = vmatpush1.msra.mxu0 0.0
  %2370 = vmatprep.subr.mxu0 0.0
  %2371 = vmatpush1.msra.mxu0 0.0
  %2372 = vmatprep.subr.mxu0 0.0
  %2373 = vmatpush1.msra.mxu0 0.0
  %2374 = vmatprep.subr.mxu0 0.0
  %2375 = vmatpush1.msra.mxu0 0.0
  %2376 = vmatprep.subr.mxu0 0.0
  %2377 = vmatpush1.msra.mxu0 0.0
  %2378 = vmatprep.subr.mxu0 0.0
  %2379 = vmatpush1.msra.mxu0 0.0
  %2380 = vmatprep.subr.mxu0 0.0
  %2381 = vmatpush1.msra.mxu0 0.0
  %2382 = vmatprep.subr.mxu0 0.0
  %2383 = vmatpush1.msra.mxu0 0.0
  %2384 = vmatprep.subr.mxu0 0.0
  %2385 = vmatpush1.msra.mxu0 0.0
  %2386 = vmatprep.mubr.f32.mxu0 0.0
  %v2387 = vand.u32 %v1877, 4294901760
  %2388 = vmatmul.mubr.f32.gmra.mrb[0].mxu0 %v2387
  %v2389 = vpop.f32.mrb[0].mxu0
  %v2390 = vadd.f32 %v2284, %v2389
  %v2391 = vpop.f32.mrb[0].mxu0
  %2392 = vmatprep.mubr.f32.mxu0 0.0
  %v2393 = vand.u32 %v1880, 4294901760
  %2394 = vmatmul.mubr.f32.gmra.mrb[0].mxu0 %v2393
  %v2395 = vpop.f32.mrb[0].mxu0
  %v2396 = vadd.f32 %v2292, %v2395
  %v2397 = vpop.f32.mrb[0].mxu0
  %2398 = vmatprep.mubr.f32.mxu0 0.0
  %v2399 = vand.u32 %v1883, 4294901760
  %2400 = vmatmul.mubr.f32.gmra.mrb[0].mxu0 %v2399
  %v2401 = vpop.f32.mrb[0].mxu0
  %v2402 = vadd.f32 %v2300, %v2401
  %v2403 = vpop.f32.mrb[0].mxu0
  %2404 = vmatprep.mubr.f32.mxu0 0.0
  %v2405 = vand.u32 %v1886, 4294901760
  %2406 = vmatmul.mubr.f32.gmra.mrb[0].mxu0 %v2405
  %v2407 = vpop.f32.mrb[0].mxu0
  %v2408 = vadd.f32 %v2308, %v2407
  %v2409 = vpop.f32.mrb[0].mxu0
  %2410 = vmatprep.mubr.f32.mxu0 0.0
  %v2411 = vand.u32 %v1889, 4294901760
  %2412 = vmatmul.mubr.f32.gmra.mrb[0].mxu0 %v2411
  %v2413 = vpop.f32.mrb[0].mxu0
  %v2414 = vadd.f32 %v2316, %v2413
  %v2415 = vpop.f32.mrb[0].mxu0
  %2416 = vdwg.mxu0
  %2417 = vmatprep.subr.mxu0 0.0
  %v2418 = vand.u32 %v1893, 4294901760
  %2419 = vmatpush1.msra.mxu0 %v2418
  %2420 = vmatprep.subr.mxu0 0.0
  %2421 = vmatpush1.msra.mxu0 0.0
  %2422 = vmatprep.subr.mxu0 0.0
  %2423 = vmatpush1.msra.mxu0 0.0
  %2424 = vmatprep.subr.mxu0 0.0
  %2425 = vmatpush1.msra.mxu0 0.0
  %2426 = vmatprep.subr.mxu0 0.0
  %2427 = vmatpush1.msra.mxu0 0.0
  %2428 = vmatprep.subr.mxu0 0.0
  %2429 = vmatpush1.msra.mxu0 0.0
  %2430 = vmatprep.subr.mxu0 0.0
  %2431 = vmatpush1.msra.mxu0 0.0
  %2432 = vmatprep.subr.mxu0 0.0
  %2433 = vmatpush1.msra.mxu0 0.0
  %2434 = vmatprep.subr.mxu0 0.0
  %2435 = vmatpush1.msra.mxu0 0.0
  %2436 = vmatprep.subr.mxu0 0.0
  %2437 = vmatpush1.msra.mxu0 0.0
  %2438 = vmatprep.subr.mxu0 0.0
  %2439 = vmatpush1.msra.mxu0 0.0
  %2440 = vmatprep.subr.mxu0 0.0
  %2441 = vmatpush1.msra.mxu0 0.0
  %2442 = vmatprep.subr.mxu0 0.0
  %2443 = vmatpush1.msra.mxu0 0.0
  %2444 = vmatprep.subr.mxu0 0.0
  %2445 = vmatpush1.msra.mxu0 0.0
  %2446 = vmatprep.subr.mxu0 0.0
  %2447 = vmatpush1.msra.mxu0 0.0
  %2448 = vmatprep.subr.mxu0 0.0
  %2449 = vmatpush1.msra.mxu0 0.0
  %2450 = vmatprep.subr.mxu0 0.0
  %2451 = vmatpush1.msra.mxu0 0.0
  %2452 = vmatprep.subr.mxu0 0.0
  %2453 = vmatpush1.msra.mxu0 0.0
  %2454 = vmatprep.subr.mxu0 0.0
  %2455 = vmatpush1.msra.mxu0 0.0
  %2456 = vmatprep.subr.mxu0 0.0
  %2457 = vmatpush1.msra.mxu0 0.0
  %2458 = vmatprep.subr.mxu0 0.0
  %2459 = vmatpush1.msra.mxu0 0.0
  %2460 = vmatprep.subr.mxu0 0.0
  %2461 = vmatpush1.msra.mxu0 0.0
  %2462 = vmatprep.subr.mxu0 0.0
  %2463 = vmatpush1.msra.mxu0 0.0
  %2464 = vmatprep.subr.mxu0 0.0
  %2465 = vmatpush1.msra.mxu0 0.0
  %2466 = vmatprep.subr.mxu0 0.0
  %2467 = vmatpush1.msra.mxu0 0.0
  %2468 = vmatprep.subr.mxu0 0.0
  %2469 = vmatpush1.msra.mxu0 0.0
  %2470 = vmatprep.subr.mxu0 0.0
  %2471 = vmatpush1.msra.mxu0 0.0
  %2472 = vmatprep.subr.mxu0 0.0
  %2473 = vmatpush1.msra.mxu0 0.0
  %2474 = vmatprep.subr.mxu0 0.0
  %2475 = vmatpush1.msra.mxu0 0.0
  %2476 = vmatprep.subr.mxu0 0.0
  %2477 = vmatpush1.msra.mxu0 0.0
  %2478 = vmatprep.subr.mxu0 0.0
  %2479 = vmatpush1.msra.mxu0 0.0
  %2480 = vmatprep.subr.mxu0 0.0
  %2481 = vmatpush1.msra.mxu0 0.0
  %2482 = vmatprep.mubr.f32.mxu0 0.0
  %v2483 = vand.u32 %v1877, 4294901760
  %2484 = vmatmul.mubr.f32.gmra.mrb[0].mxu0 %v2483
  %v2485 = vpop.f32.mrb[0].mxu0
  %v2486 = vadd.f32 %v2390, %v2485
  %v2487 = vpop.f32.mrb[0].mxu0
  %2488 = vmatprep.mubr.f32.mxu0 0.0
  %v2489 = vand.u32 %v1880, 4294901760
  %2490 = vmatmul.mubr.f32.gmra.mrb[0].mxu0 %v2489
  %v2491 = vpop.f32.mrb[0].mxu0
  %v2492 = vadd.f32 %v2396, %v2491
  %v2493 = vpop.f32.mrb[0].mxu0
  %2494 = vmatprep.mubr.f32.mxu0 0.0
  %v2495 = vand.u32 %v1883, 4294901760
  %2496 = vmatmul.mubr.f32.gmra.mrb[0].mxu0 %v2495
  %v2497 = vpop.f32.mrb[0].mxu0
  %v2498 = vadd.f32 %v2402, %v2497
  %v2499 = vpop.f32.mrb[0].mxu0
  %2500 = vmatprep.mubr.f32.mxu0 0.0
  %v2501 = vand.u32 %v1886, 4294901760
  %2502 = vmatmul.mubr.f32.gmra.mrb[0].mxu0 %v2501
  %v2503 = vpop.f32.mrb[0].mxu0
  %v2504 = vadd.f32 %v2408, %v2503
  %v2505 = vpop.f32.mrb[0].mxu0
  %2506 = vmatprep.mubr.f32.mxu0 0.0
  %v2507 = vand.u32 %v1889, 4294901760
  %2508 = vmatmul.mubr.f32.gmra.mrb[0].mxu0 %v2507
  %v2509 = vpop.f32.mrb[0].mxu0
  %v2510 = vadd.f32 %v2414, %v2509
  %v2511 = vpop.f32.mrb[0].mxu0
  %2512 = vdwg.mxu0
  %2514 = vset.pattern.permute.xlu0 0
  %2515 = vperm.xlu0 %2514, %v2486
  %v2516 = vpop.permute.xlu0 %2515
  %2519 = vset.pattern.permute.xlu0 0
  %2520 = vperm.xlu0 %2519, %v2492
  %v2521 = vpop.permute.xlu0 %2520
  %2524 = vset.pattern.permute.xlu0 0
  %2525 = vperm.xlu0 %2524, %v2498
  %v2526 = vpop.permute.xlu0 %2525
  %2529 = vset.pattern.permute.xlu0 0
  %2530 = vperm.xlu0 %2529, %v2504
  %v2531 = vpop.permute.xlu0 %2530
  %2534 = vset.pattern.permute.xlu0 0
  %2535 = vperm.xlu0 %2534, %v2510
  %v2536 = vpop.permute.xlu0 %2535
  %v2538 = vsub.f32 %v1253, %v2516
  %v2539 = vsub.f32 %v1254, %v2521
  %v2540 = vsub.f32 %v1255, %v2526
  %v2541 = vsub.f32 %v1256, %v2531
  %v2542 = vsub.f32 %v1257, %v2536
  %v2543 = vmul.f32 %v2538, %v2538
  %v2544 = vmul.f32 %v2539, %v2539
  %v2545 = vmul.f32 %v2540, %v2540
  %v2546 = vmul.f32 %v2541, %v2541
  %v2547 = vmul.f32 %v2542, %v2542
  %v2548 = vsel %vm1356, %v2543, 0.0
  %2549 = vadd.xlane.f32.xlu0 %v2548
  %v2550 = vpop.xlane.xlu0 %2549
  %v2551 = vsel %vm1356, %v2544, 0.0
  %2552 = vadd.xlane.f32.xlu0 %v2551
  %v2553 = vpop.xlane.xlu0 %2552
  %v2554 = vsel %vm1356, %v2545, 0.0
  %2555 = vadd.xlane.f32.xlu0 %v2554
  %v2556 = vpop.xlane.xlu0 %2555
  %v2557 = vsel %vm1356, %v2546, 0.0
  %2558 = vadd.xlane.f32.xlu0 %v2557
  %v2559 = vpop.xlane.xlu0 %2558
  %v2560 = vsel %vm1356, %v2547, 0.0
  %2561 = vadd.xlane.f32.xlu0 %v2560
  %v2562 = vpop.xlane.xlu0 %2561
  %2563 = vmatprep.subr.mxu0 0.0
  %v2564 = vand.u32 %v2550, 4294901760
  %2565 = vmatpush1.msra.mxu0 %v2564
  %2566 = vmatprep.subr.mxu0 0.0
  %v2567 = vand.u32 %v2553, 4294901760
  %2568 = vmatpush1.msra.mxu0 %v2567
  %2569 = vmatprep.subr.mxu0 0.0
  %v2570 = vand.u32 %v2556, 4294901760
  %2571 = vmatpush1.msra.mxu0 %v2570
  %2572 = vmatprep.subr.mxu0 0.0
  %v2573 = vand.u32 %v2559, 4294901760
  %2574 = vmatpush1.msra.mxu0 %v2573
  %2575 = vmatprep.subr.mxu0 0.0
  %v2576 = vand.u32 %v2562, 4294901760
  %2577 = vmatpush1.msra.mxu0 %v2576
  %2578 = vmatprep.subr.mxu0 0.0
  %2579 = vmatpush1.msra.mxu0 0.0
  %2580 = vmatprep.subr.mxu0 0.0
  %2581 = vmatpush1.msra.mxu0 0.0
  %2582 = vmatprep.subr.mxu0 0.0
  %2583 = vmatpush1.msra.mxu0 0.0
  %2584 = vmatprep.subr.mxu0 0.0
  %2585 = vmatpush1.msra.mxu0 0.0
  %2586 = vmatprep.subr.mxu0 0.0
  %2587 = vmatpush1.msra.mxu0 0.0
  %2588 = vmatprep.subr.mxu0 0.0
  %2589 = vmatpush1.msra.mxu0 0.0
  %2590 = vmatprep.subr.mxu0 0.0
  %2591 = vmatpush1.msra.mxu0 0.0
  %2592 = vmatprep.subr.mxu0 0.0
  %2593 = vmatpush1.msra.mxu0 0.0
  %2594 = vmatprep.subr.mxu0 0.0
  %2595 = vmatpush1.msra.mxu0 0.0
  %2596 = vmatprep.subr.mxu0 0.0
  %2597 = vmatpush1.msra.mxu0 0.0
  %2598 = vmatprep.subr.mxu0 0.0
  %2599 = vmatpush1.msra.mxu0 0.0
  %2600 = vmatprep.subr.mxu0 0.0
  %2601 = vmatpush1.msra.mxu0 0.0
  %2602 = vmatprep.subr.mxu0 0.0
  %2603 = vmatpush1.msra.mxu0 0.0
  %2604 = vmatprep.subr.mxu0 0.0
  %2605 = vmatpush1.msra.mxu0 0.0
  %2606 = vmatprep.subr.mxu0 0.0
  %2607 = vmatpush1.msra.mxu0 0.0
  %2608 = vmatprep.subr.mxu0 0.0
  %2609 = vmatpush1.msra.mxu0 0.0
  %2610 = vmatprep.subr.mxu0 0.0
  %2611 = vmatpush1.msra.mxu0 0.0
  %2612 = vmatprep.subr.mxu0 0.0
  %2613 = vmatpush1.msra.mxu0 0.0
  %2614 = vmatprep.subr.mxu0 0.0
  %2615 = vmatpush1.msra.mxu0 0.0
  %2616 = vmatprep.subr.mxu0 0.0
  %2617 = vmatpush1.msra.mxu0 0.0
  %2618 = vmatprep.subr.mxu0 0.0
  %2619 = vmatpush1.msra.mxu0 0.0
  %2620 = vmatprep.subr.mxu0 0.0
  %2621 = vmatpush1.msra.mxu0 0.0
  %2622 = vmatprep.subr.mxu0 0.0
  %2623 = vmatpush1.msra.mxu0 0.0
  %2624 = vmatprep.subr.mxu0 0.0
  %2625 = vmatpush1.msra.mxu0 0.0
  %2626 = vmatprep.subr.mxu0 0.0
  %2627 = vmatpush1.msra.mxu0 0.0
  %2628 = vmatprep.subr.mxu0 0.0
  %2629 = vmatpush1.msra.mxu0 0.0
  %2630 = vmatprep.subr.mxu0 0.0
  %2631 = vmatpush1.msra.mxu0 0.0
  %2632 = vmatprep.mubr.f32.mxu0 0.0
  %v2633 = vand.u32 %v1373, 4294901760
  %v2634 = vsub.f32 %v1373, %v2633
  %v2635 = vand.u32 %v2634, 4294901760
  %v2636 = vsub.f32 %v2634, %v2635
  %v2637 = vand.u32 %v2636, 4294901760
  %2638 = vmatmul.mubr.f32.gmra.mrb[0].mxu0 %v2637
  %v2639 = vpop.f32.mrb[0].mxu0
  %v2640 = vadd.f32 0.0, %v2639
  %v2641 = vpop.f32.mrb[0].mxu0
  %2642 = vdwg.mxu0
  %2643 = vmatprep.subr.mxu0 0.0
  %v2644 = vand.u32 %v2550, 4294901760
  %v2645 = vsub.f32 %v2550, %v2644
  %v2646 = vand.u32 %v2645, 4294901760
  %v2647 = vsub.f32 %v2645, %v2646
  %v2648 = vand.u32 %v2647, 4294901760
  %2649 = vmatpush1.msra.mxu0 %v2648
  %2650 = vmatprep.subr.mxu0 0.0
  %v2651 = vand.u32 %v2553, 4294901760
  %v2652 = vsub.f32 %v2553, %v2651
  %v2653 = vand.u32 %v2652, 4294901760
  %v2654 = vsub.f32 %v2652, %v2653
  %v2655 = vand.u32 %v2654, 4294901760
  %2656 = vmatpush1.msra.mxu0 %v2655
  %2657 = vmatprep.subr.mxu0 0.0
  %v2658 = vand.u32 %v2556, 4294901760
  %v2659 = vsub.f32 %v2556, %v2658
  %v2660 = vand.u32 %v2659, 4294901760
  %v2661 = vsub.f32 %v2659, %v2660
  %v2662 = vand.u32 %v2661, 4294901760
  %2663 = vmatpush1.msra.mxu0 %v2662
  %2664 = vmatprep.subr.mxu0 0.0
  %v2665 = vand.u32 %v2559, 4294901760
  %v2666 = vsub.f32 %v2559, %v2665
  %v2667 = vand.u32 %v2666, 4294901760
  %v2668 = vsub.f32 %v2666, %v2667
  %v2669 = vand.u32 %v2668, 4294901760
  %2670 = vmatpush1.msra.mxu0 %v2669
  %2671 = vmatprep.subr.mxu0 0.0
  %v2672 = vand.u32 %v2562, 4294901760
  %v2673 = vsub.f32 %v2562, %v2672
  %v2674 = vand.u32 %v2673, 4294901760
  %v2675 = vsub.f32 %v2673, %v2674
  %v2676 = vand.u32 %v2675, 4294901760
  %2677 = vmatpush1.msra.mxu0 %v2676
  %2678 = vmatprep.subr.mxu0 0.0
  %2679 = vmatpush1.msra.mxu0 0.0
  %2680 = vmatprep.subr.mxu0 0.0
  %2681 = vmatpush1.msra.mxu0 0.0
  %2682 = vmatprep.subr.mxu0 0.0
  %2683 = vmatpush1.msra.mxu0 0.0
  %2684 = vmatprep.subr.mxu0 0.0
  %2685 = vmatpush1.msra.mxu0 0.0
  %2686 = vmatprep.subr.mxu0 0.0
  %2687 = vmatpush1.msra.mxu0 0.0
  %2688 = vmatprep.subr.mxu0 0.0
  %2689 = vmatpush1.msra.mxu0 0.0
  %2690 = vmatprep.subr.mxu0 0.0
  %2691 = vmatpush1.msra.mxu0 0.0
  %2692 = vmatprep.subr.mxu0 0.0
  %2693 = vmatpush1.msra.mxu0 0.0
  %2694 = vmatprep.subr.mxu0 0.0
  %2695 = vmatpush1.msra.mxu0 0.0
  %2696 = vmatprep.subr.mxu0 0.0
  %2697 = vmatpush1.msra.mxu0 0.0
  %2698 = vmatprep.subr.mxu0 0.0
  %2699 = vmatpush1.msra.mxu0 0.0
  %2700 = vmatprep.subr.mxu0 0.0
  %2701 = vmatpush1.msra.mxu0 0.0
  %2702 = vmatprep.subr.mxu0 0.0
  %2703 = vmatpush1.msra.mxu0 0.0
  %2704 = vmatprep.subr.mxu0 0.0
  %2705 = vmatpush1.msra.mxu0 0.0
  %2706 = vmatprep.subr.mxu0 0.0
  %2707 = vmatpush1.msra.mxu0 0.0
  %2708 = vmatprep.subr.mxu0 0.0
  %2709 = vmatpush1.msra.mxu0 0.0
  %2710 = vmatprep.subr.mxu0 0.0
  %2711 = vmatpush1.msra.mxu0 0.0
  %2712 = vmatprep.subr.mxu0 0.0
  %2713 = vmatpush1.msra.mxu0 0.0
  %2714 = vmatprep.subr.mxu0 0.0
  %2715 = vmatpush1.msra.mxu0 0.0
  %2716 = vmatprep.subr.mxu0 0.0
  %2717 = vmatpush1.msra.mxu0 0.0
  %2718 = vmatprep.subr.mxu0 0.0
  %2719 = vmatpush1.msra.mxu0 0.0
  %2720 = vmatprep.subr.mxu0 0.0
  %2721 = vmatpush1.msra.mxu0 0.0
  %2722 = vmatprep.subr.mxu0 0.0
  %2723 = vmatpush1.msra.mxu0 0.0
  %2724 = vmatprep.subr.mxu0 0.0
  %2725 = vmatpush1.msra.mxu0 0.0
  %2726 = vmatprep.subr.mxu0 0.0
  %2727 = vmatpush1.msra.mxu0 0.0
  %2728 = vmatprep.subr.mxu0 0.0
  %2729 = vmatpush1.msra.mxu0 0.0
  %2730 = vmatprep.subr.mxu0 0.0
  %2731 = vmatpush1.msra.mxu0 0.0
  %2732 = vmatprep.mubr.f32.mxu0 0.0
  %v2733 = vand.u32 %v1373, 4294901760
  %2734 = vmatmul.mubr.f32.gmra.mrb[0].mxu0 %v2733
  %v2735 = vpop.f32.mrb[0].mxu0
  %v2736 = vadd.f32 %v2640, %v2735
  %v2737 = vpop.f32.mrb[0].mxu0
  %2738 = vdwg.mxu0
  %2739 = vmatprep.subr.mxu0 0.0
  %v2740 = vand.u32 %v2550, 4294901760
  %v2741 = vsub.f32 %v2550, %v2740
  %2742 = vmatpush1.msra.mxu0 %v2741
  %2743 = vmatprep.subr.mxu0 0.0
  %v2744 = vand.u32 %v2553, 4294901760
  %v2745 = vsub.f32 %v2553, %v2744
  %2746 = vmatpush1.msra.mxu0 %v2745
  %2747 = vmatprep.subr.mxu0 0.0
  %v2748 = vand.u32 %v2556, 4294901760
  %v2749 = vsub.f32 %v2556, %v2748
  %2750 = vmatpush1.msra.mxu0 %v2749
  %2751 = vmatprep.subr.mxu0 0.0
  %v2752 = vand.u32 %v2559, 4294901760
  %v2753 = vsub.f32 %v2559, %v2752
  %2754 = vmatpush1.msra.mxu0 %v2753
  %2755 = vmatprep.subr.mxu0 0.0
  %v2756 = vand.u32 %v2562, 4294901760
  %v2757 = vsub.f32 %v2562, %v2756
  %2758 = vmatpush1.msra.mxu0 %v2757
  %2759 = vmatprep.subr.mxu0 0.0
  %2760 = vmatpush1.msra.mxu0 0.0
  %2761 = vmatprep.subr.mxu0 0.0
  %2762 = vmatpush1.msra.mxu0 0.0
  %2763 = vmatprep.subr.mxu0 0.0
  %2764 = vmatpush1.msra.mxu0 0.0
  %2765 = vmatprep.subr.mxu0 0.0
  %2766 = vmatpush1.msra.mxu0 0.0
  %2767 = vmatprep.subr.mxu0 0.0
  %2768 = vmatpush1.msra.mxu0 0.0
  %2769 = vmatprep.subr.mxu0 0.0
  %2770 = vmatpush1.msra.mxu0 0.0
  %2771 = vmatprep.subr.mxu0 0.0
  %2772 = vmatpush1.msra.mxu0 0.0
  %2773 = vmatprep.subr.mxu0 0.0
  %2774 = vmatpush1.msra.mxu0 0.0
  %2775 = vmatprep.subr.mxu0 0.0
  %2776 = vmatpush1.msra.mxu0 0.0
  %2777 = vmatprep.subr.mxu0 0.0
  %2778 = vmatpush1.msra.mxu0 0.0
  %2779 = vmatprep.subr.mxu0 0.0
  %2780 = vmatpush1.msra.mxu0 0.0
  %2781 = vmatprep.subr.mxu0 0.0
  %2782 = vmatpush1.msra.mxu0 0.0
  %2783 = vmatprep.subr.mxu0 0.0
  %2784 = vmatpush1.msra.mxu0 0.0
  %2785 = vmatprep.subr.mxu0 0.0
  %2786 = vmatpush1.msra.mxu0 0.0
  %2787 = vmatprep.subr.mxu0 0.0
  %2788 = vmatpush1.msra.mxu0 0.0
  %2789 = vmatprep.subr.mxu0 0.0
  %2790 = vmatpush1.msra.mxu0 0.0
  %2791 = vmatprep.subr.mxu0 0.0
  %2792 = vmatpush1.msra.mxu0 0.0
  %2793 = vmatprep.subr.mxu0 0.0
  %2794 = vmatpush1.msra.mxu0 0.0
  %2795 = vmatprep.subr.mxu0 0.0
  %2796 = vmatpush1.msra.mxu0 0.0
  %2797 = vmatprep.subr.mxu0 0.0
  %2798 = vmatpush1.msra.mxu0 0.0
  %2799 = vmatprep.subr.mxu0 0.0
  %2800 = vmatpush1.msra.mxu0 0.0
  %2801 = vmatprep.subr.mxu0 0.0
  %2802 = vmatpush1.msra.mxu0 0.0
  %2803 = vmatprep.subr.mxu0 0.0
  %2804 = vmatpush1.msra.mxu0 0.0
  %2805 = vmatprep.subr.mxu0 0.0
  %2806 = vmatpush1.msra.mxu0 0.0
  %2807 = vmatprep.subr.mxu0 0.0
  %2808 = vmatpush1.msra.mxu0 0.0
  %2809 = vmatprep.subr.mxu0 0.0
  %2810 = vmatpush1.msra.mxu0 0.0
  %2811 = vmatprep.subr.mxu0 0.0
  %2812 = vmatpush1.msra.mxu0 0.0
  %2813 = vmatprep.mubr.f32.mxu0 0.0
  %v2814 = vand.u32 %v1373, 4294901760
  %v2815 = vsub.f32 %v1373, %v2814
  %2816 = vmatmul.mubr.f32.gmra.mrb[0].mxu0 %v2815
  %v2817 = vpop.f32.mrb[0].mxu0
  %v2818 = vadd.f32 %v2736, %v2817
  %v2819 = vpop.f32.mrb[0].mxu0
  %2820 = vdwg.mxu0
  %2821 = vmatprep.subr.mxu0 0.0
  %v2822 = vand.u32 %v2550, 4294901760
  %2823 = vmatpush1.msra.mxu0 %v2822
  %2824 = vmatprep.subr.mxu0 0.0
  %v2825 = vand.u32 %v2553, 4294901760
  %2826 = vmatpush1.msra.mxu0 %v2825
  %2827 = vmatprep.subr.mxu0 0.0
  %v2828 = vand.u32 %v2556, 4294901760
  %2829 = vmatpush1.msra.mxu0 %v2828
  %2830 = vmatprep.subr.mxu0 0.0
  %v2831 = vand.u32 %v2559, 4294901760
  %2832 = vmatpush1.msra.mxu0 %v2831
  %2833 = vmatprep.subr.mxu0 0.0
  %v2834 = vand.u32 %v2562, 4294901760
  %2835 = vmatpush1.msra.mxu0 %v2834
  %2836 = vmatprep.subr.mxu0 0.0
  %2837 = vmatpush1.msra.mxu0 0.0
  %2838 = vmatprep.subr.mxu0 0.0
  %2839 = vmatpush1.msra.mxu0 0.0
  %2840 = vmatprep.subr.mxu0 0.0
  %2841 = vmatpush1.msra.mxu0 0.0
  %2842 = vmatprep.subr.mxu0 0.0
  %2843 = vmatpush1.msra.mxu0 0.0
  %2844 = vmatprep.subr.mxu0 0.0
  %2845 = vmatpush1.msra.mxu0 0.0
  %2846 = vmatprep.subr.mxu0 0.0
  %2847 = vmatpush1.msra.mxu0 0.0
  %2848 = vmatprep.subr.mxu0 0.0
  %2849 = vmatpush1.msra.mxu0 0.0
  %2850 = vmatprep.subr.mxu0 0.0
  %2851 = vmatpush1.msra.mxu0 0.0
  %2852 = vmatprep.subr.mxu0 0.0
  %2853 = vmatpush1.msra.mxu0 0.0
  %2854 = vmatprep.subr.mxu0 0.0
  %2855 = vmatpush1.msra.mxu0 0.0
  %2856 = vmatprep.subr.mxu0 0.0
  %2857 = vmatpush1.msra.mxu0 0.0
  %2858 = vmatprep.subr.mxu0 0.0
  %2859 = vmatpush1.msra.mxu0 0.0
  %2860 = vmatprep.subr.mxu0 0.0
  %2861 = vmatpush1.msra.mxu0 0.0
  %2862 = vmatprep.subr.mxu0 0.0
  %2863 = vmatpush1.msra.mxu0 0.0
  %2864 = vmatprep.subr.mxu0 0.0
  %2865 = vmatpush1.msra.mxu0 0.0
  %2866 = vmatprep.subr.mxu0 0.0
  %2867 = vmatpush1.msra.mxu0 0.0
  %2868 = vmatprep.subr.mxu0 0.0
  %2869 = vmatpush1.msra.mxu0 0.0
  %2870 = vmatprep.subr.mxu0 0.0
  %2871 = vmatpush1.msra.mxu0 0.0
  %2872 = vmatprep.subr.mxu0 0.0
  %2873 = vmatpush1.msra.mxu0 0.0
  %2874 = vmatprep.subr.mxu0 0.0
  %2875 = vmatpush1.msra.mxu0 0.0
  %2876 = vmatprep.subr.mxu0 0.0
  %2877 = vmatpush1.msra.mxu0 0.0
  %2878 = vmatprep.subr.mxu0 0.0
  %2879 = vmatpush1.msra.mxu0 0.0
  %2880 = vmatprep.subr.mxu0 0.0
  %2881 = vmatpush1.msra.mxu0 0.0
  %2882 = vmatprep.subr.mxu0 0.0
  %2883 = vmatpush1.msra.mxu0 0.0
  %2884 = vmatprep.subr.mxu0 0.0
  %2885 = vmatpush1.msra.mxu0 0.0
  %2886 = vmatprep.subr.mxu0 0.0
  %2887 = vmatpush1.msra.mxu0 0.0
  %2888 = vmatprep.subr.mxu0 0.0
  %2889 = vmatpush1.msra.mxu0 0.0
  %2890 = vmatprep.mubr.f32.mxu0 0.0
  %v2891 = vand.u32 %v1373, 4294901760
  %v2892 = vsub.f32 %v1373, %v2891
  %v2893 = vand.u32 %v2892, 4294901760
  %2894 = vmatmul.mubr.f32.gmra.mrb[0].mxu0 %v2893
  %v2895 = vpop.f32.mrb[0].mxu0
  %v2896 = vadd.f32 %v2818, %v2895
  %v2897 = vpop.f32.mrb[0].mxu0
  %2898 = vdwg.mxu0
  %2899 = vmatprep.subr.mxu0 0.0
  %v2900 = vand.u32 %v2550, 4294901760
  %v2901 = vsub.f32 %v2550, %v2900
  %v2902 = vand.u32 %v2901, 4294901760
  %2903 = vmatpush1.msra.mxu0 %v2902
  %2904 = vmatprep.subr.mxu0 0.0
  %v2905 = vand.u32 %v2553, 4294901760
  %v2906 = vsub.f32 %v2553, %v2905
  %v2907 = vand.u32 %v2906, 4294901760
  %2908 = vmatpush1.msra.mxu0 %v2907
  %2909 = vmatprep.subr.mxu0 0.0
  %v2910 = vand.u32 %v2556, 4294901760
  %v2911 = vsub.f32 %v2556, %v2910
  %v2912 = vand.u32 %v2911, 4294901760
  %2913 = vmatpush1.msra.mxu0 %v2912
  %2914 = vmatprep.subr.mxu0 0.0
  %v2915 = vand.u32 %v2559, 4294901760
  %v2916 = vsub.f32 %v2559, %v2915
  %v2917 = vand.u32 %v2916, 4294901760
  %2918 = vmatpush1.msra.mxu0 %v2917
  %2919 = vmatprep.subr.mxu0 0.0
  %v2920 = vand.u32 %v2562, 4294901760
  %v2921 = vsub.f32 %v2562, %v2920
  %v2922 = vand.u32 %v2921, 4294901760
  %2923 = vmatpush1.msra.mxu0 %v2922
  %2924 = vmatprep.subr.mxu0 0.0
  %2925 = vmatpush1.msra.mxu0 0.0
  %2926 = vmatprep.subr.mxu0 0.0
  %2927 = vmatpush1.msra.mxu0 0.0
  %2928 = vmatprep.subr.mxu0 0.0
  %2929 = vmatpush1.msra.mxu0 0.0
  %2930 = vmatprep.subr.mxu0 0.0
  %2931 = vmatpush1.msra.mxu0 0.0
  %2932 = vmatprep.subr.mxu0 0.0
  %2933 = vmatpush1.msra.mxu0 0.0
  %2934 = vmatprep.subr.mxu0 0.0
  %2935 = vmatpush1.msra.mxu0 0.0
  %2936 = vmatprep.subr.mxu0 0.0
  %2937 = vmatpush1.msra.mxu0 0.0
  %2938 = vmatprep.subr.mxu0 0.0
  %2939 = vmatpush1.msra.mxu0 0.0
  %2940 = vmatprep.subr.mxu0 0.0
  %2941 = vmatpush1.msra.mxu0 0.0
  %2942 = vmatprep.subr.mxu0 0.0
  %2943 = vmatpush1.msra.mxu0 0.0
  %2944 = vmatprep.subr.mxu0 0.0
  %2945 = vmatpush1.msra.mxu0 0.0
  %2946 = vmatprep.subr.mxu0 0.0
  %2947 = vmatpush1.msra.mxu0 0.0
  %2948 = vmatprep.subr.mxu0 0.0
  %2949 = vmatpush1.msra.mxu0 0.0
  %2950 = vmatprep.subr.mxu0 0.0
  %2951 = vmatpush1.msra.mxu0 0.0
  %2952 = vmatprep.subr.mxu0 0.0
  %2953 = vmatpush1.msra.mxu0 0.0
  %2954 = vmatprep.subr.mxu0 0.0
  %2955 = vmatpush1.msra.mxu0 0.0
  %2956 = vmatprep.subr.mxu0 0.0
  %2957 = vmatpush1.msra.mxu0 0.0
  %2958 = vmatprep.subr.mxu0 0.0
  %2959 = vmatpush1.msra.mxu0 0.0
  %2960 = vmatprep.subr.mxu0 0.0
  %2961 = vmatpush1.msra.mxu0 0.0
  %2962 = vmatprep.subr.mxu0 0.0
  %2963 = vmatpush1.msra.mxu0 0.0
  %2964 = vmatprep.subr.mxu0 0.0
  %2965 = vmatpush1.msra.mxu0 0.0
  %2966 = vmatprep.subr.mxu0 0.0
  %2967 = vmatpush1.msra.mxu0 0.0
  %2968 = vmatprep.subr.mxu0 0.0
  %2969 = vmatpush1.msra.mxu0 0.0
  %2970 = vmatprep.subr.mxu0 0.0
  %2971 = vmatpush1.msra.mxu0 0.0
  %2972 = vmatprep.subr.mxu0 0.0
  %2973 = vmatpush1.msra.mxu0 0.0
  %2974 = vmatprep.subr.mxu0 0.0
  %2975 = vmatpush1.msra.mxu0 0.0
  %2976 = vmatprep.subr.mxu0 0.0
  %2977 = vmatpush1.msra.mxu0 0.0
  %2978 = vmatprep.mubr.f32.mxu0 0.0
  %v2979 = vand.u32 %v1373, 4294901760
  %2980 = vmatmul.mubr.f32.gmra.mrb[0].mxu0 %v2979
  %v2981 = vpop.f32.mrb[0].mxu0
  %v2982 = vadd.f32 %v2896, %v2981
  %v2983 = vpop.f32.mrb[0].mxu0
  %2984 = vdwg.mxu0
  %2985 = vmatprep.subr.mxu0 0.0
  %v2986 = vand.u32 %v2550, 4294901760
  %2987 = vmatpush1.msra.mxu0 %v2986
  %2988 = vmatprep.subr.mxu0 0.0
  %v2989 = vand.u32 %v2553, 4294901760
  %2990 = vmatpush1.msra.mxu0 %v2989
  %2991 = vmatprep.subr.mxu0 0.0
  %v2992 = vand.u32 %v2556, 4294901760
  %2993 = vmatpush1.msra.mxu0 %v2992
  %2994 = vmatprep.subr.mxu0 0.0
  %v2995 = vand.u32 %v2559, 4294901760
  %2996 = vmatpush1.msra.mxu0 %v2995
  %2997 = vmatprep.subr.mxu0 0.0
  %v2998 = vand.u32 %v2562, 4294901760
  %2999 = vmatpush1.msra.mxu0 %v2998
  %3000 = vmatprep.subr.mxu0 0.0
  %3001 = vmatpush1.msra.mxu0 0.0
  %3002 = vmatprep.subr.mxu0 0.0
  %3003 = vmatpush1.msra.mxu0 0.0
  %3004 = vmatprep.subr.mxu0 0.0
  %3005 = vmatpush1.msra.mxu0 0.0
  %3006 = vmatprep.subr.mxu0 0.0
  %3007 = vmatpush1.msra.mxu0 0.0
  %3008 = vmatprep.subr.mxu0 0.0
  %3009 = vmatpush1.msra.mxu0 0.0
  %3010 = vmatprep.subr.mxu0 0.0
  %3011 = vmatpush1.msra.mxu0 0.0
  %3012 = vmatprep.subr.mxu0 0.0
  %3013 = vmatpush1.msra.mxu0 0.0
  %3014 = vmatprep.subr.mxu0 0.0
  %3015 = vmatpush1.msra.mxu0 0.0
  %3016 = vmatprep.subr.mxu0 0.0
  %3017 = vmatpush1.msra.mxu0 0.0
  %3018 = vmatprep.subr.mxu0 0.0
  %3019 = vmatpush1.msra.mxu0 0.0
  %3020 = vmatprep.subr.mxu0 0.0
  %3021 = vmatpush1.msra.mxu0 0.0
  %3022 = vmatprep.subr.mxu0 0.0
  %3023 = vmatpush1.msra.mxu0 0.0
  %3024 = vmatprep.subr.mxu0 0.0
  %3025 = vmatpush1.msra.mxu0 0.0
  %3026 = vmatprep.subr.mxu0 0.0
  %3027 = vmatpush1.msra.mxu0 0.0
  %3028 = vmatprep.subr.mxu0 0.0
  %3029 = vmatpush1.msra.mxu0 0.0
  %3030 = vmatprep.subr.mxu0 0.0
  %3031 = vmatpush1.msra.mxu0 0.0
  %3032 = vmatprep.subr.mxu0 0.0
  %3033 = vmatpush1.msra.mxu0 0.0
  %3034 = vmatprep.subr.mxu0 0.0
  %3035 = vmatpush1.msra.mxu0 0.0
  %3036 = vmatprep.subr.mxu0 0.0
  %3037 = vmatpush1.msra.mxu0 0.0
  %3038 = vmatprep.subr.mxu0 0.0
  %3039 = vmatpush1.msra.mxu0 0.0
  %3040 = vmatprep.subr.mxu0 0.0
  %3041 = vmatpush1.msra.mxu0 0.0
  %3042 = vmatprep.subr.mxu0 0.0
  %3043 = vmatpush1.msra.mxu0 0.0
  %3044 = vmatprep.subr.mxu0 0.0
  %3045 = vmatpush1.msra.mxu0 0.0
  %3046 = vmatprep.subr.mxu0 0.0
  %3047 = vmatpush1.msra.mxu0 0.0
  %3048 = vmatprep.subr.mxu0 0.0
  %3049 = vmatpush1.msra.mxu0 0.0
  %3050 = vmatprep.subr.mxu0 0.0
  %3051 = vmatpush1.msra.mxu0 0.0
  %3052 = vmatprep.subr.mxu0 0.0
  %3053 = vmatpush1.msra.mxu0 0.0
  %3054 = vmatprep.mubr.f32.mxu0 0.0
  %v3055 = vand.u32 %v1373, 4294901760
  %3056 = vmatmul.mubr.f32.gmra.mrb[0].mxu0 %v3055
  %v3057 = vpop.f32.mrb[0].mxu0
  %v3058 = vadd.f32 %v2982, %v3057
  %v3059 = vpop.f32.mrb[0].mxu0
  %3060 = vdwg.mxu0
  %v3061 = vmul.f32 %v3058, %v1873
  %v3062 = vadd.f32 %v3061, 1e-05
  %v3063 = vrsqrt.pop %v3062
  %v3064 = vmul.f32 %v27, %v3063
  %v3066 = vsel %vm1891, %v3064, 0
  %3068 = vmatprep.subr.mxu0 0.0
  %v3069 = vand.u32 %v3066, 4294901760
  %3070 = vmatpush1.msra.mxu0 %v3069
  %3071 = vmatprep.subr.mxu0 0.0
  %3072 = vmatpush1.msra.mxu0 0.0
  %3073 = vmatprep.subr.mxu0 0.0
  %3074 = vmatpush1.msra.mxu0 0.0
  %3075 = vmatprep.subr.mxu0 0.0
  %3076 = vmatpush1.msra.mxu0 0.0
  %3077 = vmatprep.subr.mxu0 0.0
  %3078 = vmatpush1.msra.mxu0 0.0
  %3079 = vmatprep.subr.mxu0 0.0
  %3080 = vmatpush1.msra.mxu0 0.0
  %3081 = vmatprep.subr.mxu0 0.0
  %3082 = vmatpush1.msra.mxu0 0.0
  %3083 = vmatprep.subr.mxu0 0.0
  %3084 = vmatpush1.msra.mxu0 0.0
  %3085 = vmatprep.subr.mxu0 0.0
  %3086 = vmatpush1.msra.mxu0 0.0
  %3087 = vmatprep.subr.mxu0 0.0
  %3088 = vmatpush1.msra.mxu0 0.0
  %3089 = vmatprep.subr.mxu0 0.0
  %3090 = vmatpush1.msra.mxu0 0.0
  %3091 = vmatprep.subr.mxu0 0.0
  %3092 = vmatpush1.msra.mxu0 0.0
  %3093 = vmatprep.subr.mxu0 0.0
  %3094 = vmatpush1.msra.mxu0 0.0
  %3095 = vmatprep.subr.mxu0 0.0
  %3096 = vmatpush1.msra.mxu0 0.0
  %3097 = vmatprep.subr.mxu0 0.0
  %3098 = vmatpush1.msra.mxu0 0.0
  %3099 = vmatprep.subr.mxu0 0.0
  %3100 = vmatpush1.msra.mxu0 0.0
  %3101 = vmatprep.subr.mxu0 0.0
  %3102 = vmatpush1.msra.mxu0 0.0
  %3103 = vmatprep.subr.mxu0 0.0
  %3104 = vmatpush1.msra.mxu0 0.0
  %3105 = vmatprep.subr.mxu0 0.0
  %3106 = vmatpush1.msra.mxu0 0.0
  %3107 = vmatprep.subr.mxu0 0.0
  %3108 = vmatpush1.msra.mxu0 0.0
  %3109 = vmatprep.subr.mxu0 0.0
  %3110 = vmatpush1.msra.mxu0 0.0
  %3111 = vmatprep.subr.mxu0 0.0
  %3112 = vmatpush1.msra.mxu0 0.0
  %3113 = vmatprep.subr.mxu0 0.0
  %3114 = vmatpush1.msra.mxu0 0.0
  %3115 = vmatprep.subr.mxu0 0.0
  %3116 = vmatpush1.msra.mxu0 0.0
  %3117 = vmatprep.subr.mxu0 0.0
  %3118 = vmatpush1.msra.mxu0 0.0
  %3119 = vmatprep.subr.mxu0 0.0
  %3120 = vmatpush1.msra.mxu0 0.0
  %3121 = vmatprep.subr.mxu0 0.0
  %3122 = vmatpush1.msra.mxu0 0.0
  %3123 = vmatprep.subr.mxu0 0.0
  %3124 = vmatpush1.msra.mxu0 0.0
  %3125 = vmatprep.subr.mxu0 0.0
  %3126 = vmatpush1.msra.mxu0 0.0
  %3127 = vmatprep.subr.mxu0 0.0
  %3128 = vmatpush1.msra.mxu0 0.0
  %3129 = vmatprep.subr.mxu0 0.0
  %3130 = vmatpush1.msra.mxu0 0.0
  %3131 = vmatprep.subr.mxu0 0.0
  %3132 = vmatpush1.msra.mxu0 0.0
  %3133 = vmatprep.mubr.f32.mxu0 0.0
  %v3134 = vand.u32 %v1877, 4294901760
  %v3135 = vsub.f32 %v1877, %v3134
  %v3136 = vand.u32 %v3135, 4294901760
  %v3137 = vsub.f32 %v3135, %v3136
  %v3138 = vand.u32 %v3137, 4294901760
  %3139 = vmatmul.mubr.f32.gmra.mrb[0].mxu0 %v3138
  %v3140 = vpop.f32.mrb[0].mxu0
  %v3141 = vadd.f32 0.0, %v3140
  %v3142 = vpop.f32.mrb[0].mxu0
  %3143 = vmatprep.mubr.f32.mxu0 0.0
  %v3144 = vand.u32 %v1880, 4294901760
  %v3145 = vsub.f32 %v1880, %v3144
  %v3146 = vand.u32 %v3145, 4294901760
  %v3147 = vsub.f32 %v3145, %v3146
  %v3148 = vand.u32 %v3147, 4294901760
  %3149 = vmatmul.mubr.f32.gmra.mrb[0].mxu0 %v3148
  %v3150 = vpop.f32.mrb[0].mxu0
  %v3151 = vadd.f32 0.0, %v3150
  %v3152 = vpop.f32.mrb[0].mxu0
  %3153 = vmatprep.mubr.f32.mxu0 0.0
  %v3154 = vand.u32 %v1883, 4294901760
  %v3155 = vsub.f32 %v1883, %v3154
  %v3156 = vand.u32 %v3155, 4294901760
  %v3157 = vsub.f32 %v3155, %v3156
  %v3158 = vand.u32 %v3157, 4294901760
  %3159 = vmatmul.mubr.f32.gmra.mrb[0].mxu0 %v3158
  %v3160 = vpop.f32.mrb[0].mxu0
  %v3161 = vadd.f32 0.0, %v3160
  %v3162 = vpop.f32.mrb[0].mxu0
  %3163 = vmatprep.mubr.f32.mxu0 0.0
  %v3164 = vand.u32 %v1886, 4294901760
  %v3165 = vsub.f32 %v1886, %v3164
  %v3166 = vand.u32 %v3165, 4294901760
  %v3167 = vsub.f32 %v3165, %v3166
  %v3168 = vand.u32 %v3167, 4294901760
  %3169 = vmatmul.mubr.f32.gmra.mrb[0].mxu0 %v3168
  %v3170 = vpop.f32.mrb[0].mxu0
  %v3171 = vadd.f32 0.0, %v3170
  %v3172 = vpop.f32.mrb[0].mxu0
  %3173 = vmatprep.mubr.f32.mxu0 0.0
  %v3174 = vand.u32 %v1889, 4294901760
  %v3175 = vsub.f32 %v1889, %v3174
  %v3176 = vand.u32 %v3175, 4294901760
  %v3177 = vsub.f32 %v3175, %v3176
  %v3178 = vand.u32 %v3177, 4294901760
  %3179 = vmatmul.mubr.f32.gmra.mrb[0].mxu0 %v3178
  %v3180 = vpop.f32.mrb[0].mxu0
  %v3181 = vadd.f32 0.0, %v3180
  %v3182 = vpop.f32.mrb[0].mxu0
  %3183 = vdwg.mxu0
  %3184 = vmatprep.subr.mxu0 0.0
  %v3185 = vand.u32 %v3066, 4294901760
  %v3186 = vsub.f32 %v3066, %v3185
  %v3187 = vand.u32 %v3186, 4294901760
  %v3188 = vsub.f32 %v3186, %v3187
  %v3189 = vand.u32 %v3188, 4294901760
  %3190 = vmatpush1.msra.mxu0 %v3189
  %3191 = vmatprep.subr.mxu0 0.0
  %3192 = vmatpush1.msra.mxu0 0.0
  %3193 = vmatprep.subr.mxu0 0.0
  %3194 = vmatpush1.msra.mxu0 0.0
  %3195 = vmatprep.subr.mxu0 0.0
  %3196 = vmatpush1.msra.mxu0 0.0
  %3197 = vmatprep.subr.mxu0 0.0
  %3198 = vmatpush1.msra.mxu0 0.0
  %3199 = vmatprep.subr.mxu0 0.0
  %3200 = vmatpush1.msra.mxu0 0.0
  %3201 = vmatprep.subr.mxu0 0.0
  %3202 = vmatpush1.msra.mxu0 0.0
  %3203 = vmatprep.subr.mxu0 0.0
  %3204 = vmatpush1.msra.mxu0 0.0
  %3205 = vmatprep.subr.mxu0 0.0
  %3206 = vmatpush1.msra.mxu0 0.0
  %3207 = vmatprep.subr.mxu0 0.0
  %3208 = vmatpush1.msra.mxu0 0.0
  %3209 = vmatprep.subr.mxu0 0.0
  %3210 = vmatpush1.msra.mxu0 0.0
  %3211 = vmatprep.subr.mxu0 0.0
  %3212 = vmatpush1.msra.mxu0 0.0
  %3213 = vmatprep.subr.mxu0 0.0
  %3214 = vmatpush1.msra.mxu0 0.0
  %3215 = vmatprep.subr.mxu0 0.0
  %3216 = vmatpush1.msra.mxu0 0.0
  %3217 = vmatprep.subr.mxu0 0.0
  %3218 = vmatpush1.msra.mxu0 0.0
  %3219 = vmatprep.subr.mxu0 0.0
  %3220 = vmatpush1.msra.mxu0 0.0
  %3221 = vmatprep.subr.mxu0 0.0
  %3222 = vmatpush1.msra.mxu0 0.0
  %3223 = vmatprep.subr.mxu0 0.0
  %3224 = vmatpush1.msra.mxu0 0.0
  %3225 = vmatprep.subr.mxu0 0.0
  %3226 = vmatpush1.msra.mxu0 0.0
  %3227 = vmatprep.subr.mxu0 0.0
  %3228 = vmatpush1.msra.mxu0 0.0
  %3229 = vmatprep.subr.mxu0 0.0
  %3230 = vmatpush1.msra.mxu0 0.0
  %3231 = vmatprep.subr.mxu0 0.0
  %3232 = vmatpush1.msra.mxu0 0.0
  %3233 = vmatprep.subr.mxu0 0.0
  %3234 = vmatpush1.msra.mxu0 0.0
  %3235 = vmatprep.subr.mxu0 0.0
  %3236 = vmatpush1.msra.mxu0 0.0
  %3237 = vmatprep.subr.mxu0 0.0
  %3238 = vmatpush1.msra.mxu0 0.0
  %3239 = vmatprep.subr.mxu0 0.0
  %3240 = vmatpush1.msra.mxu0 0.0
  %3241 = vmatprep.subr.mxu0 0.0
  %3242 = vmatpush1.msra.mxu0 0.0
  %3243 = vmatprep.subr.mxu0 0.0
  %3244 = vmatpush1.msra.mxu0 0.0
  %3245 = vmatprep.subr.mxu0 0.0
  %3246 = vmatpush1.msra.mxu0 0.0
  %3247 = vmatprep.subr.mxu0 0.0
  %3248 = vmatpush1.msra.mxu0 0.0
  %3249 = vmatprep.subr.mxu0 0.0
  %3250 = vmatpush1.msra.mxu0 0.0
  %3251 = vmatprep.subr.mxu0 0.0
  %3252 = vmatpush1.msra.mxu0 0.0
  %3253 = vmatprep.mubr.f32.mxu0 0.0
  %v3254 = vand.u32 %v1877, 4294901760
  %3255 = vmatmul.mubr.f32.gmra.mrb[0].mxu0 %v3254
  %v3256 = vpop.f32.mrb[0].mxu0
  %v3257 = vadd.f32 %v3141, %v3256
  %v3258 = vpop.f32.mrb[0].mxu0
  %3259 = vmatprep.mubr.f32.mxu0 0.0
  %v3260 = vand.u32 %v1880, 4294901760
  %3261 = vmatmul.mubr.f32.gmra.mrb[0].mxu0 %v3260
  %v3262 = vpop.f32.mrb[0].mxu0
  %v3263 = vadd.f32 %v3151, %v3262
  %v3264 = vpop.f32.mrb[0].mxu0
  %3265 = vmatprep.mubr.f32.mxu0 0.0
  %v3266 = vand.u32 %v1883, 4294901760
  %3267 = vmatmul.mubr.f32.gmra.mrb[0].mxu0 %v3266
  %v3268 = vpop.f32.mrb[0].mxu0
  %v3269 = vadd.f32 %v3161, %v3268
  %v3270 = vpop.f32.mrb[0].mxu0
  %3271 = vmatprep.mubr.f32.mxu0 0.0
  %v3272 = vand.u32 %v1886, 4294901760
  %3273 = vmatmul.mubr.f32.gmra.mrb[0].mxu0 %v3272
  %v3274 = vpop.f32.mrb[0].mxu0
  %v3275 = vadd.f32 %v3171, %v3274
  %v3276 = vpop.f32.mrb[0].mxu0
  %3277 = vmatprep.mubr.f32.mxu0 0.0
  %v3278 = vand.u32 %v1889, 4294901760
  %3279 = vmatmul.mubr.f32.gmra.mrb[0].mxu0 %v3278
  %v3280 = vpop.f32.mrb[0].mxu0
  %v3281 = vadd.f32 %v3181, %v3280
  %v3282 = vpop.f32.mrb[0].mxu0
  %3283 = vdwg.mxu0
  %3284 = vmatprep.subr.mxu0 0.0
  %v3285 = vand.u32 %v3066, 4294901760
  %v3286 = vsub.f32 %v3066, %v3285
  %3287 = vmatpush1.msra.mxu0 %v3286
  %3288 = vmatprep.subr.mxu0 0.0
  %3289 = vmatpush1.msra.mxu0 0.0
  %3290 = vmatprep.subr.mxu0 0.0
  %3291 = vmatpush1.msra.mxu0 0.0
  %3292 = vmatprep.subr.mxu0 0.0
  %3293 = vmatpush1.msra.mxu0 0.0
  %3294 = vmatprep.subr.mxu0 0.0
  %3295 = vmatpush1.msra.mxu0 0.0
  %3296 = vmatprep.subr.mxu0 0.0
  %3297 = vmatpush1.msra.mxu0 0.0
  %3298 = vmatprep.subr.mxu0 0.0
  %3299 = vmatpush1.msra.mxu0 0.0
  %3300 = vmatprep.subr.mxu0 0.0
  %3301 = vmatpush1.msra.mxu0 0.0
  %3302 = vmatprep.subr.mxu0 0.0
  %3303 = vmatpush1.msra.mxu0 0.0
  %3304 = vmatprep.subr.mxu0 0.0
  %3305 = vmatpush1.msra.mxu0 0.0
  %3306 = vmatprep.subr.mxu0 0.0
  %3307 = vmatpush1.msra.mxu0 0.0
  %3308 = vmatprep.subr.mxu0 0.0
  %3309 = vmatpush1.msra.mxu0 0.0
  %3310 = vmatprep.subr.mxu0 0.0
  %3311 = vmatpush1.msra.mxu0 0.0
  %3312 = vmatprep.subr.mxu0 0.0
  %3313 = vmatpush1.msra.mxu0 0.0
  %3314 = vmatprep.subr.mxu0 0.0
  %3315 = vmatpush1.msra.mxu0 0.0
  %3316 = vmatprep.subr.mxu0 0.0
  %3317 = vmatpush1.msra.mxu0 0.0
  %3318 = vmatprep.subr.mxu0 0.0
  %3319 = vmatpush1.msra.mxu0 0.0
  %3320 = vmatprep.subr.mxu0 0.0
  %3321 = vmatpush1.msra.mxu0 0.0
  %3322 = vmatprep.subr.mxu0 0.0
  %3323 = vmatpush1.msra.mxu0 0.0
  %3324 = vmatprep.subr.mxu0 0.0
  %3325 = vmatpush1.msra.mxu0 0.0
  %3326 = vmatprep.subr.mxu0 0.0
  %3327 = vmatpush1.msra.mxu0 0.0
  %3328 = vmatprep.subr.mxu0 0.0
  %3329 = vmatpush1.msra.mxu0 0.0
  %3330 = vmatprep.subr.mxu0 0.0
  %3331 = vmatpush1.msra.mxu0 0.0
  %3332 = vmatprep.subr.mxu0 0.0
  %3333 = vmatpush1.msra.mxu0 0.0
  %3334 = vmatprep.subr.mxu0 0.0
  %3335 = vmatpush1.msra.mxu0 0.0
  %3336 = vmatprep.subr.mxu0 0.0
  %3337 = vmatpush1.msra.mxu0 0.0
  %3338 = vmatprep.subr.mxu0 0.0
  %3339 = vmatpush1.msra.mxu0 0.0
  %3340 = vmatprep.subr.mxu0 0.0
  %3341 = vmatpush1.msra.mxu0 0.0
  %3342 = vmatprep.subr.mxu0 0.0
  %3343 = vmatpush1.msra.mxu0 0.0
  %3344 = vmatprep.subr.mxu0 0.0
  %3345 = vmatpush1.msra.mxu0 0.0
  %3346 = vmatprep.subr.mxu0 0.0
  %3347 = vmatpush1.msra.mxu0 0.0
  %3348 = vmatprep.subr.mxu0 0.0
  %3349 = vmatpush1.msra.mxu0 0.0
  %3350 = vmatprep.mubr.f32.mxu0 0.0
  %v3351 = vand.u32 %v1877, 4294901760
  %v3352 = vsub.f32 %v1877, %v3351
  %3353 = vmatmul.mubr.f32.gmra.mrb[0].mxu0 %v3352
  %v3354 = vpop.f32.mrb[0].mxu0
  %v3355 = vadd.f32 %v3257, %v3354
  %v3356 = vpop.f32.mrb[0].mxu0
  %3357 = vmatprep.mubr.f32.mxu0 0.0
  %v3358 = vand.u32 %v1880, 4294901760
  %v3359 = vsub.f32 %v1880, %v3358
  %3360 = vmatmul.mubr.f32.gmra.mrb[0].mxu0 %v3359
  %v3361 = vpop.f32.mrb[0].mxu0
  %v3362 = vadd.f32 %v3263, %v3361
  %v3363 = vpop.f32.mrb[0].mxu0
  %3364 = vmatprep.mubr.f32.mxu0 0.0
  %v3365 = vand.u32 %v1883, 4294901760
  %v3366 = vsub.f32 %v1883, %v3365
  %3367 = vmatmul.mubr.f32.gmra.mrb[0].mxu0 %v3366
  %v3368 = vpop.f32.mrb[0].mxu0
  %v3369 = vadd.f32 %v3269, %v3368
  %v3370 = vpop.f32.mrb[0].mxu0
  %3371 = vmatprep.mubr.f32.mxu0 0.0
  %v3372 = vand.u32 %v1886, 4294901760
  %v3373 = vsub.f32 %v1886, %v3372
  %3374 = vmatmul.mubr.f32.gmra.mrb[0].mxu0 %v3373
  %v3375 = vpop.f32.mrb[0].mxu0
  %v3376 = vadd.f32 %v3275, %v3375
  %v3377 = vpop.f32.mrb[0].mxu0
  %3378 = vmatprep.mubr.f32.mxu0 0.0
  %v3379 = vand.u32 %v1889, 4294901760
  %v3380 = vsub.f32 %v1889, %v3379
  %3381 = vmatmul.mubr.f32.gmra.mrb[0].mxu0 %v3380
  %v3382 = vpop.f32.mrb[0].mxu0
  %v3383 = vadd.f32 %v3281, %v3382
  %v3384 = vpop.f32.mrb[0].mxu0
  %3385 = vdwg.mxu0
  %3386 = vmatprep.subr.mxu0 0.0
  %v3387 = vand.u32 %v3066, 4294901760
  %3388 = vmatpush1.msra.mxu0 %v3387
  %3389 = vmatprep.subr.mxu0 0.0
  %3390 = vmatpush1.msra.mxu0 0.0
  %3391 = vmatprep.subr.mxu0 0.0
  %3392 = vmatpush1.msra.mxu0 0.0
  %3393 = vmatprep.subr.mxu0 0.0
  %3394 = vmatpush1.msra.mxu0 0.0
  %3395 = vmatprep.subr.mxu0 0.0
  %3396 = vmatpush1.msra.mxu0 0.0
  %3397 = vmatprep.subr.mxu0 0.0
  %3398 = vmatpush1.msra.mxu0 0.0
  %3399 = vmatprep.subr.mxu0 0.0
  %3400 = vmatpush1.msra.mxu0 0.0
  %3401 = vmatprep.subr.mxu0 0.0
  %3402 = vmatpush1.msra.mxu0 0.0
  %3403 = vmatprep.subr.mxu0 0.0
  %3404 = vmatpush1.msra.mxu0 0.0
  %3405 = vmatprep.subr.mxu0 0.0
  %3406 = vmatpush1.msra.mxu0 0.0
  %3407 = vmatprep.subr.mxu0 0.0
  %3408 = vmatpush1.msra.mxu0 0.0
  %3409 = vmatprep.subr.mxu0 0.0
  %3410 = vmatpush1.msra.mxu0 0.0
  %3411 = vmatprep.subr.mxu0 0.0
  %3412 = vmatpush1.msra.mxu0 0.0
  %3413 = vmatprep.subr.mxu0 0.0
  %3414 = vmatpush1.msra.mxu0 0.0
  %3415 = vmatprep.subr.mxu0 0.0
  %3416 = vmatpush1.msra.mxu0 0.0
  %3417 = vmatprep.subr.mxu0 0.0
  %3418 = vmatpush1.msra.mxu0 0.0
  %3419 = vmatprep.subr.mxu0 0.0
  %3420 = vmatpush1.msra.mxu0 0.0
  %3421 = vmatprep.subr.mxu0 0.0
  %3422 = vmatpush1.msra.mxu0 0.0
  %3423 = vmatprep.subr.mxu0 0.0
  %3424 = vmatpush1.msra.mxu0 0.0
  %3425 = vmatprep.subr.mxu0 0.0
  %3426 = vmatpush1.msra.mxu0 0.0
  %3427 = vmatprep.subr.mxu0 0.0
  %3428 = vmatpush1.msra.mxu0 0.0
  %3429 = vmatprep.subr.mxu0 0.0
  %3430 = vmatpush1.msra.mxu0 0.0
  %3431 = vmatprep.subr.mxu0 0.0
  %3432 = vmatpush1.msra.mxu0 0.0
  %3433 = vmatprep.subr.mxu0 0.0
  %3434 = vmatpush1.msra.mxu0 0.0
  %3435 = vmatprep.subr.mxu0 0.0
  %3436 = vmatpush1.msra.mxu0 0.0
  %3437 = vmatprep.subr.mxu0 0.0
  %3438 = vmatpush1.msra.mxu0 0.0
  %3439 = vmatprep.subr.mxu0 0.0
  %3440 = vmatpush1.msra.mxu0 0.0
  %3441 = vmatprep.subr.mxu0 0.0
  %3442 = vmatpush1.msra.mxu0 0.0
  %3443 = vmatprep.subr.mxu0 0.0
  %3444 = vmatpush1.msra.mxu0 0.0
  %3445 = vmatprep.subr.mxu0 0.0
  %3446 = vmatpush1.msra.mxu0 0.0
  %3447 = vmatprep.subr.mxu0 0.0
  %3448 = vmatpush1.msra.mxu0 0.0
  %3449 = vmatprep.subr.mxu0 0.0
  %3450 = vmatpush1.msra.mxu0 0.0
  %3451 = vmatprep.mubr.f32.mxu0 0.0
  %v3452 = vand.u32 %v1877, 4294901760
  %v3453 = vsub.f32 %v1877, %v3452
  %v3454 = vand.u32 %v3453, 4294901760
  %3455 = vmatmul.mubr.f32.gmra.mrb[0].mxu0 %v3454
  %v3456 = vpop.f32.mrb[0].mxu0
  %v3457 = vadd.f32 %v3355, %v3456
  %v3458 = vpop.f32.mrb[0].mxu0
  %3459 = vmatprep.mubr.f32.mxu0 0.0
  %v3460 = vand.u32 %v1880, 4294901760
  %v3461 = vsub.f32 %v1880, %v3460
  %v3462 = vand.u32 %v3461, 4294901760
  %3463 = vmatmul.mubr.f32.gmra.mrb[0].mxu0 %v3462
  %v3464 = vpop.f32.mrb[0].mxu0
  %v3465 = vadd.f32 %v3362, %v3464
  %v3466 = vpop.f32.mrb[0].mxu0
  %3467 = vmatprep.mubr.f32.mxu0 0.0
  %v3468 = vand.u32 %v1883, 4294901760
  %v3469 = vsub.f32 %v1883, %v3468
  %v3470 = vand.u32 %v3469, 4294901760
  %3471 = vmatmul.mubr.f32.gmra.mrb[0].mxu0 %v3470
  %v3472 = vpop.f32.mrb[0].mxu0
  %v3473 = vadd.f32 %v3369, %v3472
  %v3474 = vpop.f32.mrb[0].mxu0
  %3475 = vmatprep.mubr.f32.mxu0 0.0
  %v3476 = vand.u32 %v1886, 4294901760
  %v3477 = vsub.f32 %v1886, %v3476
  %v3478 = vand.u32 %v3477, 4294901760
  %3479 = vmatmul.mubr.f32.gmra.mrb[0].mxu0 %v3478
  %v3480 = vpop.f32.mrb[0].mxu0
  %v3481 = vadd.f32 %v3376, %v3480
  %v3482 = vpop.f32.mrb[0].mxu0
  %3483 = vmatprep.mubr.f32.mxu0 0.0
  %v3484 = vand.u32 %v1889, 4294901760
  %v3485 = vsub.f32 %v1889, %v3484
  %v3486 = vand.u32 %v3485, 4294901760
  %3487 = vmatmul.mubr.f32.gmra.mrb[0].mxu0 %v3486
  %v3488 = vpop.f32.mrb[0].mxu0
  %v3489 = vadd.f32 %v3383, %v3488
  %v3490 = vpop.f32.mrb[0].mxu0
  %3491 = vdwg.mxu0
  %3492 = vmatprep.subr.mxu0 0.0
  %v3493 = vand.u32 %v3066, 4294901760
  %v3494 = vsub.f32 %v3066, %v3493
  %v3495 = vand.u32 %v3494, 4294901760
  %3496 = vmatpush1.msra.mxu0 %v3495
  %3497 = vmatprep.subr.mxu0 0.0
  %3498 = vmatpush1.msra.mxu0 0.0
  %3499 = vmatprep.subr.mxu0 0.0
  %3500 = vmatpush1.msra.mxu0 0.0
  %3501 = vmatprep.subr.mxu0 0.0
  %3502 = vmatpush1.msra.mxu0 0.0
  %3503 = vmatprep.subr.mxu0 0.0
  %3504 = vmatpush1.msra.mxu0 0.0
  %3505 = vmatprep.subr.mxu0 0.0
  %3506 = vmatpush1.msra.mxu0 0.0
  %3507 = vmatprep.subr.mxu0 0.0
  %3508 = vmatpush1.msra.mxu0 0.0
  %3509 = vmatprep.subr.mxu0 0.0
  %3510 = vmatpush1.msra.mxu0 0.0
  %3511 = vmatprep.subr.mxu0 0.0
  %3512 = vmatpush1.msra.mxu0 0.0
  %3513 = vmatprep.subr.mxu0 0.0
  %3514 = vmatpush1.msra.mxu0 0.0
  %3515 = vmatprep.subr.mxu0 0.0
  %3516 = vmatpush1.msra.mxu0 0.0
  %3517 = vmatprep.subr.mxu0 0.0
  %3518 = vmatpush1.msra.mxu0 0.0
  %3519 = vmatprep.subr.mxu0 0.0
  %3520 = vmatpush1.msra.mxu0 0.0
  %3521 = vmatprep.subr.mxu0 0.0
  %3522 = vmatpush1.msra.mxu0 0.0
  %3523 = vmatprep.subr.mxu0 0.0
  %3524 = vmatpush1.msra.mxu0 0.0
  %3525 = vmatprep.subr.mxu0 0.0
  %3526 = vmatpush1.msra.mxu0 0.0
  %3527 = vmatprep.subr.mxu0 0.0
  %3528 = vmatpush1.msra.mxu0 0.0
  %3529 = vmatprep.subr.mxu0 0.0
  %3530 = vmatpush1.msra.mxu0 0.0
  %3531 = vmatprep.subr.mxu0 0.0
  %3532 = vmatpush1.msra.mxu0 0.0
  %3533 = vmatprep.subr.mxu0 0.0
  %3534 = vmatpush1.msra.mxu0 0.0
  %3535 = vmatprep.subr.mxu0 0.0
  %3536 = vmatpush1.msra.mxu0 0.0
  %3537 = vmatprep.subr.mxu0 0.0
  %3538 = vmatpush1.msra.mxu0 0.0
  %3539 = vmatprep.subr.mxu0 0.0
  %3540 = vmatpush1.msra.mxu0 0.0
  %3541 = vmatprep.subr.mxu0 0.0
  %3542 = vmatpush1.msra.mxu0 0.0
  %3543 = vmatprep.subr.mxu0 0.0
  %3544 = vmatpush1.msra.mxu0 0.0
  %3545 = vmatprep.subr.mxu0 0.0
  %3546 = vmatpush1.msra.mxu0 0.0
  %3547 = vmatprep.subr.mxu0 0.0
  %3548 = vmatpush1.msra.mxu0 0.0
  %3549 = vmatprep.subr.mxu0 0.0
  %3550 = vmatpush1.msra.mxu0 0.0
  %3551 = vmatprep.subr.mxu0 0.0
  %3552 = vmatpush1.msra.mxu0 0.0
  %3553 = vmatprep.subr.mxu0 0.0
  %3554 = vmatpush1.msra.mxu0 0.0
  %3555 = vmatprep.subr.mxu0 0.0
  %3556 = vmatpush1.msra.mxu0 0.0
  %3557 = vmatprep.subr.mxu0 0.0
  %3558 = vmatpush1.msra.mxu0 0.0
  %3559 = vmatprep.mubr.f32.mxu0 0.0
  %v3560 = vand.u32 %v1877, 4294901760
  %3561 = vmatmul.mubr.f32.gmra.mrb[0].mxu0 %v3560
  %v3562 = vpop.f32.mrb[0].mxu0
  %v3563 = vadd.f32 %v3457, %v3562
  %v3564 = vpop.f32.mrb[0].mxu0
  %3565 = vmatprep.mubr.f32.mxu0 0.0
  %v3566 = vand.u32 %v1880, 4294901760
  %3567 = vmatmul.mubr.f32.gmra.mrb[0].mxu0 %v3566
  %v3568 = vpop.f32.mrb[0].mxu0
  %v3569 = vadd.f32 %v3465, %v3568
  %v3570 = vpop.f32.mrb[0].mxu0
  %3571 = vmatprep.mubr.f32.mxu0 0.0
  %v3572 = vand.u32 %v1883, 4294901760
  %3573 = vmatmul.mubr.f32.gmra.mrb[0].mxu0 %v3572
  %v3574 = vpop.f32.mrb[0].mxu0
  %v3575 = vadd.f32 %v3473, %v3574
  %v3576 = vpop.f32.mrb[0].mxu0
  %3577 = vmatprep.mubr.f32.mxu0 0.0
  %v3578 = vand.u32 %v1886, 4294901760
  %3579 = vmatmul.mubr.f32.gmra.mrb[0].mxu0 %v3578
  %v3580 = vpop.f32.mrb[0].mxu0
  %v3581 = vadd.f32 %v3481, %v3580
  %v3582 = vpop.f32.mrb[0].mxu0
  %3583 = vmatprep.mubr.f32.mxu0 0.0
  %v3584 = vand.u32 %v1889, 4294901760
  %3585 = vmatmul.mubr.f32.gmra.mrb[0].mxu0 %v3584
  %v3586 = vpop.f32.mrb[0].mxu0
  %v3587 = vadd.f32 %v3489, %v3586
  %v3588 = vpop.f32.mrb[0].mxu0
  %3589 = vdwg.mxu0
  %3590 = vmatprep.subr.mxu0 0.0
  %v3591 = vand.u32 %v3066, 4294901760
  %3592 = vmatpush1.msra.mxu0 %v3591
  %3593 = vmatprep.subr.mxu0 0.0
  %3594 = vmatpush1.msra.mxu0 0.0
  %3595 = vmatprep.subr.mxu0 0.0
  %3596 = vmatpush1.msra.mxu0 0.0
  %3597 = vmatprep.subr.mxu0 0.0
  %3598 = vmatpush1.msra.mxu0 0.0
  %3599 = vmatprep.subr.mxu0 0.0
  %3600 = vmatpush1.msra.mxu0 0.0
  %3601 = vmatprep.subr.mxu0 0.0
  %3602 = vmatpush1.msra.mxu0 0.0
  %3603 = vmatprep.subr.mxu0 0.0
  %3604 = vmatpush1.msra.mxu0 0.0
  %3605 = vmatprep.subr.mxu0 0.0
  %3606 = vmatpush1.msra.mxu0 0.0
  %3607 = vmatprep.subr.mxu0 0.0
  %3608 = vmatpush1.msra.mxu0 0.0
  %3609 = vmatprep.subr.mxu0 0.0
  %3610 = vmatpush1.msra.mxu0 0.0
  %3611 = vmatprep.subr.mxu0 0.0
  %3612 = vmatpush1.msra.mxu0 0.0
  %3613 = vmatprep.subr.mxu0 0.0
  %3614 = vmatpush1.msra.mxu0 0.0
  %3615 = vmatprep.subr.mxu0 0.0
  %3616 = vmatpush1.msra.mxu0 0.0
  %3617 = vmatprep.subr.mxu0 0.0
  %3618 = vmatpush1.msra.mxu0 0.0
  %3619 = vmatprep.subr.mxu0 0.0
  %3620 = vmatpush1.msra.mxu0 0.0
  %3621 = vmatprep.subr.mxu0 0.0
  %3622 = vmatpush1.msra.mxu0 0.0
  %3623 = vmatprep.subr.mxu0 0.0
  %3624 = vmatpush1.msra.mxu0 0.0
  %3625 = vmatprep.subr.mxu0 0.0
  %3626 = vmatpush1.msra.mxu0 0.0
  %3627 = vmatprep.subr.mxu0 0.0
  %3628 = vmatpush1.msra.mxu0 0.0
  %3629 = vmatprep.subr.mxu0 0.0
  %3630 = vmatpush1.msra.mxu0 0.0
  %3631 = vmatprep.subr.mxu0 0.0
  %3632 = vmatpush1.msra.mxu0 0.0
  %3633 = vmatprep.subr.mxu0 0.0
  %3634 = vmatpush1.msra.mxu0 0.0
  %3635 = vmatprep.subr.mxu0 0.0
  %3636 = vmatpush1.msra.mxu0 0.0
  %3637 = vmatprep.subr.mxu0 0.0
  %3638 = vmatpush1.msra.mxu0 0.0
  %3639 = vmatprep.subr.mxu0 0.0
  %3640 = vmatpush1.msra.mxu0 0.0
  %3641 = vmatprep.subr.mxu0 0.0
  %3642 = vmatpush1.msra.mxu0 0.0
  %3643 = vmatprep.subr.mxu0 0.0
  %3644 = vmatpush1.msra.mxu0 0.0
  %3645 = vmatprep.subr.mxu0 0.0
  %3646 = vmatpush1.msra.mxu0 0.0
  %3647 = vmatprep.subr.mxu0 0.0
  %3648 = vmatpush1.msra.mxu0 0.0
  %3649 = vmatprep.subr.mxu0 0.0
  %3650 = vmatpush1.msra.mxu0 0.0
  %3651 = vmatprep.subr.mxu0 0.0
  %3652 = vmatpush1.msra.mxu0 0.0
  %3653 = vmatprep.subr.mxu0 0.0
  %3654 = vmatpush1.msra.mxu0 0.0
  %3655 = vmatprep.mubr.f32.mxu0 0.0
  %v3656 = vand.u32 %v1877, 4294901760
  %3657 = vmatmul.mubr.f32.gmra.mrb[0].mxu0 %v3656
  %v3658 = vpop.f32.mrb[0].mxu0
  %v3659 = vadd.f32 %v3563, %v3658
  %v3660 = vpop.f32.mrb[0].mxu0
  %3661 = vmatprep.mubr.f32.mxu0 0.0
  %v3662 = vand.u32 %v1880, 4294901760
  %3663 = vmatmul.mubr.f32.gmra.mrb[0].mxu0 %v3662
  %v3664 = vpop.f32.mrb[0].mxu0
  %v3665 = vadd.f32 %v3569, %v3664
  %v3666 = vpop.f32.mrb[0].mxu0
  %3667 = vmatprep.mubr.f32.mxu0 0.0
  %v3668 = vand.u32 %v1883, 4294901760
  %3669 = vmatmul.mubr.f32.gmra.mrb[0].mxu0 %v3668
  %v3670 = vpop.f32.mrb[0].mxu0
  %v3671 = vadd.f32 %v3575, %v3670
  %v3672 = vpop.f32.mrb[0].mxu0
  %3673 = vmatprep.mubr.f32.mxu0 0.0
  %v3674 = vand.u32 %v1886, 4294901760
  %3675 = vmatmul.mubr.f32.gmra.mrb[0].mxu0 %v3674
  %v3676 = vpop.f32.mrb[0].mxu0
  %v3677 = vadd.f32 %v3581, %v3676
  %v3678 = vpop.f32.mrb[0].mxu0
  %3679 = vmatprep.mubr.f32.mxu0 0.0
  %v3680 = vand.u32 %v1889, 4294901760
  %3681 = vmatmul.mubr.f32.gmra.mrb[0].mxu0 %v3680
  %v3682 = vpop.f32.mrb[0].mxu0
  %v3683 = vadd.f32 %v3587, %v3682
  %v3684 = vpop.f32.mrb[0].mxu0
  %3685 = vdwg.mxu0
  %3687 = vset.pattern.permute.xlu0 0
  %3688 = vperm.xlu0 %3687, %v3659
  %v3689 = vpop.permute.xlu0 %3688
  %3692 = vset.pattern.permute.xlu0 0
  %3693 = vperm.xlu0 %3692, %v3665
  %v3694 = vpop.permute.xlu0 %3693
  %3697 = vset.pattern.permute.xlu0 0
  %3698 = vperm.xlu0 %3697, %v3671
  %v3699 = vpop.permute.xlu0 %3698
  %3702 = vset.pattern.permute.xlu0 0
  %3703 = vperm.xlu0 %3702, %v3677
  %v3704 = vpop.permute.xlu0 %3703
  %3707 = vset.pattern.permute.xlu0 0
  %3708 = vperm.xlu0 %3707, %v3683
  %v3709 = vpop.permute.xlu0 %3708
  %v3711 = vmul.f32 %v2538, %v3689
  %v3712 = vmul.f32 %v2539, %v3694
  %v3713 = vmul.f32 %v2540, %v3699
  %v3714 = vmul.f32 %v2541, %v3704
  %v3715 = vmul.f32 %v2542, %v3709
  %v3717 = vsel %vm1891, %v28, 0
  %3719 = vmatprep.subr.mxu0 0.0
  %v3720 = vand.u32 %v3717, 4294901760
  %3721 = vmatpush1.msra.mxu0 %v3720
  %3722 = vmatprep.subr.mxu0 0.0
  %3723 = vmatpush1.msra.mxu0 0.0
  %3724 = vmatprep.subr.mxu0 0.0
  %3725 = vmatpush1.msra.mxu0 0.0
  %3726 = vmatprep.subr.mxu0 0.0
  %3727 = vmatpush1.msra.mxu0 0.0
  %3728 = vmatprep.subr.mxu0 0.0
  %3729 = vmatpush1.msra.mxu0 0.0
  %3730 = vmatprep.subr.mxu0 0.0
  %3731 = vmatpush1.msra.mxu0 0.0
  %3732 = vmatprep.subr.mxu0 0.0
  %3733 = vmatpush1.msra.mxu0 0.0
  %3734 = vmatprep.subr.mxu0 0.0
  %3735 = vmatpush1.msra.mxu0 0.0
  %3736 = vmatprep.subr.mxu0 0.0
  %3737 = vmatpush1.msra.mxu0 0.0
  %3738 = vmatprep.subr.mxu0 0.0
  %3739 = vmatpush1.msra.mxu0 0.0
  %3740 = vmatprep.subr.mxu0 0.0
  %3741 = vmatpush1.msra.mxu0 0.0
  %3742 = vmatprep.subr.mxu0 0.0
  %3743 = vmatpush1.msra.mxu0 0.0
  %3744 = vmatprep.subr.mxu0 0.0
  %3745 = vmatpush1.msra.mxu0 0.0
  %3746 = vmatprep.subr.mxu0 0.0
  %3747 = vmatpush1.msra.mxu0 0.0
  %3748 = vmatprep.subr.mxu0 0.0
  %3749 = vmatpush1.msra.mxu0 0.0
  %3750 = vmatprep.subr.mxu0 0.0
  %3751 = vmatpush1.msra.mxu0 0.0
  %3752 = vmatprep.subr.mxu0 0.0
  %3753 = vmatpush1.msra.mxu0 0.0
  %3754 = vmatprep.subr.mxu0 0.0
  %3755 = vmatpush1.msra.mxu0 0.0
  %3756 = vmatprep.subr.mxu0 0.0
  %3757 = vmatpush1.msra.mxu0 0.0
  %3758 = vmatprep.subr.mxu0 0.0
  %3759 = vmatpush1.msra.mxu0 0.0
  %3760 = vmatprep.subr.mxu0 0.0
  %3761 = vmatpush1.msra.mxu0 0.0
  %3762 = vmatprep.subr.mxu0 0.0
  %3763 = vmatpush1.msra.mxu0 0.0
  %3764 = vmatprep.subr.mxu0 0.0
  %3765 = vmatpush1.msra.mxu0 0.0
  %3766 = vmatprep.subr.mxu0 0.0
  %3767 = vmatpush1.msra.mxu0 0.0
  %3768 = vmatprep.subr.mxu0 0.0
  %3769 = vmatpush1.msra.mxu0 0.0
  %3770 = vmatprep.subr.mxu0 0.0
  %3771 = vmatpush1.msra.mxu0 0.0
  %3772 = vmatprep.subr.mxu0 0.0
  %3773 = vmatpush1.msra.mxu0 0.0
  %3774 = vmatprep.subr.mxu0 0.0
  %3775 = vmatpush1.msra.mxu0 0.0
  %3776 = vmatprep.subr.mxu0 0.0
  %3777 = vmatpush1.msra.mxu0 0.0
  %3778 = vmatprep.subr.mxu0 0.0
  %3779 = vmatpush1.msra.mxu0 0.0
  %3780 = vmatprep.subr.mxu0 0.0
  %3781 = vmatpush1.msra.mxu0 0.0
  %3782 = vmatprep.subr.mxu0 0.0
  %3783 = vmatpush1.msra.mxu0 0.0
  %3784 = vmatprep.mubr.f32.mxu0 0.0
  %v3785 = vand.u32 %v1877, 4294901760
  %v3786 = vsub.f32 %v1877, %v3785
  %v3787 = vand.u32 %v3786, 4294901760
  %v3788 = vsub.f32 %v3786, %v3787
  %v3789 = vand.u32 %v3788, 4294901760
  %3790 = vmatmul.mubr.f32.gmra.mrb[0].mxu0 %v3789
  %v3791 = vpop.f32.mrb[0].mxu0
  %v3792 = vadd.f32 0.0, %v3791
  %v3793 = vpop.f32.mrb[0].mxu0
  %3794 = vmatprep.mubr.f32.mxu0 0.0
  %v3795 = vand.u32 %v1880, 4294901760
  %v3796 = vsub.f32 %v1880, %v3795
  %v3797 = vand.u32 %v3796, 4294901760
  %v3798 = vsub.f32 %v3796, %v3797
  %v3799 = vand.u32 %v3798, 4294901760
  %3800 = vmatmul.mubr.f32.gmra.mrb[0].mxu0 %v3799
  %v3801 = vpop.f32.mrb[0].mxu0
  %v3802 = vadd.f32 0.0, %v3801
  %v3803 = vpop.f32.mrb[0].mxu0
  %3804 = vmatprep.mubr.f32.mxu0 0.0
  %v3805 = vand.u32 %v1883, 4294901760
  %v3806 = vsub.f32 %v1883, %v3805
  %v3807 = vand.u32 %v3806, 4294901760
  %v3808 = vsub.f32 %v3806, %v3807
  %v3809 = vand.u32 %v3808, 4294901760
  %3810 = vmatmul.mubr.f32.gmra.mrb[0].mxu0 %v3809
  %v3811 = vpop.f32.mrb[0].mxu0
  %v3812 = vadd.f32 0.0, %v3811
  %v3813 = vpop.f32.mrb[0].mxu0
  %3814 = vmatprep.mubr.f32.mxu0 0.0
  %v3815 = vand.u32 %v1886, 4294901760
  %v3816 = vsub.f32 %v1886, %v3815
  %v3817 = vand.u32 %v3816, 4294901760
  %v3818 = vsub.f32 %v3816, %v3817
  %v3819 = vand.u32 %v3818, 4294901760
  %3820 = vmatmul.mubr.f32.gmra.mrb[0].mxu0 %v3819
  %v3821 = vpop.f32.mrb[0].mxu0
  %v3822 = vadd.f32 0.0, %v3821
  %v3823 = vpop.f32.mrb[0].mxu0
  %3824 = vmatprep.mubr.f32.mxu0 0.0
  %v3825 = vand.u32 %v1889, 4294901760
  %v3826 = vsub.f32 %v1889, %v3825
  %v3827 = vand.u32 %v3826, 4294901760
  %v3828 = vsub.f32 %v3826, %v3827
  %v3829 = vand.u32 %v3828, 4294901760
  %3830 = vmatmul.mubr.f32.gmra.mrb[0].mxu0 %v3829
  %v3831 = vpop.f32.mrb[0].mxu0
  %v3832 = vadd.f32 0.0, %v3831
  %v3833 = vpop.f32.mrb[0].mxu0
  %3834 = vdwg.mxu0
  %3835 = vmatprep.subr.mxu0 0.0
  %v3836 = vand.u32 %v3717, 4294901760
  %v3837 = vsub.f32 %v3717, %v3836
  %v3838 = vand.u32 %v3837, 4294901760
  %v3839 = vsub.f32 %v3837, %v3838
  %v3840 = vand.u32 %v3839, 4294901760
  %3841 = vmatpush1.msra.mxu0 %v3840
  %3842 = vmatprep.subr.mxu0 0.0
  %3843 = vmatpush1.msra.mxu0 0.0
  %3844 = vmatprep.subr.mxu0 0.0
  %3845 = vmatpush1.msra.mxu0 0.0
  %3846 = vmatprep.subr.mxu0 0.0
  %3847 = vmatpush1.msra.mxu0 0.0
  %3848 = vmatprep.subr.mxu0 0.0
  %3849 = vmatpush1.msra.mxu0 0.0
  %3850 = vmatprep.subr.mxu0 0.0
  %3851 = vmatpush1.msra.mxu0 0.0
  %3852 = vmatprep.subr.mxu0 0.0
  %3853 = vmatpush1.msra.mxu0 0.0
  %3854 = vmatprep.subr.mxu0 0.0
  %3855 = vmatpush1.msra.mxu0 0.0
  %3856 = vmatprep.subr.mxu0 0.0
  %3857 = vmatpush1.msra.mxu0 0.0
  %3858 = vmatprep.subr.mxu0 0.0
  %3859 = vmatpush1.msra.mxu0 0.0
  %3860 = vmatprep.subr.mxu0 0.0
  %3861 = vmatpush1.msra.mxu0 0.0
  %3862 = vmatprep.subr.mxu0 0.0
  %3863 = vmatpush1.msra.mxu0 0.0
  %3864 = vmatprep.subr.mxu0 0.0
  %3865 = vmatpush1.msra.mxu0 0.0
  %3866 = vmatprep.subr.mxu0 0.0
  %3867 = vmatpush1.msra.mxu0 0.0
  %3868 = vmatprep.subr.mxu0 0.0
  %3869 = vmatpush1.msra.mxu0 0.0
  %3870 = vmatprep.subr.mxu0 0.0
  %3871 = vmatpush1.msra.mxu0 0.0
  %3872 = vmatprep.subr.mxu0 0.0
  %3873 = vmatpush1.msra.mxu0 0.0
  %3874 = vmatprep.subr.mxu0 0.0
  %3875 = vmatpush1.msra.mxu0 0.0
  %3876 = vmatprep.subr.mxu0 0.0
  %3877 = vmatpush1.msra.mxu0 0.0
  %3878 = vmatprep.subr.mxu0 0.0
  %3879 = vmatpush1.msra.mxu0 0.0
  %3880 = vmatprep.subr.mxu0 0.0
  %3881 = vmatpush1.msra.mxu0 0.0
  %3882 = vmatprep.subr.mxu0 0.0
  %3883 = vmatpush1.msra.mxu0 0.0
  %3884 = vmatprep.subr.mxu0 0.0
  %3885 = vmatpush1.msra.mxu0 0.0
  %3886 = vmatprep.subr.mxu0 0.0
  %3887 = vmatpush1.msra.mxu0 0.0
  %3888 = vmatprep.subr.mxu0 0.0
  %3889 = vmatpush1.msra.mxu0 0.0
  %3890 = vmatprep.subr.mxu0 0.0
  %3891 = vmatpush1.msra.mxu0 0.0
  %3892 = vmatprep.subr.mxu0 0.0
  %3893 = vmatpush1.msra.mxu0 0.0
  %3894 = vmatprep.subr.mxu0 0.0
  %3895 = vmatpush1.msra.mxu0 0.0
  %3896 = vmatprep.subr.mxu0 0.0
  %3897 = vmatpush1.msra.mxu0 0.0
  %3898 = vmatprep.subr.mxu0 0.0
  %3899 = vmatpush1.msra.mxu0 0.0
  %3900 = vmatprep.subr.mxu0 0.0
  %3901 = vmatpush1.msra.mxu0 0.0
  %3902 = vmatprep.subr.mxu0 0.0
  %3903 = vmatpush1.msra.mxu0 0.0
  %3904 = vmatprep.mubr.f32.mxu0 0.0
  %v3905 = vand.u32 %v1877, 4294901760
  %3906 = vmatmul.mubr.f32.gmra.mrb[0].mxu0 %v3905
  %v3907 = vpop.f32.mrb[0].mxu0
  %v3908 = vadd.f32 %v3792, %v3907
  %v3909 = vpop.f32.mrb[0].mxu0
  %3910 = vmatprep.mubr.f32.mxu0 0.0
  %v3911 = vand.u32 %v1880, 4294901760
  %3912 = vmatmul.mubr.f32.gmra.mrb[0].mxu0 %v3911
  %v3913 = vpop.f32.mrb[0].mxu0
  %v3914 = vadd.f32 %v3802, %v3913
  %v3915 = vpop.f32.mrb[0].mxu0
  %3916 = vmatprep.mubr.f32.mxu0 0.0
  %v3917 = vand.u32 %v1883, 4294901760
  %3918 = vmatmul.mubr.f32.gmra.mrb[0].mxu0 %v3917
  %v3919 = vpop.f32.mrb[0].mxu0
  %v3920 = vadd.f32 %v3812, %v3919
  %v3921 = vpop.f32.mrb[0].mxu0
  %3922 = vmatprep.mubr.f32.mxu0 0.0
  %v3923 = vand.u32 %v1886, 4294901760
  %3924 = vmatmul.mubr.f32.gmra.mrb[0].mxu0 %v3923
  %v3925 = vpop.f32.mrb[0].mxu0
  %v3926 = vadd.f32 %v3822, %v3925
  %v3927 = vpop.f32.mrb[0].mxu0
  %3928 = vmatprep.mubr.f32.mxu0 0.0
  %v3929 = vand.u32 %v1889, 4294901760
  %3930 = vmatmul.mubr.f32.gmra.mrb[0].mxu0 %v3929
  %v3931 = vpop.f32.mrb[0].mxu0
  %v3932 = vadd.f32 %v3832, %v3931
  %v3933 = vpop.f32.mrb[0].mxu0
  %3934 = vdwg.mxu0
  %3935 = vmatprep.subr.mxu0 0.0
  %v3936 = vand.u32 %v3717, 4294901760
  %v3937 = vsub.f32 %v3717, %v3936
  %3938 = vmatpush1.msra.mxu0 %v3937
  %3939 = vmatprep.subr.mxu0 0.0
  %3940 = vmatpush1.msra.mxu0 0.0
  %3941 = vmatprep.subr.mxu0 0.0
  %3942 = vmatpush1.msra.mxu0 0.0
  %3943 = vmatprep.subr.mxu0 0.0
  %3944 = vmatpush1.msra.mxu0 0.0
  %3945 = vmatprep.subr.mxu0 0.0
  %3946 = vmatpush1.msra.mxu0 0.0
  %3947 = vmatprep.subr.mxu0 0.0
  %3948 = vmatpush1.msra.mxu0 0.0
  %3949 = vmatprep.subr.mxu0 0.0
  %3950 = vmatpush1.msra.mxu0 0.0
  %3951 = vmatprep.subr.mxu0 0.0
  %3952 = vmatpush1.msra.mxu0 0.0
  %3953 = vmatprep.subr.mxu0 0.0
  %3954 = vmatpush1.msra.mxu0 0.0
  %3955 = vmatprep.subr.mxu0 0.0
  %3956 = vmatpush1.msra.mxu0 0.0
  %3957 = vmatprep.subr.mxu0 0.0
  %3958 = vmatpush1.msra.mxu0 0.0
  %3959 = vmatprep.subr.mxu0 0.0
  %3960 = vmatpush1.msra.mxu0 0.0
  %3961 = vmatprep.subr.mxu0 0.0
  %3962 = vmatpush1.msra.mxu0 0.0
  %3963 = vmatprep.subr.mxu0 0.0
  %3964 = vmatpush1.msra.mxu0 0.0
  %3965 = vmatprep.subr.mxu0 0.0
  %3966 = vmatpush1.msra.mxu0 0.0
  %3967 = vmatprep.subr.mxu0 0.0
  %3968 = vmatpush1.msra.mxu0 0.0
  %3969 = vmatprep.subr.mxu0 0.0
  %3970 = vmatpush1.msra.mxu0 0.0
  %3971 = vmatprep.subr.mxu0 0.0
  %3972 = vmatpush1.msra.mxu0 0.0
  %3973 = vmatprep.subr.mxu0 0.0
  %3974 = vmatpush1.msra.mxu0 0.0
  %3975 = vmatprep.subr.mxu0 0.0
  %3976 = vmatpush1.msra.mxu0 0.0
  %3977 = vmatprep.subr.mxu0 0.0
  %3978 = vmatpush1.msra.mxu0 0.0
  %3979 = vmatprep.subr.mxu0 0.0
  %3980 = vmatpush1.msra.mxu0 0.0
  %3981 = vmatprep.subr.mxu0 0.0
  %3982 = vmatpush1.msra.mxu0 0.0
  %3983 = vmatprep.subr.mxu0 0.0
  %3984 = vmatpush1.msra.mxu0 0.0
  %3985 = vmatprep.subr.mxu0 0.0
  %3986 = vmatpush1.msra.mxu0 0.0
  %3987 = vmatprep.subr.mxu0 0.0
  %3988 = vmatpush1.msra.mxu0 0.0
  %3989 = vmatprep.subr.mxu0 0.0
  %3990 = vmatpush1.msra.mxu0 0.0
  %3991 = vmatprep.subr.mxu0 0.0
  %3992 = vmatpush1.msra.mxu0 0.0
  %3993 = vmatprep.subr.mxu0 0.0
  %3994 = vmatpush1.msra.mxu0 0.0
  %3995 = vmatprep.subr.mxu0 0.0
  %3996 = vmatpush1.msra.mxu0 0.0
  %3997 = vmatprep.subr.mxu0 0.0
  %3998 = vmatpush1.msra.mxu0 0.0
  %3999 = vmatprep.subr.mxu0 0.0
  %4000 = vmatpush1.msra.mxu0 0.0
  %4001 = vmatprep.mubr.f32.mxu0 0.0
  %v4002 = vand.u32 %v1877, 4294901760
  %v4003 = vsub.f32 %v1877, %v4002
  %4004 = vmatmul.mubr.f32.gmra.mrb[0].mxu0 %v4003
  %v4005 = vpop.f32.mrb[0].mxu0
  %v4006 = vadd.f32 %v3908, %v4005
  %v4007 = vpop.f32.mrb[0].mxu0
  %4008 = vmatprep.mubr.f32.mxu0 0.0
  %v4009 = vand.u32 %v1880, 4294901760
  %v4010 = vsub.f32 %v1880, %v4009
  %4011 = vmatmul.mubr.f32.gmra.mrb[0].mxu0 %v4010
  %v4012 = vpop.f32.mrb[0].mxu0
  %v4013 = vadd.f32 %v3914, %v4012
  %v4014 = vpop.f32.mrb[0].mxu0
  %4015 = vmatprep.mubr.f32.mxu0 0.0
  %v4016 = vand.u32 %v1883, 4294901760
  %v4017 = vsub.f32 %v1883, %v4016
  %4018 = vmatmul.mubr.f32.gmra.mrb[0].mxu0 %v4017
  %v4019 = vpop.f32.mrb[0].mxu0
  %v4020 = vadd.f32 %v3920, %v4019
  %v4021 = vpop.f32.mrb[0].mxu0
  %4022 = vmatprep.mubr.f32.mxu0 0.0
  %v4023 = vand.u32 %v1886, 4294901760
  %v4024 = vsub.f32 %v1886, %v4023
  %4025 = vmatmul.mubr.f32.gmra.mrb[0].mxu0 %v4024
  %v4026 = vpop.f32.mrb[0].mxu0
  %v4027 = vadd.f32 %v3926, %v4026
  %v4028 = vpop.f32.mrb[0].mxu0
  %4029 = vmatprep.mubr.f32.mxu0 0.0
  %v4030 = vand.u32 %v1889, 4294901760
  %v4031 = vsub.f32 %v1889, %v4030
  %4032 = vmatmul.mubr.f32.gmra.mrb[0].mxu0 %v4031
  %v4033 = vpop.f32.mrb[0].mxu0
  %v4034 = vadd.f32 %v3932, %v4033
  %v4035 = vpop.f32.mrb[0].mxu0
  %4036 = vdwg.mxu0
  %4037 = vmatprep.subr.mxu0 0.0
  %v4038 = vand.u32 %v3717, 4294901760
  %4039 = vmatpush1.msra.mxu0 %v4038
  %4040 = vmatprep.subr.mxu0 0.0
  %4041 = vmatpush1.msra.mxu0 0.0
  %4042 = vmatprep.subr.mxu0 0.0
  %4043 = vmatpush1.msra.mxu0 0.0
  %4044 = vmatprep.subr.mxu0 0.0
  %4045 = vmatpush1.msra.mxu0 0.0
  %4046 = vmatprep.subr.mxu0 0.0
  %4047 = vmatpush1.msra.mxu0 0.0
  %4048 = vmatprep.subr.mxu0 0.0
  %4049 = vmatpush1.msra.mxu0 0.0
  %4050 = vmatprep.subr.mxu0 0.0
  %4051 = vmatpush1.msra.mxu0 0.0
  %4052 = vmatprep.subr.mxu0 0.0
  %4053 = vmatpush1.msra.mxu0 0.0
  %4054 = vmatprep.subr.mxu0 0.0
  %4055 = vmatpush1.msra.mxu0 0.0
  %4056 = vmatprep.subr.mxu0 0.0
  %4057 = vmatpush1.msra.mxu0 0.0
  %4058 = vmatprep.subr.mxu0 0.0
  %4059 = vmatpush1.msra.mxu0 0.0
  %4060 = vmatprep.subr.mxu0 0.0
  %4061 = vmatpush1.msra.mxu0 0.0
  %4062 = vmatprep.subr.mxu0 0.0
  %4063 = vmatpush1.msra.mxu0 0.0
  %4064 = vmatprep.subr.mxu0 0.0
  %4065 = vmatpush1.msra.mxu0 0.0
  %4066 = vmatprep.subr.mxu0 0.0
  %4067 = vmatpush1.msra.mxu0 0.0
  %4068 = vmatprep.subr.mxu0 0.0
  %4069 = vmatpush1.msra.mxu0 0.0
  %4070 = vmatprep.subr.mxu0 0.0
  %4071 = vmatpush1.msra.mxu0 0.0
  %4072 = vmatprep.subr.mxu0 0.0
  %4073 = vmatpush1.msra.mxu0 0.0
  %4074 = vmatprep.subr.mxu0 0.0
  %4075 = vmatpush1.msra.mxu0 0.0
  %4076 = vmatprep.subr.mxu0 0.0
  %4077 = vmatpush1.msra.mxu0 0.0
  %4078 = vmatprep.subr.mxu0 0.0
  %4079 = vmatpush1.msra.mxu0 0.0
  %4080 = vmatprep.subr.mxu0 0.0
  %4081 = vmatpush1.msra.mxu0 0.0
  %4082 = vmatprep.subr.mxu0 0.0
  %4083 = vmatpush1.msra.mxu0 0.0
  %4084 = vmatprep.subr.mxu0 0.0
  %4085 = vmatpush1.msra.mxu0 0.0
  %4086 = vmatprep.subr.mxu0 0.0
  %4087 = vmatpush1.msra.mxu0 0.0
  %4088 = vmatprep.subr.mxu0 0.0
  %4089 = vmatpush1.msra.mxu0 0.0
  %4090 = vmatprep.subr.mxu0 0.0
  %4091 = vmatpush1.msra.mxu0 0.0
  %4092 = vmatprep.subr.mxu0 0.0
  %4093 = vmatpush1.msra.mxu0 0.0
  %4094 = vmatprep.subr.mxu0 0.0
  %4095 = vmatpush1.msra.mxu0 0.0
  %4096 = vmatprep.subr.mxu0 0.0
  %4097 = vmatpush1.msra.mxu0 0.0
  %4098 = vmatprep.subr.mxu0 0.0
  %4099 = vmatpush1.msra.mxu0 0.0
  %4100 = vmatprep.subr.mxu0 0.0
  %4101 = vmatpush1.msra.mxu0 0.0
  %4102 = vmatprep.mubr.f32.mxu0 0.0
  %v4103 = vand.u32 %v1877, 4294901760
  %v4104 = vsub.f32 %v1877, %v4103
  %v4105 = vand.u32 %v4104, 4294901760
  %4106 = vmatmul.mubr.f32.gmra.mrb[0].mxu0 %v4105
  %v4107 = vpop.f32.mrb[0].mxu0
  %v4108 = vadd.f32 %v4006, %v4107
  %v4109 = vpop.f32.mrb[0].mxu0
  %4110 = vmatprep.mubr.f32.mxu0 0.0
  %v4111 = vand.u32 %v1880, 4294901760
  %v4112 = vsub.f32 %v1880, %v4111
  %v4113 = vand.u32 %v4112, 4294901760
  %4114 = vmatmul.mubr.f32.gmra.mrb[0].mxu0 %v4113
  %v4115 = vpop.f32.mrb[0].mxu0
  %v4116 = vadd.f32 %v4013, %v4115
  %v4117 = vpop.f32.mrb[0].mxu0
  %4118 = vmatprep.mubr.f32.mxu0 0.0
  %v4119 = vand.u32 %v1883, 4294901760
  %v4120 = vsub.f32 %v1883, %v4119
  %v4121 = vand.u32 %v4120, 4294901760
  %4122 = vmatmul.mubr.f32.gmra.mrb[0].mxu0 %v4121
  %v4123 = vpop.f32.mrb[0].mxu0
  %v4124 = vadd.f32 %v4020, %v4123
  %v4125 = vpop.f32.mrb[0].mxu0
  %4126 = vmatprep.mubr.f32.mxu0 0.0
  %v4127 = vand.u32 %v1886, 4294901760
  %v4128 = vsub.f32 %v1886, %v4127
  %v4129 = vand.u32 %v4128, 4294901760
  %4130 = vmatmul.mubr.f32.gmra.mrb[0].mxu0 %v4129
  %v4131 = vpop.f32.mrb[0].mxu0
  %v4132 = vadd.f32 %v4027, %v4131
  %v4133 = vpop.f32.mrb[0].mxu0
  %4134 = vmatprep.mubr.f32.mxu0 0.0
  %v4135 = vand.u32 %v1889, 4294901760
  %v4136 = vsub.f32 %v1889, %v4135
  %v4137 = vand.u32 %v4136, 4294901760
  %4138 = vmatmul.mubr.f32.gmra.mrb[0].mxu0 %v4137
  %v4139 = vpop.f32.mrb[0].mxu0
  %v4140 = vadd.f32 %v4034, %v4139
  %v4141 = vpop.f32.mrb[0].mxu0
  %4142 = vdwg.mxu0
  %4143 = vmatprep.subr.mxu0 0.0
  %v4144 = vand.u32 %v3717, 4294901760
  %v4145 = vsub.f32 %v3717, %v4144
  %v4146 = vand.u32 %v4145, 4294901760
  %4147 = vmatpush1.msra.mxu0 %v4146
  %4148 = vmatprep.subr.mxu0 0.0
  %4149 = vmatpush1.msra.mxu0 0.0
  %4150 = vmatprep.subr.mxu0 0.0
  %4151 = vmatpush1.msra.mxu0 0.0
  %4152 = vmatprep.subr.mxu0 0.0
  %4153 = vmatpush1.msra.mxu0 0.0
  %4154 = vmatprep.subr.mxu0 0.0
  %4155 = vmatpush1.msra.mxu0 0.0
  %4156 = vmatprep.subr.mxu0 0.0
  %4157 = vmatpush1.msra.mxu0 0.0
  %4158 = vmatprep.subr.mxu0 0.0
  %4159 = vmatpush1.msra.mxu0 0.0
  %4160 = vmatprep.subr.mxu0 0.0
  %4161 = vmatpush1.msra.mxu0 0.0
  %4162 = vmatprep.subr.mxu0 0.0
  %4163 = vmatpush1.msra.mxu0 0.0
  %4164 = vmatprep.subr.mxu0 0.0
  %4165 = vmatpush1.msra.mxu0 0.0
  %4166 = vmatprep.subr.mxu0 0.0
  %4167 = vmatpush1.msra.mxu0 0.0
  %4168 = vmatprep.subr.mxu0 0.0
  %4169 = vmatpush1.msra.mxu0 0.0
  %4170 = vmatprep.subr.mxu0 0.0
  %4171 = vmatpush1.msra.mxu0 0.0
  %4172 = vmatprep.subr.mxu0 0.0
  %4173 = vmatpush1.msra.mxu0 0.0
  %4174 = vmatprep.subr.mxu0 0.0
  %4175 = vmatpush1.msra.mxu0 0.0
  %4176 = vmatprep.subr.mxu0 0.0
  %4177 = vmatpush1.msra.mxu0 0.0
  %4178 = vmatprep.subr.mxu0 0.0
  %4179 = vmatpush1.msra.mxu0 0.0
  %4180 = vmatprep.subr.mxu0 0.0
  %4181 = vmatpush1.msra.mxu0 0.0
  %4182 = vmatprep.subr.mxu0 0.0
  %4183 = vmatpush1.msra.mxu0 0.0
  %4184 = vmatprep.subr.mxu0 0.0
  %4185 = vmatpush1.msra.mxu0 0.0
  %4186 = vmatprep.subr.mxu0 0.0
  %4187 = vmatpush1.msra.mxu0 0.0
  %4188 = vmatprep.subr.mxu0 0.0
  %4189 = vmatpush1.msra.mxu0 0.0
  %4190 = vmatprep.subr.mxu0 0.0
  %4191 = vmatpush1.msra.mxu0 0.0
  %4192 = vmatprep.subr.mxu0 0.0
  %4193 = vmatpush1.msra.mxu0 0.0
  %4194 = vmatprep.subr.mxu0 0.0
  %4195 = vmatpush1.msra.mxu0 0.0
  %4196 = vmatprep.subr.mxu0 0.0
  %4197 = vmatpush1.msra.mxu0 0.0
  %4198 = vmatprep.subr.mxu0 0.0
  %4199 = vmatpush1.msra.mxu0 0.0
  %4200 = vmatprep.subr.mxu0 0.0
  %4201 = vmatpush1.msra.mxu0 0.0
  %4202 = vmatprep.subr.mxu0 0.0
  %4203 = vmatpush1.msra.mxu0 0.0
  %4204 = vmatprep.subr.mxu0 0.0
  %4205 = vmatpush1.msra.mxu0 0.0
  %4206 = vmatprep.subr.mxu0 0.0
  %4207 = vmatpush1.msra.mxu0 0.0
  %4208 = vmatprep.subr.mxu0 0.0
  %4209 = vmatpush1.msra.mxu0 0.0
  %4210 = vmatprep.mubr.f32.mxu0 0.0
  %v4211 = vand.u32 %v1877, 4294901760
  %4212 = vmatmul.mubr.f32.gmra.mrb[0].mxu0 %v4211
  %v4213 = vpop.f32.mrb[0].mxu0
  %v4214 = vadd.f32 %v4108, %v4213
  %v4215 = vpop.f32.mrb[0].mxu0
  %4216 = vmatprep.mubr.f32.mxu0 0.0
  %v4217 = vand.u32 %v1880, 4294901760
  %4218 = vmatmul.mubr.f32.gmra.mrb[0].mxu0 %v4217
  %v4219 = vpop.f32.mrb[0].mxu0
  %v4220 = vadd.f32 %v4116, %v4219
  %v4221 = vpop.f32.mrb[0].mxu0
  %4222 = vmatprep.mubr.f32.mxu0 0.0
  %v4223 = vand.u32 %v1883, 4294901760
  %4224 = vmatmul.mubr.f32.gmra.mrb[0].mxu0 %v4223
  %v4225 = vpop.f32.mrb[0].mxu0
  %v4226 = vadd.f32 %v4124, %v4225
  %v4227 = vpop.f32.mrb[0].mxu0
  %4228 = vmatprep.mubr.f32.mxu0 0.0
  %v4229 = vand.u32 %v1886, 4294901760
  %4230 = vmatmul.mubr.f32.gmra.mrb[0].mxu0 %v4229
  %v4231 = vpop.f32.mrb[0].mxu0
  %v4232 = vadd.f32 %v4132, %v4231
  %v4233 = vpop.f32.mrb[0].mxu0
  %4234 = vmatprep.mubr.f32.mxu0 0.0
  %v4235 = vand.u32 %v1889, 4294901760
  %4236 = vmatmul.mubr.f32.gmra.mrb[0].mxu0 %v4235
  %v4237 = vpop.f32.mrb[0].mxu0
  %v4238 = vadd.f32 %v4140, %v4237
  %v4239 = vpop.f32.mrb[0].mxu0
  %4240 = vdwg.mxu0
  %4241 = vmatprep.subr.mxu0 0.0
  %v4242 = vand.u32 %v3717, 4294901760
  %4243 = vmatpush1.msra.mxu0 %v4242
  %4244 = vmatprep.subr.mxu0 0.0
  %4245 = vmatpush1.msra.mxu0 0.0
  %4246 = vmatprep.subr.mxu0 0.0
  %4247 = vmatpush1.msra.mxu0 0.0
  %4248 = vmatprep.subr.mxu0 0.0
  %4249 = vmatpush1.msra.mxu0 0.0
  %4250 = vmatprep.subr.mxu0 0.0
  %4251 = vmatpush1.msra.mxu0 0.0
  %4252 = vmatprep.subr.mxu0 0.0
  %4253 = vmatpush1.msra.mxu0 0.0
  %4254 = vmatprep.subr.mxu0 0.0
  %4255 = vmatpush1.msra.mxu0 0.0
  %4256 = vmatprep.subr.mxu0 0.0
  %4257 = vmatpush1.msra.mxu0 0.0
  %4258 = vmatprep.subr.mxu0 0.0
  %4259 = vmatpush1.msra.mxu0 0.0
  %4260 = vmatprep.subr.mxu0 0.0
  %4261 = vmatpush1.msra.mxu0 0.0
  %4262 = vmatprep.subr.mxu0 0.0
  %4263 = vmatpush1.msra.mxu0 0.0
  %4264 = vmatprep.subr.mxu0 0.0
  %4265 = vmatpush1.msra.mxu0 0.0
  %4266 = vmatprep.subr.mxu0 0.0
  %4267 = vmatpush1.msra.mxu0 0.0
  %4268 = vmatprep.subr.mxu0 0.0
  %4269 = vmatpush1.msra.mxu0 0.0
  %4270 = vmatprep.subr.mxu0 0.0
  %4271 = vmatpush1.msra.mxu0 0.0
  %4272 = vmatprep.subr.mxu0 0.0
  %4273 = vmatpush1.msra.mxu0 0.0
  %4274 = vmatprep.subr.mxu0 0.0
  %4275 = vmatpush1.msra.mxu0 0.0
  %4276 = vmatprep.subr.mxu0 0.0
  %4277 = vmatpush1.msra.mxu0 0.0
  %4278 = vmatprep.subr.mxu0 0.0
  %4279 = vmatpush1.msra.mxu0 0.0
  %4280 = vmatprep.subr.mxu0 0.0
  %4281 = vmatpush1.msra.mxu0 0.0
  %4282 = vmatprep.subr.mxu0 0.0
  %4283 = vmatpush1.msra.mxu0 0.0
  %4284 = vmatprep.subr.mxu0 0.0
  %4285 = vmatpush1.msra.mxu0 0.0
  %4286 = vmatprep.subr.mxu0 0.0
  %4287 = vmatpush1.msra.mxu0 0.0
  %4288 = vmatprep.subr.mxu0 0.0
  %4289 = vmatpush1.msra.mxu0 0.0
  %4290 = vmatprep.subr.mxu0 0.0
  %4291 = vmatpush1.msra.mxu0 0.0
  %4292 = vmatprep.subr.mxu0 0.0
  %4293 = vmatpush1.msra.mxu0 0.0
  %4294 = vmatprep.subr.mxu0 0.0
  %4295 = vmatpush1.msra.mxu0 0.0
  %4296 = vmatprep.subr.mxu0 0.0
  %4297 = vmatpush1.msra.mxu0 0.0
  %4298 = vmatprep.subr.mxu0 0.0
  %4299 = vmatpush1.msra.mxu0 0.0
  %4300 = vmatprep.subr.mxu0 0.0
  %4301 = vmatpush1.msra.mxu0 0.0
  %4302 = vmatprep.subr.mxu0 0.0
  %4303 = vmatpush1.msra.mxu0 0.0
  %4304 = vmatprep.subr.mxu0 0.0
  %4305 = vmatpush1.msra.mxu0 0.0
  %4306 = vmatprep.mubr.f32.mxu0 0.0
  %v4307 = vand.u32 %v1877, 4294901760
  %4308 = vmatmul.mubr.f32.gmra.mrb[0].mxu0 %v4307
  %v4309 = vpop.f32.mrb[0].mxu0
  %v4310 = vadd.f32 %v4214, %v4309
  %v4311 = vpop.f32.mrb[0].mxu0
  %4312 = vmatprep.mubr.f32.mxu0 0.0
  %v4313 = vand.u32 %v1880, 4294901760
  %4314 = vmatmul.mubr.f32.gmra.mrb[0].mxu0 %v4313
  %v4315 = vpop.f32.mrb[0].mxu0
  %v4316 = vadd.f32 %v4220, %v4315
  %v4317 = vpop.f32.mrb[0].mxu0
  %4318 = vmatprep.mubr.f32.mxu0 0.0
  %v4319 = vand.u32 %v1883, 4294901760
  %4320 = vmatmul.mubr.f32.gmra.mrb[0].mxu0 %v4319
  %v4321 = vpop.f32.mrb[0].mxu0
  %v4322 = vadd.f32 %v4226, %v4321
  %v4323 = vpop.f32.mrb[0].mxu0
  %4324 = vmatprep.mubr.f32.mxu0 0.0
  %v4325 = vand.u32 %v1886, 4294901760
  %4326 = vmatmul.mubr.f32.gmra.mrb[0].mxu0 %v4325
  %v4327 = vpop.f32.mrb[0].mxu0
  %v4328 = vadd.f32 %v4232, %v4327
  %v4329 = vpop.f32.mrb[0].mxu0
  %4330 = vmatprep.mubr.f32.mxu0 0.0
  %v4331 = vand.u32 %v1889, 4294901760
  %4332 = vmatmul.mubr.f32.gmra.mrb[0].mxu0 %v4331
  %v4333 = vpop.f32.mrb[0].mxu0
  %v4334 = vadd.f32 %v4238, %v4333
  %v4335 = vpop.f32.mrb[0].mxu0
  %4336 = vdwg.mxu0
  %4338 = vset.pattern.permute.xlu0 0
  %4339 = vperm.xlu0 %4338, %v4310
  %v4340 = vpop.permute.xlu0 %4339
  %4343 = vset.pattern.permute.xlu0 0
  %4344 = vperm.xlu0 %4343, %v4316
  %v4345 = vpop.permute.xlu0 %4344
  %4348 = vset.pattern.permute.xlu0 0
  %4349 = vperm.xlu0 %4348, %v4322
  %v4350 = vpop.permute.xlu0 %4349
  %4353 = vset.pattern.permute.xlu0 0
  %4354 = vperm.xlu0 %4353, %v4328
  %v4355 = vpop.permute.xlu0 %4354
  %4358 = vset.pattern.permute.xlu0 0
  %4359 = vperm.xlu0 %4358, %v4334
  %v4360 = vpop.permute.xlu0 %4359
  %v4362 = vadd.f32 %v3711, %v4340
  %v4363 = vadd.f32 %v3712, %v4345
  %v4364 = vadd.f32 %v3713, %v4350
  %v4365 = vadd.f32 %v3714, %v4355
  %v4366 = vadd.f32 %v3715, %v4360
  %v4367 = vld [vmem:[%s2] sm:$0xff]
  %v4368 = vld [vmem:[%s2 + $0x8] sm:$0xff]
  %v4369 = vld [vmem:[%s2 + $0x10] sm:$0xff]
  %v4370 = vld [vmem:[%s2 + $0x18] sm:$0xff]
  %4372 = vset.pattern.permute.xlu0 0
  %4373 = vperm.xlu0 %4372, %v29
  %v4374 = vpop.permute.xlu0 %4373
  %4377 = vset.pattern.permute.xlu0 0
  %4378 = vperm.xlu0 %4377, %v30
  %v4379 = vpop.permute.xlu0 %4378
  %4382 = vset.pattern.permute.xlu0 0
  %4383 = vperm.xlu0 %4382, %v31
  %v4384 = vpop.permute.xlu0 %4383
  %4387 = vset.pattern.permute.xlu0 0
  %4388 = vperm.xlu0 %4387, %v32
  %v4389 = vpop.permute.xlu0 %4388
  %v4392 = vsel %vm1356, %v4367, 0
  %v4395 = vsel %vm1356, %v4368, 0
  %v4398 = vsel %vm1356, %v4369, 0
  %v4401 = vsel %vm1356, %v4370, 0
  %4403 = vmatprep.subr.mxu0 0.0
  %v4404 = vand.u32 %v4362, 4294901760
  %4405 = vmatpush1.msra.mxu0 %v4404
  %4406 = vmatprep.subr.mxu0 0.0
  %v4407 = vand.u32 %v4363, 4294901760
  %4408 = vmatpush1.msra.mxu0 %v4407
  %4409 = vmatprep.subr.mxu0 0.0
  %v4410 = vand.u32 %v4364, 4294901760
  %4411 = vmatpush1.msra.mxu0 %v4410
  %4412 = vmatprep.subr.mxu0 0.0
  %v4413 = vand.u32 %v4365, 4294901760
  %4414 = vmatpush1.msra.mxu0 %v4413
  %4415 = vmatprep.subr.mxu0 0.0
  %v4416 = vand.u32 %v4366, 4294901760
  %4417 = vmatpush1.msra.mxu0 %v4416
  %4418 = vmatprep.subr.mxu0 0.0
  %4419 = vmatpush1.msra.mxu0 0.0
  %4420 = vmatprep.subr.mxu0 0.0
  %4421 = vmatpush1.msra.mxu0 0.0
  %4422 = vmatprep.subr.mxu0 0.0
  %4423 = vmatpush1.msra.mxu0 0.0
  %4424 = vmatprep.subr.mxu0 0.0
  %4425 = vmatpush1.msra.mxu0 0.0
  %4426 = vmatprep.subr.mxu0 0.0
  %4427 = vmatpush1.msra.mxu0 0.0
  %4428 = vmatprep.subr.mxu0 0.0
  %4429 = vmatpush1.msra.mxu0 0.0
  %4430 = vmatprep.subr.mxu0 0.0
  %4431 = vmatpush1.msra.mxu0 0.0
  %4432 = vmatprep.subr.mxu0 0.0
  %4433 = vmatpush1.msra.mxu0 0.0
  %4434 = vmatprep.subr.mxu0 0.0
  %4435 = vmatpush1.msra.mxu0 0.0
  %4436 = vmatprep.subr.mxu0 0.0
  %4437 = vmatpush1.msra.mxu0 0.0
  %4438 = vmatprep.subr.mxu0 0.0
  %4439 = vmatpush1.msra.mxu0 0.0
  %4440 = vmatprep.subr.mxu0 0.0
  %4441 = vmatpush1.msra.mxu0 0.0
  %4442 = vmatprep.subr.mxu0 0.0
  %4443 = vmatpush1.msra.mxu0 0.0
  %4444 = vmatprep.subr.mxu0 0.0
  %4445 = vmatpush1.msra.mxu0 0.0
  %4446 = vmatprep.subr.mxu0 0.0
  %4447 = vmatpush1.msra.mxu0 0.0
  %4448 = vmatprep.subr.mxu0 0.0
  %4449 = vmatpush1.msra.mxu0 0.0
  %4450 = vmatprep.subr.mxu0 0.0
  %4451 = vmatpush1.msra.mxu0 0.0
  %4452 = vmatprep.subr.mxu0 0.0
  %4453 = vmatpush1.msra.mxu0 0.0
  %4454 = vmatprep.subr.mxu0 0.0
  %4455 = vmatpush1.msra.mxu0 0.0
  %4456 = vmatprep.subr.mxu0 0.0
  %4457 = vmatpush1.msra.mxu0 0.0
  %4458 = vmatprep.subr.mxu0 0.0
  %4459 = vmatpush1.msra.mxu0 0.0
  %4460 = vmatprep.subr.mxu0 0.0
  %4461 = vmatpush1.msra.mxu0 0.0
  %4462 = vmatprep.subr.mxu0 0.0
  %4463 = vmatpush1.msra.mxu0 0.0
  %4464 = vmatprep.subr.mxu0 0.0
  %4465 = vmatpush1.msra.mxu0 0.0
  %4466 = vmatprep.subr.mxu0 0.0
  %4467 = vmatpush1.msra.mxu0 0.0
  %4468 = vmatprep.subr.mxu0 0.0
  %4469 = vmatpush1.msra.mxu0 0.0
  %4470 = vmatprep.subr.mxu0 0.0
  %4471 = vmatpush1.msra.mxu0 0.0
  %4472 = vmatprep.mubr.f32.mxu0 0.0
  %v4473 = vand.u32 %v4392, 4294901760
  %v4474 = vsub.f32 %v4392, %v4473
  %v4475 = vand.u32 %v4474, 4294901760
  %v4476 = vsub.f32 %v4474, %v4475
  %v4477 = vand.u32 %v4476, 4294901760
  %4478 = vmatmul.mubr.f32.gmra.mrb[0].mxu0 %v4477
  %v4479 = vpop.f32.mrb[0].mxu0
  %v4480 = vadd.f32 %v4374, %v4479
  %v4481 = vpop.f32.mrb[0].mxu0
  %4482 = vmatprep.mubr.f32.mxu0 0.0
  %v4483 = vand.u32 %v4395, 4294901760
  %v4484 = vsub.f32 %v4395, %v4483
  %v4485 = vand.u32 %v4484, 4294901760
  %v4486 = vsub.f32 %v4484, %v4485
  %v4487 = vand.u32 %v4486, 4294901760
  %4488 = vmatmul.mubr.f32.gmra.mrb[0].mxu0 %v4487
  %v4489 = vpop.f32.mrb[0].mxu0
  %v4490 = vadd.f32 %v4379, %v4489
  %v4491 = vpop.f32.mrb[0].mxu0
  %4492 = vmatprep.mubr.f32.mxu0 0.0
  %v4493 = vand.u32 %v4398, 4294901760
  %v4494 = vsub.f32 %v4398, %v4493
  %v4495 = vand.u32 %v4494, 4294901760
  %v4496 = vsub.f32 %v4494, %v4495
  %v4497 = vand.u32 %v4496, 4294901760
  %4498 = vmatmul.mubr.f32.gmra.mrb[0].mxu0 %v4497
  %v4499 = vpop.f32.mrb[0].mxu0
  %v4500 = vadd.f32 %v4384, %v4499
  %v4501 = vpop.f32.mrb[0].mxu0
  %4502 = vmatprep.mubr.f32.mxu0 0.0
  %v4503 = vand.u32 %v4401, 4294901760
  %v4504 = vsub.f32 %v4401, %v4503
  %v4505 = vand.u32 %v4504, 4294901760
  %v4506 = vsub.f32 %v4504, %v4505
  %v4507 = vand.u32 %v4506, 4294901760
  %4508 = vmatmul.mubr.f32.gmra.mrb[0].mxu0 %v4507
  %v4509 = vpop.f32.mrb[0].mxu0
  %v4510 = vadd.f32 %v4389, %v4509
  %v4511 = vpop.f32.mrb[0].mxu0
  %4512 = vdwg.mxu0
  %4513 = vmatprep.subr.mxu0 0.0
  %v4514 = vand.u32 %v4362, 4294901760
  %v4515 = vsub.f32 %v4362, %v4514
  %v4516 = vand.u32 %v4515, 4294901760
  %v4517 = vsub.f32 %v4515, %v4516
  %v4518 = vand.u32 %v4517, 4294901760
  %4519 = vmatpush1.msra.mxu0 %v4518
  %4520 = vmatprep.subr.mxu0 0.0
  %v4521 = vand.u32 %v4363, 4294901760
  %v4522 = vsub.f32 %v4363, %v4521
  %v4523 = vand.u32 %v4522, 4294901760
  %v4524 = vsub.f32 %v4522, %v4523
  %v4525 = vand.u32 %v4524, 4294901760
  %4526 = vmatpush1.msra.mxu0 %v4525
  %4527 = vmatprep.subr.mxu0 0.0
  %v4528 = vand.u32 %v4364, 4294901760
  %v4529 = vsub.f32 %v4364, %v4528
  %v4530 = vand.u32 %v4529, 4294901760
  %v4531 = vsub.f32 %v4529, %v4530
  %v4532 = vand.u32 %v4531, 4294901760
  %4533 = vmatpush1.msra.mxu0 %v4532
  %4534 = vmatprep.subr.mxu0 0.0
  %v4535 = vand.u32 %v4365, 4294901760
  %v4536 = vsub.f32 %v4365, %v4535
  %v4537 = vand.u32 %v4536, 4294901760
  %v4538 = vsub.f32 %v4536, %v4537
  %v4539 = vand.u32 %v4538, 4294901760
  %4540 = vmatpush1.msra.mxu0 %v4539
  %4541 = vmatprep.subr.mxu0 0.0
  %v4542 = vand.u32 %v4366, 4294901760
  %v4543 = vsub.f32 %v4366, %v4542
  %v4544 = vand.u32 %v4543, 4294901760
  %v4545 = vsub.f32 %v4543, %v4544
  %v4546 = vand.u32 %v4545, 4294901760
  %4547 = vmatpush1.msra.mxu0 %v4546
  %4548 = vmatprep.subr.mxu0 0.0
  %4549 = vmatpush1.msra.mxu0 0.0
  %4550 = vmatprep.subr.mxu0 0.0
  %4551 = vmatpush1.msra.mxu0 0.0
  %4552 = vmatprep.subr.mxu0 0.0
  %4553 = vmatpush1.msra.mxu0 0.0
  %4554 = vmatprep.subr.mxu0 0.0
  %4555 = vmatpush1.msra.mxu0 0.0
  %4556 = vmatprep.subr.mxu0 0.0
  %4557 = vmatpush1.msra.mxu0 0.0
  %4558 = vmatprep.subr.mxu0 0.0
  %4559 = vmatpush1.msra.mxu0 0.0
  %4560 = vmatprep.subr.mxu0 0.0
  %4561 = vmatpush1.msra.mxu0 0.0
  %4562 = vmatprep.subr.mxu0 0.0
  %4563 = vmatpush1.msra.mxu0 0.0
  %4564 = vmatprep.subr.mxu0 0.0
  %4565 = vmatpush1.msra.mxu0 0.0
  %4566 = vmatprep.subr.mxu0 0.0
  %4567 = vmatpush1.msra.mxu0 0.0
  %4568 = vmatprep.subr.mxu0 0.0
  %4569 = vmatpush1.msra.mxu0 0.0
  %4570 = vmatprep.subr.mxu0 0.0
  %4571 = vmatpush1.msra.mxu0 0.0
  %4572 = vmatprep.subr.mxu0 0.0
  %4573 = vmatpush1.msra.mxu0 0.0
  %4574 = vmatprep.subr.mxu0 0.0
  %4575 = vmatpush1.msra.mxu0 0.0
  %4576 = vmatprep.subr.mxu0 0.0
  %4577 = vmatpush1.msra.mxu0 0.0
  %4578 = vmatprep.subr.mxu0 0.0
  %4579 = vmatpush1.msra.mxu0 0.0
  %4580 = vmatprep.subr.mxu0 0.0
  %4581 = vmatpush1.msra.mxu0 0.0
  %4582 = vmatprep.subr.mxu0 0.0
  %4583 = vmatpush1.msra.mxu0 0.0
  %4584 = vmatprep.subr.mxu0 0.0
  %4585 = vmatpush1.msra.mxu0 0.0
  %4586 = vmatprep.subr.mxu0 0.0
  %4587 = vmatpush1.msra.mxu0 0.0
  %4588 = vmatprep.subr.mxu0 0.0
  %4589 = vmatpush1.msra.mxu0 0.0
  %4590 = vmatprep.subr.mxu0 0.0
  %4591 = vmatpush1.msra.mxu0 0.0
  %4592 = vmatprep.subr.mxu0 0.0
  %4593 = vmatpush1.msra.mxu0 0.0
  %4594 = vmatprep.subr.mxu0 0.0
  %4595 = vmatpush1.msra.mxu0 0.0
  %4596 = vmatprep.subr.mxu0 0.0
  %4597 = vmatpush1.msra.mxu0 0.0
  %4598 = vmatprep.subr.mxu0 0.0
  %4599 = vmatpush1.msra.mxu0 0.0
  %4600 = vmatprep.subr.mxu0 0.0
  %4601 = vmatpush1.msra.mxu0 0.0
  %4602 = vmatprep.mubr.f32.mxu0 0.0
  %v4603 = vand.u32 %v4392, 4294901760
  %4604 = vmatmul.mubr.f32.gmra.mrb[0].mxu0 %v4603
  %v4605 = vpop.f32.mrb[0].mxu0
  %v4606 = vadd.f32 %v4480, %v4605
  %v4607 = vpop.f32.mrb[0].mxu0
  %4608 = vmatprep.mubr.f32.mxu0 0.0
  %v4609 = vand.u32 %v4395, 4294901760
  %4610 = vmatmul.mubr.f32.gmra.mrb[0].mxu0 %v4609
  %v4611 = vpop.f32.mrb[0].mxu0
  %v4612 = vadd.f32 %v4490, %v4611
  %v4613 = vpop.f32.mrb[0].mxu0
  %4614 = vmatprep.mubr.f32.mxu0 0.0
  %v4615 = vand.u32 %v4398, 4294901760
  %4616 = vmatmul.mubr.f32.gmra.mrb[0].mxu0 %v4615
  %v4617 = vpop.f32.mrb[0].mxu0
  %v4618 = vadd.f32 %v4500, %v4617
  %v4619 = vpop.f32.mrb[0].mxu0
  %4620 = vmatprep.mubr.f32.mxu0 0.0
  %v4621 = vand.u32 %v4401, 4294901760
  %4622 = vmatmul.mubr.f32.gmra.mrb[0].mxu0 %v4621
  %v4623 = vpop.f32.mrb[0].mxu0
  %v4624 = vadd.f32 %v4510, %v4623
  %v4625 = vpop.f32.mrb[0].mxu0
  %4626 = vdwg.mxu0
  %4627 = vmatprep.subr.mxu0 0.0
  %v4628 = vand.u32 %v4362, 4294901760
  %v4629 = vsub.f32 %v4362, %v4628
  %4630 = vmatpush1.msra.mxu0 %v4629
  %4631 = vmatprep.subr.mxu0 0.0
  %v4632 = vand.u32 %v4363, 4294901760
  %v4633 = vsub.f32 %v4363, %v4632
  %4634 = vmatpush1.msra.mxu0 %v4633
  %4635 = vmatprep.subr.mxu0 0.0
  %v4636 = vand.u32 %v4364, 4294901760
  %v4637 = vsub.f32 %v4364, %v4636
  %4638 = vmatpush1.msra.mxu0 %v4637
  %4639 = vmatprep.subr.mxu0 0.0
  %v4640 = vand.u32 %v4365, 4294901760
  %v4641 = vsub.f32 %v4365, %v4640
  %4642 = vmatpush1.msra.mxu0 %v4641
  %4643 = vmatprep.subr.mxu0 0.0
  %v4644 = vand.u32 %v4366, 4294901760
  %v4645 = vsub.f32 %v4366, %v4644
  %4646 = vmatpush1.msra.mxu0 %v4645
  %4647 = vmatprep.subr.mxu0 0.0
  %4648 = vmatpush1.msra.mxu0 0.0
  %4649 = vmatprep.subr.mxu0 0.0
  %4650 = vmatpush1.msra.mxu0 0.0
  %4651 = vmatprep.subr.mxu0 0.0
  %4652 = vmatpush1.msra.mxu0 0.0
  %4653 = vmatprep.subr.mxu0 0.0
  %4654 = vmatpush1.msra.mxu0 0.0
  %4655 = vmatprep.subr.mxu0 0.0
  %4656 = vmatpush1.msra.mxu0 0.0
  %4657 = vmatprep.subr.mxu0 0.0
  %4658 = vmatpush1.msra.mxu0 0.0
  %4659 = vmatprep.subr.mxu0 0.0
  %4660 = vmatpush1.msra.mxu0 0.0
  %4661 = vmatprep.subr.mxu0 0.0
  %4662 = vmatpush1.msra.mxu0 0.0
  %4663 = vmatprep.subr.mxu0 0.0
  %4664 = vmatpush1.msra.mxu0 0.0
  %4665 = vmatprep.subr.mxu0 0.0
  %4666 = vmatpush1.msra.mxu0 0.0
  %4667 = vmatprep.subr.mxu0 0.0
  %4668 = vmatpush1.msra.mxu0 0.0
  %4669 = vmatprep.subr.mxu0 0.0
  %4670 = vmatpush1.msra.mxu0 0.0
  %4671 = vmatprep.subr.mxu0 0.0
  %4672 = vmatpush1.msra.mxu0 0.0
  %4673 = vmatprep.subr.mxu0 0.0
  %4674 = vmatpush1.msra.mxu0 0.0
  %4675 = vmatprep.subr.mxu0 0.0
  %4676 = vmatpush1.msra.mxu0 0.0
  %4677 = vmatprep.subr.mxu0 0.0
  %4678 = vmatpush1.msra.mxu0 0.0
  %4679 = vmatprep.subr.mxu0 0.0
  %4680 = vmatpush1.msra.mxu0 0.0
  %4681 = vmatprep.subr.mxu0 0.0
  %4682 = vmatpush1.msra.mxu0 0.0
  %4683 = vmatprep.subr.mxu0 0.0
  %4684 = vmatpush1.msra.mxu0 0.0
  %4685 = vmatprep.subr.mxu0 0.0
  %4686 = vmatpush1.msra.mxu0 0.0
  %4687 = vmatprep.subr.mxu0 0.0
  %4688 = vmatpush1.msra.mxu0 0.0
  %4689 = vmatprep.subr.mxu0 0.0
  %4690 = vmatpush1.msra.mxu0 0.0
  %4691 = vmatprep.subr.mxu0 0.0
  %4692 = vmatpush1.msra.mxu0 0.0
  %4693 = vmatprep.subr.mxu0 0.0
  %4694 = vmatpush1.msra.mxu0 0.0
  %4695 = vmatprep.subr.mxu0 0.0
  %4696 = vmatpush1.msra.mxu0 0.0
  %4697 = vmatprep.subr.mxu0 0.0
  %4698 = vmatpush1.msra.mxu0 0.0
  %4699 = vmatprep.subr.mxu0 0.0
  %4700 = vmatpush1.msra.mxu0 0.0
  %4701 = vmatprep.mubr.f32.mxu0 0.0
  %v4702 = vand.u32 %v4392, 4294901760
  %v4703 = vsub.f32 %v4392, %v4702
  %4704 = vmatmul.mubr.f32.gmra.mrb[0].mxu0 %v4703
  %v4705 = vpop.f32.mrb[0].mxu0
  %v4706 = vadd.f32 %v4606, %v4705
  %v4707 = vpop.f32.mrb[0].mxu0
  %4708 = vmatprep.mubr.f32.mxu0 0.0
  %v4709 = vand.u32 %v4395, 4294901760
  %v4710 = vsub.f32 %v4395, %v4709
  %4711 = vmatmul.mubr.f32.gmra.mrb[0].mxu0 %v4710
  %v4712 = vpop.f32.mrb[0].mxu0
  %v4713 = vadd.f32 %v4612, %v4712
  %v4714 = vpop.f32.mrb[0].mxu0
  %4715 = vmatprep.mubr.f32.mxu0 0.0
  %v4716 = vand.u32 %v4398, 4294901760
  %v4717 = vsub.f32 %v4398, %v4716
  %4718 = vmatmul.mubr.f32.gmra.mrb[0].mxu0 %v4717
  %v4719 = vpop.f32.mrb[0].mxu0
  %v4720 = vadd.f32 %v4618, %v4719
  %v4721 = vpop.f32.mrb[0].mxu0
  %4722 = vmatprep.mubr.f32.mxu0 0.0
  %v4723 = vand.u32 %v4401, 4294901760
  %v4724 = vsub.f32 %v4401, %v4723
  %4725 = vmatmul.mubr.f32.gmra.mrb[0].mxu0 %v4724
  %v4726 = vpop.f32.mrb[0].mxu0
  %v4727 = vadd.f32 %v4624, %v4726
  %v4728 = vpop.f32.mrb[0].mxu0
  %4729 = vdwg.mxu0
  %4730 = vmatprep.subr.mxu0 0.0
  %v4731 = vand.u32 %v4362, 4294901760
  %4732 = vmatpush1.msra.mxu0 %v4731
  %4733 = vmatprep.subr.mxu0 0.0
  %v4734 = vand.u32 %v4363, 4294901760
  %4735 = vmatpush1.msra.mxu0 %v4734
  %4736 = vmatprep.subr.mxu0 0.0
  %v4737 = vand.u32 %v4364, 4294901760
  %4738 = vmatpush1.msra.mxu0 %v4737
  %4739 = vmatprep.subr.mxu0 0.0
  %v4740 = vand.u32 %v4365, 4294901760
  %4741 = vmatpush1.msra.mxu0 %v4740
  %4742 = vmatprep.subr.mxu0 0.0
  %v4743 = vand.u32 %v4366, 4294901760
  %4744 = vmatpush1.msra.mxu0 %v4743
  %4745 = vmatprep.subr.mxu0 0.0
  %4746 = vmatpush1.msra.mxu0 0.0
  %4747 = vmatprep.subr.mxu0 0.0
  %4748 = vmatpush1.msra.mxu0 0.0
  %4749 = vmatprep.subr.mxu0 0.0
  %4750 = vmatpush1.msra.mxu0 0.0
  %4751 = vmatprep.subr.mxu0 0.0
  %4752 = vmatpush1.msra.mxu0 0.0
  %4753 = vmatprep.subr.mxu0 0.0
  %4754 = vmatpush1.msra.mxu0 0.0
  %4755 = vmatprep.subr.mxu0 0.0
  %4756 = vmatpush1.msra.mxu0 0.0
  %4757 = vmatprep.subr.mxu0 0.0
  %4758 = vmatpush1.msra.mxu0 0.0
  %4759 = vmatprep.subr.mxu0 0.0
  %4760 = vmatpush1.msra.mxu0 0.0
  %4761 = vmatprep.subr.mxu0 0.0
  %4762 = vmatpush1.msra.mxu0 0.0
  %4763 = vmatprep.subr.mxu0 0.0
  %4764 = vmatpush1.msra.mxu0 0.0
  %4765 = vmatprep.subr.mxu0 0.0
  %4766 = vmatpush1.msra.mxu0 0.0
  %4767 = vmatprep.subr.mxu0 0.0
  %4768 = vmatpush1.msra.mxu0 0.0
  %4769 = vmatprep.subr.mxu0 0.0
  %4770 = vmatpush1.msra.mxu0 0.0
  %4771 = vmatprep.subr.mxu0 0.0
  %4772 = vmatpush1.msra.mxu0 0.0
  %4773 = vmatprep.subr.mxu0 0.0
  %4774 = vmatpush1.msra.mxu0 0.0
  %4775 = vmatprep.subr.mxu0 0.0
  %4776 = vmatpush1.msra.mxu0 0.0
  %4777 = vmatprep.subr.mxu0 0.0
  %4778 = vmatpush1.msra.mxu0 0.0
  %4779 = vmatprep.subr.mxu0 0.0
  %4780 = vmatpush1.msra.mxu0 0.0
  %4781 = vmatprep.subr.mxu0 0.0
  %4782 = vmatpush1.msra.mxu0 0.0
  %4783 = vmatprep.subr.mxu0 0.0
  %4784 = vmatpush1.msra.mxu0 0.0
  %4785 = vmatprep.subr.mxu0 0.0
  %4786 = vmatpush1.msra.mxu0 0.0
  %4787 = vmatprep.subr.mxu0 0.0
  %4788 = vmatpush1.msra.mxu0 0.0
  %4789 = vmatprep.subr.mxu0 0.0
  %4790 = vmatpush1.msra.mxu0 0.0
  %4791 = vmatprep.subr.mxu0 0.0
  %4792 = vmatpush1.msra.mxu0 0.0
  %4793 = vmatprep.subr.mxu0 0.0
  %4794 = vmatpush1.msra.mxu0 0.0
  %4795 = vmatprep.subr.mxu0 0.0
  %4796 = vmatpush1.msra.mxu0 0.0
  %4797 = vmatprep.subr.mxu0 0.0
  %4798 = vmatpush1.msra.mxu0 0.0
  %4799 = vmatprep.mubr.f32.mxu0 0.0
  %v4800 = vand.u32 %v4392, 4294901760
  %v4801 = vsub.f32 %v4392, %v4800
  %v4802 = vand.u32 %v4801, 4294901760
  %4803 = vmatmul.mubr.f32.gmra.mrb[0].mxu0 %v4802
  %v4804 = vpop.f32.mrb[0].mxu0
  %v4805 = vadd.f32 %v4706, %v4804
  %v4806 = vpop.f32.mrb[0].mxu0
  %4807 = vmatprep.mubr.f32.mxu0 0.0
  %v4808 = vand.u32 %v4395, 4294901760
  %v4809 = vsub.f32 %v4395, %v4808
  %v4810 = vand.u32 %v4809, 4294901760
  %4811 = vmatmul.mubr.f32.gmra.mrb[0].mxu0 %v4810
  %v4812 = vpop.f32.mrb[0].mxu0
  %v4813 = vadd.f32 %v4713, %v4812
  %v4814 = vpop.f32.mrb[0].mxu0
  %4815 = vmatprep.mubr.f32.mxu0 0.0
  %v4816 = vand.u32 %v4398, 4294901760
  %v4817 = vsub.f32 %v4398, %v4816
  %v4818 = vand.u32 %v4817, 4294901760
  %4819 = vmatmul.mubr.f32.gmra.mrb[0].mxu0 %v4818
  %v4820 = vpop.f32.mrb[0].mxu0
  %v4821 = vadd.f32 %v4720, %v4820
  %v4822 = vpop.f32.mrb[0].mxu0
  %4823 = vmatprep.mubr.f32.mxu0 0.0
  %v4824 = vand.u32 %v4401, 4294901760
  %v4825 = vsub.f32 %v4401, %v4824
  %v4826 = vand.u32 %v4825, 4294901760
  %4827 = vmatmul.mubr.f32.gmra.mrb[0].mxu0 %v4826
  %v4828 = vpop.f32.mrb[0].mxu0
  %v4829 = vadd.f32 %v4727, %v4828
  %v4830 = vpop.f32.mrb[0].mxu0
  %4831 = vdwg.mxu0
  %4832 = vmatprep.subr.mxu0 0.0
  %v4833 = vand.u32 %v4362, 4294901760
  %v4834 = vsub.f32 %v4362, %v4833
  %v4835 = vand.u32 %v4834, 4294901760
  %4836 = vmatpush1.msra.mxu0 %v4835
  %4837 = vmatprep.subr.mxu0 0.0
  %v4838 = vand.u32 %v4363, 4294901760
  %v4839 = vsub.f32 %v4363, %v4838
  %v4840 = vand.u32 %v4839, 4294901760
  %4841 = vmatpush1.msra.mxu0 %v4840
  %4842 = vmatprep.subr.mxu0 0.0
  %v4843 = vand.u32 %v4364, 4294901760
  %v4844 = vsub.f32 %v4364, %v4843
  %v4845 = vand.u32 %v4844, 4294901760
  %4846 = vmatpush1.msra.mxu0 %v4845
  %4847 = vmatprep.subr.mxu0 0.0
  %v4848 = vand.u32 %v4365, 4294901760
  %v4849 = vsub.f32 %v4365, %v4848
  %v4850 = vand.u32 %v4849, 4294901760
  %4851 = vmatpush1.msra.mxu0 %v4850
  %4852 = vmatprep.subr.mxu0 0.0
  %v4853 = vand.u32 %v4366, 4294901760
  %v4854 = vsub.f32 %v4366, %v4853
  %v4855 = vand.u32 %v4854, 4294901760
  %4856 = vmatpush1.msra.mxu0 %v4855
  %4857 = vmatprep.subr.mxu0 0.0
  %4858 = vmatpush1.msra.mxu0 0.0
  %4859 = vmatprep.subr.mxu0 0.0
  %4860 = vmatpush1.msra.mxu0 0.0
  %4861 = vmatprep.subr.mxu0 0.0
  %4862 = vmatpush1.msra.mxu0 0.0
  %4863 = vmatprep.subr.mxu0 0.0
  %4864 = vmatpush1.msra.mxu0 0.0
  %4865 = vmatprep.subr.mxu0 0.0
  %4866 = vmatpush1.msra.mxu0 0.0
  %4867 = vmatprep.subr.mxu0 0.0
  %4868 = vmatpush1.msra.mxu0 0.0
  %4869 = vmatprep.subr.mxu0 0.0
  %4870 = vmatpush1.msra.mxu0 0.0
  %4871 = vmatprep.subr.mxu0 0.0
  %4872 = vmatpush1.msra.mxu0 0.0
  %4873 = vmatprep.subr.mxu0 0.0
  %4874 = vmatpush1.msra.mxu0 0.0
  %4875 = vmatprep.subr.mxu0 0.0
  %4876 = vmatpush1.msra.mxu0 0.0
  %4877 = vmatprep.subr.mxu0 0.0
  %4878 = vmatpush1.msra.mxu0 0.0
  %4879 = vmatprep.subr.mxu0 0.0
  %4880 = vmatpush1.msra.mxu0 0.0
  %4881 = vmatprep.subr.mxu0 0.0
  %4882 = vmatpush1.msra.mxu0 0.0
  %4883 = vmatprep.subr.mxu0 0.0
  %4884 = vmatpush1.msra.mxu0 0.0
  %4885 = vmatprep.subr.mxu0 0.0
  %4886 = vmatpush1.msra.mxu0 0.0
  %4887 = vmatprep.subr.mxu0 0.0
  %4888 = vmatpush1.msra.mxu0 0.0
  %4889 = vmatprep.subr.mxu0 0.0
  %4890 = vmatpush1.msra.mxu0 0.0
  %4891 = vmatprep.subr.mxu0 0.0
  %4892 = vmatpush1.msra.mxu0 0.0
  %4893 = vmatprep.subr.mxu0 0.0
  %4894 = vmatpush1.msra.mxu0 0.0
  %4895 = vmatprep.subr.mxu0 0.0
  %4896 = vmatpush1.msra.mxu0 0.0
  %4897 = vmatprep.subr.mxu0 0.0
  %4898 = vmatpush1.msra.mxu0 0.0
  %4899 = vmatprep.subr.mxu0 0.0
  %4900 = vmatpush1.msra.mxu0 0.0
  %4901 = vmatprep.subr.mxu0 0.0
  %4902 = vmatpush1.msra.mxu0 0.0
  %4903 = vmatprep.subr.mxu0 0.0
  %4904 = vmatpush1.msra.mxu0 0.0
  %4905 = vmatprep.subr.mxu0 0.0
  %4906 = vmatpush1.msra.mxu0 0.0
  %4907 = vmatprep.subr.mxu0 0.0
  %4908 = vmatpush1.msra.mxu0 0.0
  %4909 = vmatprep.subr.mxu0 0.0
  %4910 = vmatpush1.msra.mxu0 0.0
  %4911 = vmatprep.mubr.f32.mxu0 0.0
  %v4912 = vand.u32 %v4392, 4294901760
  %4913 = vmatmul.mubr.f32.gmra.mrb[0].mxu0 %v4912
  %v4914 = vpop.f32.mrb[0].mxu0
  %v4915 = vadd.f32 %v4805, %v4914
  %v4916 = vpop.f32.mrb[0].mxu0
  %4917 = vmatprep.mubr.f32.mxu0 0.0
  %v4918 = vand.u32 %v4395, 4294901760
  %4919 = vmatmul.mubr.f32.gmra.mrb[0].mxu0 %v4918
  %v4920 = vpop.f32.mrb[0].mxu0
  %v4921 = vadd.f32 %v4813, %v4920
  %v4922 = vpop.f32.mrb[0].mxu0
  %4923 = vmatprep.mubr.f32.mxu0 0.0
  %v4924 = vand.u32 %v4398, 4294901760
  %4925 = vmatmul.mubr.f32.gmra.mrb[0].mxu0 %v4924
  %v4926 = vpop.f32.mrb[0].mxu0
  %v4927 = vadd.f32 %v4821, %v4926
  %v4928 = vpop.f32.mrb[0].mxu0
  %4929 = vmatprep.mubr.f32.mxu0 0.0
  %v4930 = vand.u32 %v4401, 4294901760
  %4931 = vmatmul.mubr.f32.gmra.mrb[0].mxu0 %v4930
  %v4932 = vpop.f32.mrb[0].mxu0
  %v4933 = vadd.f32 %v4829, %v4932
  %v4934 = vpop.f32.mrb[0].mxu0
  %4935 = vdwg.mxu0
  %4936 = vmatprep.subr.mxu0 0.0
  %v4937 = vand.u32 %v4362, 4294901760
  %4938 = vmatpush1.msra.mxu0 %v4937
  %4939 = vmatprep.subr.mxu0 0.0
  %v4940 = vand.u32 %v4363, 4294901760
  %4941 = vmatpush1.msra.mxu0 %v4940
  %4942 = vmatprep.subr.mxu0 0.0
  %v4943 = vand.u32 %v4364, 4294901760
  %4944 = vmatpush1.msra.mxu0 %v4943
  %4945 = vmatprep.subr.mxu0 0.0
  %v4946 = vand.u32 %v4365, 4294901760
  %4947 = vmatpush1.msra.mxu0 %v4946
  %4948 = vmatprep.subr.mxu0 0.0
  %v4949 = vand.u32 %v4366, 4294901760
  %4950 = vmatpush1.msra.mxu0 %v4949
  %4951 = vmatprep.subr.mxu0 0.0
  %4952 = vmatpush1.msra.mxu0 0.0
  %4953 = vmatprep.subr.mxu0 0.0
  %4954 = vmatpush1.msra.mxu0 0.0
  %4955 = vmatprep.subr.mxu0 0.0
  %4956 = vmatpush1.msra.mxu0 0.0
  %4957 = vmatprep.subr.mxu0 0.0
  %4958 = vmatpush1.msra.mxu0 0.0
  %4959 = vmatprep.subr.mxu0 0.0
  %4960 = vmatpush1.msra.mxu0 0.0
  %4961 = vmatprep.subr.mxu0 0.0
  %4962 = vmatpush1.msra.mxu0 0.0
  %4963 = vmatprep.subr.mxu0 0.0
  %4964 = vmatpush1.msra.mxu0 0.0
  %4965 = vmatprep.subr.mxu0 0.0
  %4966 = vmatpush1.msra.mxu0 0.0
  %4967 = vmatprep.subr.mxu0 0.0
  %4968 = vmatpush1.msra.mxu0 0.0
  %4969 = vmatprep.subr.mxu0 0.0
  %4970 = vmatpush1.msra.mxu0 0.0
  %4971 = vmatprep.subr.mxu0 0.0
  %4972 = vmatpush1.msra.mxu0 0.0
  %4973 = vmatprep.subr.mxu0 0.0
  %4974 = vmatpush1.msra.mxu0 0.0
  %4975 = vmatprep.subr.mxu0 0.0
  %4976 = vmatpush1.msra.mxu0 0.0
  %4977 = vmatprep.subr.mxu0 0.0
  %4978 = vmatpush1.msra.mxu0 0.0
  %4979 = vmatprep.subr.mxu0 0.0
  %4980 = vmatpush1.msra.mxu0 0.0
  %4981 = vmatprep.subr.mxu0 0.0
  %4982 = vmatpush1.msra.mxu0 0.0
  %4983 = vmatprep.subr.mxu0 0.0
  %4984 = vmatpush1.msra.mxu0 0.0
  %4985 = vmatprep.subr.mxu0 0.0
  %4986 = vmatpush1.msra.mxu0 0.0
  %4987 = vmatprep.subr.mxu0 0.0
  %4988 = vmatpush1.msra.mxu0 0.0
  %4989 = vmatprep.subr.mxu0 0.0
  %4990 = vmatpush1.msra.mxu0 0.0
  %4991 = vmatprep.subr.mxu0 0.0
  %4992 = vmatpush1.msra.mxu0 0.0
  %4993 = vmatprep.subr.mxu0 0.0
  %4994 = vmatpush1.msra.mxu0 0.0
  %4995 = vmatprep.subr.mxu0 0.0
  %4996 = vmatpush1.msra.mxu0 0.0
  %4997 = vmatprep.subr.mxu0 0.0
  %4998 = vmatpush1.msra.mxu0 0.0
  %4999 = vmatprep.subr.mxu0 0.0
  %5000 = vmatpush1.msra.mxu0 0.0
  %5001 = vmatprep.subr.mxu0 0.0
  %5002 = vmatpush1.msra.mxu0 0.0
  %5003 = vmatprep.subr.mxu0 0.0
  %5004 = vmatpush1.msra.mxu0 0.0
  %5005 = vmatprep.mubr.f32.mxu0 0.0
  %v5006 = vand.u32 %v4392, 4294901760
  %5007 = vmatmul.mubr.f32.gmra.mrb[0].mxu0 %v5006
  %v5008 = vpop.f32.mrb[0].mxu0
  %v5009 = vadd.f32 %v4915, %v5008
  %v5010 = vpop.f32.mrb[0].mxu0
  %5011 = vmatprep.mubr.f32.mxu0 0.0
  %v5012 = vand.u32 %v4395, 4294901760
  %5013 = vmatmul.mubr.f32.gmra.mrb[0].mxu0 %v5012
  %v5014 = vpop.f32.mrb[0].mxu0
  %v5015 = vadd.f32 %v4921, %v5014
  %v5016 = vpop.f32.mrb[0].mxu0
  %5017 = vmatprep.mubr.f32.mxu0 0.0
  %v5018 = vand.u32 %v4398, 4294901760
  %5019 = vmatmul.mubr.f32.gmra.mrb[0].mxu0 %v5018
  %v5020 = vpop.f32.mrb[0].mxu0
  %v5021 = vadd.f32 %v4927, %v5020
  %v5022 = vpop.f32.mrb[0].mxu0
  %5023 = vmatprep.mubr.f32.mxu0 0.0
  %v5024 = vand.u32 %v4401, 4294901760
  %5025 = vmatmul.mubr.f32.gmra.mrb[0].mxu0 %v5024
  %v5026 = vpop.f32.mrb[0].mxu0
  %v5027 = vadd.f32 %v4933, %v5026
  %v5028 = vpop.f32.mrb[0].mxu0
  %5029 = vdwg.mxu0
  %v5030 = vmax.f32 %v5009, 0.0
  %v5031 = vmax.f32 %v5015, 0.0
  %v5032 = vmax.f32 %v5021, 0.0
  %v5033 = vmax.f32 %v5027, 0.0
  %v5034 = vmax.f32 %v5030, %v5032
  %v5035 = vmax.f32 %v5031, %v5033
  %v5036 = vsel %vm1356, %v5034, 0.0
  %5037 = vadd.xlane.f32.xlu0 %v5036
  %v5038 = vpop.xlane.xlu0 %5037
  %v5039 = vsel %vm1356, %v5035, 0.0
  %5040 = vadd.xlane.f32.xlu0 %v5039
  %v5041 = vpop.xlane.xlu0 %5040
  %v5042 = vrcp.pop 40.0
  %v5043 = vmul.f32 %v5038, %v5042
  %v5044 = vmul.f32 %v5041, %v5042
  %v5045 = vsub.f32 %v5034, %v5043
  %v5046 = vsub.f32 %v5035, %v5044
  %v5047 = vmul.f32 %v5045, %v5045
  %v5048 = vmul.f32 %v5046, %v5046
  %v5049 = vsel %vm1356, %v5047, 0.0
  %5050 = vadd.xlane.f32.xlu0 %v5049
  %v5051 = vpop.xlane.xlu0 %5050
  %v5052 = vsel %vm1356, %v5048, 0.0
  %5053 = vadd.xlane.f32.xlu0 %v5052
  %v5054 = vpop.xlane.xlu0 %5053
  %v5055 = vmul.f32 %v5051, %v5042
  %v5056 = vmul.f32 %v5054, %v5042
  %v5057 = vadd.f32 %v5055, 1e-05
  %v5058 = vadd.f32 %v5056, 1e-05
  %v5059 = vrsqrt.pop %v5057
  %v5060 = vrsqrt.pop %v5058
  %v5061 = vmul.f32 %v33, %v5059
  %v5062 = vmul.f32 %v34, %v5060
  %5064 = vset.pattern.permute.xlu0 0
  %5065 = vperm.xlu0 %5064, %v5061
  %v5066 = vpop.permute.xlu0 %5065
  %5069 = vset.pattern.permute.xlu0 0
  %5070 = vperm.xlu0 %5069, %v5062
  %v5071 = vpop.permute.xlu0 %5070
  %v5073 = vmul.f32 %v5045, %v5066
  %v5074 = vmul.f32 %v5046, %v5071
  %5076 = vset.pattern.permute.xlu0 0
  %5077 = vperm.xlu0 %5076, %v35
  %v5078 = vpop.permute.xlu0 %5077
  %5081 = vset.pattern.permute.xlu0 0
  %5082 = vperm.xlu0 %5081, %v36
  %v5083 = vpop.permute.xlu0 %5082
  %v5085 = vadd.f32 %v5073, %v5078
  %v5086 = vadd.f32 %v5074, %v5083
  %5087 = vst.msk [vmem:[%s4] sm:$0xff] %vm1356, %v5085
  %5088 = vst.msk [vmem:[%s4 + $0x8] sm:$0xff] %vm1356, %v5086
  // Predicated region
  $region18: #{aud_encoder_forward.2} parent=0 // pred_check
    _
  $region19: #{aud_encoder_forward.2} parent=0 // pred_check_branch
    %5090 = sbr.rel (0) target = $region21
  $region20: #{aud_encoder_forward.2} parent=0 // pred_region
    _
  $region21: #{aud_encoder_forward.2} parent=0 // pred_fallthru
    _
  // Predicated region
  $region22: #{aud_encoder_forward.2} parent=0 // pred_check
    _
  $region23: #{aud_encoder_forward.2} parent=0 // pred_check_branch
    %5092 = sbr.rel (0) target = $region25
  $region24: #{aud_encoder_forward.2} parent=0 // pred_region
    _
  $region25: #{aud_encoder_forward.2} parent=0 // pred_fallthru
    _

</llo_original>
